<compile_context>
chip_gen: v7x
topology: tpu7x:2x2x1
jax: 0.10.0
libtpu: 0.0.40
codegen_flags: <defaults>
</compile_context>

<pallas_src>
import jax
import jax.numpy as jnp
from jax import lax
from jax.experimental import pallas as pl
from jax.experimental.pallas import tpu as pltpu


def _round8(n):
    return (n + 7) // 8 * 8


def _layernorm(x, g, b, eps=1e-5):
    mu = jnp.mean(x, axis=-1, keepdims=True)
    var = jnp.mean((x - mu) ** 2, axis=-1, keepdims=True)
    return (x - mu) * lax.rsqrt(var + eps) * g + b


# Row indices inside the packed "vecs" buffer (each row is (1, h), broadcast over the tile).
_V_WQT, _V_BQ, _V_BSA, _V_BCA = 0, 1, 2, 3
_V_LN1G, _V_LN1B, _V_LN2G, _V_LN2B, _V_LN3G, _V_LN3B = 4, 5, 6, 7, 8, 9
_V_B2, _V_BM, _V_BOUT = 10, 11, 12
_NUM_VEC_ROWS = 13


def _make_kernel(num_params, num_hidden, num_conditions, off):
    P, h, C = num_params, num_hidden, num_conditions

    def kernel(x_ref, t_ref, c_ref, wmats_ref, vecs_ref, w1b_ref, o_ref):
        f32 = jnp.float32
        x = x_ref[...].astype(f32)                        # (TB, P)
        t = t_ref[...].astype(f32)                        # (TB, 1)
        c = c_ref[...].astype(f32)                        # (TB, C)

        vecs = vecs_ref[...].astype(f32)                  # (13, h)
        row = lambda i: vecs[i:i + 1, :]                  # (1, h) broadcast rows

        def wmat(name, rows):                             # sublane-aligned static slice
            s = off[name]
            return wmats_ref[s:s + rows, :].astype(f32)

        # q0 = [x, t] @ Wq + bq   (Wq split; the t column becomes a pure broadcast)
        q0 = (jnp.dot(x, wmat("wq_x", P), preferred_element_type=f32)
              + t * row(_V_WQT) + row(_V_BQ))

        # self-attention: tgt seq len == 1 => softmax over a single key == 1 exactly,
        # so MHA(q0,q0,q0) == out_proj(v_proj(q0)); pre-folded into one (h, h) matmul.
        sa = jnp.dot(q0, wmat("w_sa", h), preferred_element_type=f32) + row(_V_BSA)
        x1 = _layernorm(q0 + sa, row(_V_LN1G), row(_V_LN1B))

        # cross-attention: memory seq len == 1, same exact collapse; the kv projection
        # of the conditions is folded in as well -> one (C, h) matmul.
        ca = jnp.dot(c, wmat("w_ca", C), preferred_element_type=f32) + row(_V_BCA)
        x2 = _layernorm(x1 + ca, row(_V_LN2G), row(_V_LN2B))

        # decoder feed-forward (ReLU), dim_feedforward = 4h
        w1 = w1b_ref[0:h, :].astype(f32)                  # (h, 4h)
        b1 = w1b_ref[h:h + 1, :].astype(f32)              # (1, 4h)
        ff = jnp.maximum(jnp.dot(x2, w1, preferred_element_type=f32) + b1, 0.0)
        ff = jnp.dot(ff, wmat("w2", 4 * h), preferred_element_type=f32) + row(_V_B2)
        x3 = _layernorm(x2 + ff, row(_V_LN3G), row(_V_LN3B))

        # mlp_after_attention: Linear(h, h) + ReLU (num_layers=2, no BN, dropout=0)
        h1 = jnp.maximum(
            jnp.dot(x3, wmat("wm", h), preferred_element_type=f32) + row(_V_BM), 0.0)

        # output_layer: h1 @ Wout + bout.  Wout is stored transposed (P, h) so it fits
        # the packed (·, h) buffer -> contract both last dims (trans_b matmul).
        out = jnp.einsum("bh,ph->bp", h1, wmat("wout_t", P),
                         preferred_element_type=f32)
        out = out + row(_V_BOUT)[:, :P]
        # NOTE: output stays (TB, P) with P=2 lanes (masked stores); padding it to 128
        # lanes would cost 64x the HBM write bytes, so narrow stores are the better trade.
        o_ref[...] = out.astype(o_ref.dtype)

    return kernel


def fold_and_pack_params(p, num_params, num_hidden, num_conditions):
    """Fold the seq-len-1 attention Linears and pack all parameters into 3 buffers."""
    h, P, C = num_hidden, num_params, num_conditions
    f32 = jnp.float32
    g = lambda k: p[k].astype(f32)

    # exact algebraic folds (done once, in f32)
    w_sa = g("wv_sa") @ g("wo_sa")
    b_sa = g("bv_sa") @ g("wo_sa") + g("bo_sa")
    w_ca = g("wkv") @ g("wv_ca") @ g("wo_ca")
    b_ca = (g("bkv") @ g("wv_ca") + g("bv_ca")) @ g("wo_ca") + g("bo_ca")
    wq_x = g("wq")[:P]                        # (P, h)
    wq_t = g("wq")[P:P + 1]                   # (1, h)
    wout_t = g("wout").T                      # (P, h)

    # packed matmul-weight buffer: every segment starts on an 8-row (sublane) boundary
    segs = [("wq_x", wq_x), ("w_ca", w_ca), ("wout_t", wout_t),
            ("w_sa", w_sa), ("w2", g("w2")), ("wm", g("wm"))]
    off, cur = {}, 0
    for name, mat in segs:
        off[name] = cur
        cur += _round8(mat.shape[0])
    wmats = jnp.zeros((cur, h), f32)
    for name, mat in segs:
        wmats = wmats.at[off[name]:off[name] + mat.shape[0], :].set(mat)

    # packed broadcast rows (biases + LayerNorm params), all width h
    bout_pad = jnp.zeros((1, h), f32).at[:, :P].set(g("bout"))
    vecs = jnp.concatenate(
        [wq_t, g("bq"), b_sa, b_ca,
         g("ln1g"), g("ln1b"), g("ln2g"), g("ln2b"), g("ln3g"), g("ln3b"),
         g("b2"), g("bm"), bout_pad], axis=0)
    assert vecs.shape == (_NUM_VEC_ROWS, h)

    # feed-forward first layer weight + bias in one (h+1, 4h) buffer
    w1b = jnp.concatenate([g("w1"), g("b1")], axis=0)

    return {"wmats": wmats, "vecs": vecs, "w1b": w1b, "offsets": off,
            "dims": (P, h, C)}


def cross_attention_mlp(x, t, condition, packed, *, block_b=512):
    """Batch-tiled forward.  x:(B,P)  t:(B,1)  condition:(B,C)  -> (B,P) float32."""
    P, h, C = packed["dims"]
    B = x.shape[0]
    # TB=512 fits comfortably in v5e's 16 MiB scoped VMEM; raise block_b on v6e/v7x
    # (and vmem_limit_bytes) if you want to amortize per-step overhead further.
    TB = _round8(min(block_b, B))
    grid = (pl.cdiv(B, TB),)

    wmats, vecs, w1b = packed["wmats"], packed["vecs"], packed["w1b"]
    kernel = _make_kernel(P, h, C, packed["offsets"])

    def row_spec(feat):                      # batch-tiled activation stream
        return pl.BlockSpec((TB, feat), lambda i: (i, 0))

    def resident(a):                         # whole array, same block every step
        return pl.BlockSpec(a.shape, lambda i: (0, 0))

    return pl.pallas_call(
        kernel,
        out_shape=jax.ShapeDtypeStruct((B, P), jnp.float32),
        grid=grid,
        in_specs=[row_spec(P), row_spec(1), row_spec(C),
                  resident(wmats), resident(vecs), resident(w1b)],
        out_specs=row_spec(P),
        compiler_params=pltpu.CompilerParams(
            dimension_semantics=("parallel",),     # megacore sharding on v7x
            vmem_limit_bytes=32 * 1024 * 1024),
    )(x, t, condition, wmats, vecs, w1b)


def init_params(key, num_params=2, num_hidden=32, num_conditions=8):
    """PyTorch-style raw parameters (Linear weights stored transposed: (in, out))."""
    h = num_hidden
    keys = jax.random.split(key, 16)

    def lin(k, fan_in, fan_out):
        scale = 1.0 / jnp.sqrt(jnp.float32(fan_in))
        w = jax.random.uniform(k, (fan_in, fan_out), jnp.float32, -scale, scale)
        b = jax.random.uniform(jax.random.fold_in(k, 1), (1, fan_out),
                               jnp.float32, -scale, scale)
        return w, b

    p = {}
    p["wq"], p["bq"] = lin(keys[0], num_params + 1, h)
    p["wkv"], p["bkv"] = lin(keys[1], num_conditions, h)
    # attention V / output projections (Q,K projections drop out exactly for seq len 1)
    p["wv_sa"], p["bv_sa"] = lin(keys[2], h, h)
    p["wo_sa"], p["bo_sa"] = lin(keys[3], h, h)
    p["wv_ca"], p["bv_ca"] = lin(keys[4], h, h)
    p["wo_ca"], p["bo_ca"] = lin(keys[5], h, h)
    for name in ("ln1", "ln2", "ln3"):
        p[name + "g"] = jnp.ones((1, h), jnp.float32)
        p[name + "b"] = jnp.zeros((1, h), jnp.float32)
    p["w1"], p["b1"] = lin(keys[6], h, 4 * h)
    p["w2"], p["b2"] = lin(keys[7], 4 * h, h)
    p["wm"], p["bm"] = lin(keys[8], h, h)
    p["wout"], p["bout"] = lin(keys[9], h, num_params)
    return p


def reference_forward(x, t, condition, p):
    """Pure-JAX reference of the ORIGINAL (unfolded) math for a correctness check."""
    qin = jnp.concatenate([x, t], axis=-1)
    q0 = qin @ p["wq"] + p["bq"]
    m0 = condition @ p["wkv"] + p["bkv"]
    sa = (q0 @ p["wv_sa"] + p["bv_sa"]) @ p["wo_sa"] + p["bo_sa"]
    x1 = _layernorm(q0 + sa, p["ln1g"], p["ln1b"])
    ca = (m0 @ p["wv_ca"] + p["bv_ca"]) @ p["wo_ca"] + p["bo_ca"]
    x2 = _layernorm(x1 + ca, p["ln2g"], p["ln2b"])
    ff = jnp.maximum(x2 @ p["w1"] + p["b1"], 0.0) @ p["w2"] + p["b2"]
    x3 = _layernorm(x2 + ff, p["ln3g"], p["ln3b"])
    h1 = jnp.maximum(x3 @ p["wm"] + p["bm"], 0.0)
    return h1 @ p["wout"] + p["bout"]


if __name__ == "__main__":
    B, num_params, num_hidden, num_conditions = 1024, 2, 32, 8

    key = jax.random.PRNGKey(0)
    kx, kt, kc, kp = jax.random.split(key, 4)
    x = jax.random.normal(kx, (B, num_params), jnp.float32)
    t = jax.random.uniform(kt, (B, 1), jnp.float32)
    condition = jax.random.normal(kc, (B, num_conditions), jnp.float32)

    raw = init_params(kp, num_params, num_hidden, num_conditions)
    packed = fold_and_pack_params(raw, num_params, num_hidden, num_conditions)

    out = cross_attention_mlp(x, t, condition, packed, block_b=256)  # grid = (4,)
    out = jax.block_until_ready(out)

    ref = reference_forward(x, t, condition, raw)
    assert out.shape == (B, num_params)
    max_err = float(jnp.max(jnp.abs(out - ref)))
    assert max_err < 1e-4, f"max abs err {max_err}"

    print("KERNEL_OK")
</pallas_src>

<mosaic_0001>
module attributes {stable_mosaic.version = 11 : i64} {
  func.func @kernel(%arg0: i32, %arg1: memref<256x2xf32, #tpu.memory_space<vmem>>, %arg2: memref<256x1xf32, #tpu.memory_space<vmem>>, %arg3: memref<256x8xf32, #tpu.memory_space<vmem>>, %arg4: memref<216x32xf32, #tpu.memory_space<vmem>>, %arg5: memref<13x32xf32, #tpu.memory_space<vmem>>, %arg6: memref<33x128xf32, #tpu.memory_space<vmem>>, %arg7: memref<256x2xf32, #tpu.memory_space<vmem>>) attributes {dimension_semantics = [#tpu.dimension_semantics<parallel>], iteration_bounds = array<i64: 4>, scalar_prefetch = 0 : i64, scratch_operands = 0 : i64, tpu.core_type = #tpu.core_type<tc>, window_params = [{transform_indices = @transform_0, window_bounds = array<i64: 256, 2>}, {transform_indices = @transform_1, window_bounds = array<i64: 256, 1>}, {transform_indices = @transform_2, window_bounds = array<i64: 256, 8>}, {pipeline_mode = #tpu.pipeline_mode<synchronous>, transform_indices = @transform_3, window_bounds = array<i64: 216, 32>}, {pipeline_mode = #tpu.pipeline_mode<synchronous>, transform_indices = @transform_4, window_bounds = array<i64: 13, 32>}, {pipeline_mode = #tpu.pipeline_mode<synchronous>, transform_indices = @transform_5, window_bounds = array<i64: 33, 128>}, {transform_indices = @transform_6, window_bounds = array<i64: 256, 2>}]} {
    %c0 = arith.constant 0 : index
    %c0_0 = arith.constant 0 : index
    %0 = vector.load %arg1[%c0, %c0_0] : memref<256x2xf32, #tpu.memory_space<vmem>>, vector<256x2xf32>
    %c0_1 = arith.constant 0 : index
    %c0_2 = arith.constant 0 : index
    %1 = vector.load %arg2[%c0_1, %c0_2] : memref<256x1xf32, #tpu.memory_space<vmem>>, vector<256x1xf32>
    %c0_3 = arith.constant 0 : index
    %c0_4 = arith.constant 0 : index
    %2 = vector.load %arg3[%c0_3, %c0_4] : memref<256x8xf32, #tpu.memory_space<vmem>>, vector<256x8xf32>
    %c0_5 = arith.constant 0 : index
    %c0_6 = arith.constant 0 : index
    %3 = vector.load %arg5[%c0_5, %c0_6] : memref<13x32xf32, #tpu.memory_space<vmem>>, vector<13x32xf32>
    %c0_7 = arith.constant 0 : index
    %c0_8 = arith.constant 0 : index
    %4 = vector.load %arg4[%c0_7, %c0_8] : memref<216x32xf32, #tpu.memory_space<vmem>>, vector<2x32xf32>
    %cst = arith.constant dense<0.000000e+00> : vector<256x32xf32>
    %5 = tpu.matmul %0, %4, %cst {dimension_numbers = #tpu.dot_dimension_numbers<[1], [0], [0], [1], [0, 0, 1, 1], [], []>} : vector<256x2xf32>, vector<2x32xf32>, vector<256x32xf32> -> vector<256x32xf32>
    %6 = vector.extract_strided_slice %3 {offsets = [0, 0], sizes = [1, 32], strides = [1, 1]} : vector<13x32xf32> to vector<1x32xf32>
    %7 = vector.broadcast %1 : vector<256x1xf32> to vector<256x32xf32>
    %8 = vector.broadcast %6 : vector<1x32xf32> to vector<256x32xf32>
    %9 = arith.mulf %7, %8 : vector<256x32xf32>
    %10 = arith.addf %5, %9 : vector<256x32xf32>
    %11 = vector.extract_strided_slice %3 {offsets = [1, 0], sizes = [1, 32], strides = [1, 1]} : vector<13x32xf32> to vector<1x32xf32>
    %12 = vector.broadcast %11 : vector<1x32xf32> to vector<256x32xf32>
    %13 = arith.addf %10, %12 : vector<256x32xf32>
    %c24 = arith.constant 24 : index
    %c0_9 = arith.constant 0 : index
    %14 = vector.load %arg4[%c24, %c0_9] : memref<216x32xf32, #tpu.memory_space<vmem>>, vector<32x32xf32>
    %cst_10 = arith.constant dense<0.000000e+00> : vector<256x32xf32>
    %15 = tpu.matmul %13, %14, %cst_10 {dimension_numbers = #tpu.dot_dimension_numbers<[1], [0], [0], [1], [0, 0, 1, 1], [], []>} : vector<256x32xf32>, vector<32x32xf32>, vector<256x32xf32> -> vector<256x32xf32>
    %16 = vector.extract_strided_slice %3 {offsets = [2, 0], sizes = [1, 32], strides = [1, 1]} : vector<13x32xf32> to vector<1x32xf32>
    %17 = vector.broadcast %16 : vector<1x32xf32> to vector<256x32xf32>
    %18 = arith.addf %15, %17 : vector<256x32xf32>
    %19 = arith.addf %13, %18 : vector<256x32xf32>
    %20 = vector.extract_strided_slice %3 {offsets = [4, 0], sizes = [1, 32], strides = [1, 1]} : vector<13x32xf32> to vector<1x32xf32>
    %21 = vector.extract_strided_slice %3 {offsets = [5, 0], sizes = [1, 32], strides = [1, 1]} : vector<13x32xf32> to vector<1x32xf32>
    %cst_11 = arith.constant dense<0.000000e+00> : vector<256xf32>
    %22 = vector.multi_reduction <add>, %19, %cst_11 [1] : vector<256x32xf32> to vector<256xf32>
    %23 = vector.shape_cast %22 : vector<256xf32> to vector<256x1xf32>
    %cst_12 = arith.constant 3.200000e+01 : f32
    %24 = vector.broadcast %cst_12 : f32 to vector<256x1xf32>
    %25 = arith.divf %23, %24 : vector<256x1xf32>
    %26 = vector.broadcast %25 : vector<256x1xf32> to vector<256x32xf32>
    %27 = arith.subf %19, %26 : vector<256x32xf32>
    %28 = arith.mulf %27, %27 : vector<256x32xf32>
    %cst_13 = arith.constant dense<0.000000e+00> : vector<256xf32>
    %29 = vector.multi_reduction <add>, %28, %cst_13 [1] : vector<256x32xf32> to vector<256xf32>
    %30 = vector.shape_cast %29 : vector<256xf32> to vector<256x1xf32>
    %cst_14 = arith.constant 3.200000e+01 : f32
    %31 = vector.broadcast %cst_14 : f32 to vector<256x1xf32>
    %32 = arith.divf %30, %31 : vector<256x1xf32>
    %33 = vector.broadcast %25 : vector<256x1xf32> to vector<256x32xf32>
    %34 = arith.subf %19, %33 : vector<256x32xf32>
    %cst_15 = arith.constant 9.99999974E-6 : f32
    %35 = vector.broadcast %cst_15 : f32 to vector<256x1xf32>
    %36 = arith.addf %32, %35 : vector<256x1xf32>
    %37 = math.rsqrt %36 : vector<256x1xf32>
    %38 = vector.broadcast %37 : vector<256x1xf32> to vector<256x32xf32>
    %39 = arith.mulf %34, %38 : vector<256x32xf32>
    %40 = vector.broadcast %20 : vector<1x32xf32> to vector<256x32xf32>
    %41 = arith.mulf %39, %40 : vector<256x32xf32>
    %42 = vector.broadcast %21 : vector<1x32xf32> to vector<256x32xf32>
    %43 = arith.addf %41, %42 : vector<256x32xf32>
    %c8 = arith.constant 8 : index
    %c0_16 = arith.constant 0 : index
    %44 = vector.load %arg4[%c8, %c0_16] : memref<216x32xf32, #tpu.memory_space<vmem>>, vector<8x32xf32>
    %cst_17 = arith.constant dense<0.000000e+00> : vector<256x32xf32>
    %45 = tpu.matmul %2, %44, %cst_17 {dimension_numbers = #tpu.dot_dimension_numbers<[1], [0], [0], [1], [0, 0, 1, 1], [], []>} : vector<256x8xf32>, vector<8x32xf32>, vector<256x32xf32> -> vector<256x32xf32>
    %46 = vector.extract_strided_slice %3 {offsets = [3, 0], sizes = [1, 32], strides = [1, 1]} : vector<13x32xf32> to vector<1x32xf32>
    %47 = vector.broadcast %46 : vector<1x32xf32> to vector<256x32xf32>
    %48 = arith.addf %45, %47 : vector<256x32xf32>
    %49 = arith.addf %43, %48 : vector<256x32xf32>
    %50 = vector.extract_strided_slice %3 {offsets = [6, 0], sizes = [1, 32], strides = [1, 1]} : vector<13x32xf32> to vector<1x32xf32>
    %51 = vector.extract_strided_slice %3 {offsets = [7, 0], sizes = [1, 32], strides = [1, 1]} : vector<13x32xf32> to vector<1x32xf32>
    %cst_18 = arith.constant dense<0.000000e+00> : vector<256xf32>
    %52 = vector.multi_reduction <add>, %49, %cst_18 [1] : vector<256x32xf32> to vector<256xf32>
    %53 = vector.shape_cast %52 : vector<256xf32> to vector<256x1xf32>
    %cst_19 = arith.constant 3.200000e+01 : f32
    %54 = vector.broadcast %cst_19 : f32 to vector<256x1xf32>
    %55 = arith.divf %53, %54 : vector<256x1xf32>
    %56 = vector.broadcast %55 : vector<256x1xf32> to vector<256x32xf32>
    %57 = arith.subf %49, %56 : vector<256x32xf32>
    %58 = arith.mulf %57, %57 : vector<256x32xf32>
    %cst_20 = arith.constant dense<0.000000e+00> : vector<256xf32>
    %59 = vector.multi_reduction <add>, %58, %cst_20 [1] : vector<256x32xf32> to vector<256xf32>
    %60 = vector.shape_cast %59 : vector<256xf32> to vector<256x1xf32>
    %cst_21 = arith.constant 3.200000e+01 : f32
    %61 = vector.broadcast %cst_21 : f32 to vector<256x1xf32>
    %62 = arith.divf %60, %61 : vector<256x1xf32>
    %63 = vector.broadcast %55 : vector<256x1xf32> to vector<256x32xf32>
    %64 = arith.subf %49, %63 : vector<256x32xf32>
    %cst_22 = arith.constant 9.99999974E-6 : f32
    %65 = vector.broadcast %cst_22 : f32 to vector<256x1xf32>
    %66 = arith.addf %62, %65 : vector<256x1xf32>
    %67 = math.rsqrt %66 : vector<256x1xf32>
    %68 = vector.broadcast %67 : vector<256x1xf32> to vector<256x32xf32>
    %69 = arith.mulf %64, %68 : vector<256x32xf32>
    %70 = vector.broadcast %50 : vector<1x32xf32> to vector<256x32xf32>
    %71 = arith.mulf %69, %70 : vector<256x32xf32>
    %72 = vector.broadcast %51 : vector<1x32xf32> to vector<256x32xf32>
    %73 = arith.addf %71, %72 : vector<256x32xf32>
    %c0_23 = arith.constant 0 : index
    %c0_24 = arith.constant 0 : index
    %74 = vector.load %arg6[%c0_23, %c0_24] : memref<33x128xf32, #tpu.memory_space<vmem>>, vector<32x128xf32>
    %c32 = arith.constant 32 : index
    %c0_25 = arith.constant 0 : index
    %75 = vector.load %arg6[%c32, %c0_25] : memref<33x128xf32, #tpu.memory_space<vmem>>, vector<1x128xf32>
    %cst_26 = arith.constant dense<0.000000e+00> : vector<256x128xf32>
    %76 = tpu.matmul %73, %74, %cst_26 {dimension_numbers = #tpu.dot_dimension_numbers<[1], [0], [0], [1], [0, 0, 1, 1], [], []>} : vector<256x32xf32>, vector<32x128xf32>, vector<256x128xf32> -> vector<256x128xf32>
    %77 = vector.broadcast %75 : vector<1x128xf32> to vector<256x128xf32>
    %78 = arith.addf %76, %77 : vector<256x128xf32>
    %cst_27 = arith.constant 0.000000e+00 : f32
    %79 = vector.broadcast %cst_27 : f32 to vector<256x128xf32>
    %80 = arith.maximumf %78, %79 : vector<256x128xf32>
    %c56 = arith.constant 56 : index
    %c0_28 = arith.constant 0 : index
    %81 = vector.load %arg4[%c56, %c0_28] : memref<216x32xf32, #tpu.memory_space<vmem>>, vector<128x32xf32>
    %cst_29 = arith.constant dense<0.000000e+00> : vector<256x32xf32>
    %82 = tpu.matmul %80, %81, %cst_29 {dimension_numbers = #tpu.dot_dimension_numbers<[1], [0], [0], [1], [0, 0, 1, 1], [], []>} : vector<256x128xf32>, vector<128x32xf32>, vector<256x32xf32> -> vector<256x32xf32>
    %83 = vector.extract_strided_slice %3 {offsets = [10, 0], sizes = [1, 32], strides = [1, 1]} : vector<13x32xf32> to vector<1x32xf32>
    %84 = vector.broadcast %83 : vector<1x32xf32> to vector<256x32xf32>
    %85 = arith.addf %82, %84 : vector<256x32xf32>
    %86 = arith.addf %73, %85 : vector<256x32xf32>
    %87 = vector.extract_strided_slice %3 {offsets = [8, 0], sizes = [1, 32], strides = [1, 1]} : vector<13x32xf32> to vector<1x32xf32>
    %88 = vector.extract_strided_slice %3 {offsets = [9, 0], sizes = [1, 32], strides = [1, 1]} : vector<13x32xf32> to vector<1x32xf32>
    %cst_30 = arith.constant dense<0.000000e+00> : vector<256xf32>
    %89 = vector.multi_reduction <add>, %86, %cst_30 [1] : vector<256x32xf32> to vector<256xf32>
    %90 = vector.shape_cast %89 : vector<256xf32> to vector<256x1xf32>
    %cst_31 = arith.constant 3.200000e+01 : f32
    %91 = vector.broadcast %cst_31 : f32 to vector<256x1xf32>
    %92 = arith.divf %90, %91 : vector<256x1xf32>
    %93 = vector.broadcast %92 : vector<256x1xf32> to vector<256x32xf32>
    %94 = arith.subf %86, %93 : vector<256x32xf32>
    %95 = arith.mulf %94, %94 : vector<256x32xf32>
    %cst_32 = arith.constant dense<0.000000e+00> : vector<256xf32>
    %96 = vector.multi_reduction <add>, %95, %cst_32 [1] : vector<256x32xf32> to vector<256xf32>
    %97 = vector.shape_cast %96 : vector<256xf32> to vector<256x1xf32>
    %cst_33 = arith.constant 3.200000e+01 : f32
    %98 = vector.broadcast %cst_33 : f32 to vector<256x1xf32>
    %99 = arith.divf %97, %98 : vector<256x1xf32>
    %100 = vector.broadcast %92 : vector<256x1xf32> to vector<256x32xf32>
    %101 = arith.subf %86, %100 : vector<256x32xf32>
    %cst_34 = arith.constant 9.99999974E-6 : f32
    %102 = vector.broadcast %cst_34 : f32 to vector<256x1xf32>
    %103 = arith.addf %99, %102 : vector<256x1xf32>
    %104 = math.rsqrt %103 : vector<256x1xf32>
    %105 = vector.broadcast %104 : vector<256x1xf32> to vector<256x32xf32>
    %106 = arith.mulf %101, %105 : vector<256x32xf32>
    %107 = vector.broadcast %87 : vector<1x32xf32> to vector<256x32xf32>
    %108 = arith.mulf %106, %107 : vector<256x32xf32>
    %109 = vector.broadcast %88 : vector<1x32xf32> to vector<256x32xf32>
    %110 = arith.addf %108, %109 : vector<256x32xf32>
    %c184 = arith.constant 184 : index
    %c0_35 = arith.constant 0 : index
    %111 = vector.load %arg4[%c184, %c0_35] : memref<216x32xf32, #tpu.memory_space<vmem>>, vector<32x32xf32>
    %cst_36 = arith.constant dense<0.000000e+00> : vector<256x32xf32>
    %112 = tpu.matmul %110, %111, %cst_36 {dimension_numbers = #tpu.dot_dimension_numbers<[1], [0], [0], [1], [0, 0, 1, 1], [], []>} : vector<256x32xf32>, vector<32x32xf32>, vector<256x32xf32> -> vector<256x32xf32>
    %113 = vector.extract_strided_slice %3 {offsets = [11, 0], sizes = [1, 32], strides = [1, 1]} : vector<13x32xf32> to vector<1x32xf32>
    %114 = vector.broadcast %113 : vector<1x32xf32> to vector<256x32xf32>
    %115 = arith.addf %112, %114 : vector<256x32xf32>
    %cst_37 = arith.constant 0.000000e+00 : f32
    %116 = vector.broadcast %cst_37 : f32 to vector<256x32xf32>
    %117 = arith.maximumf %115, %116 : vector<256x32xf32>
    %c16 = arith.constant 16 : index
    %c0_38 = arith.constant 0 : index
    %118 = vector.load %arg4[%c16, %c0_38] : memref<216x32xf32, #tpu.memory_space<vmem>>, vector<2x32xf32>
    "tpu.trace_start"() <{level = 10 : i32, message = "bh,ph->bp"}> : () -> ()
    %cst_39 = arith.constant dense<0.000000e+00> : vector<256x2xf32>
    %119 = tpu.matmul %117, %118, %cst_39 {dimension_numbers = #tpu.dot_dimension_numbers<[1], [1], [0], [0], [0, 0, 1, 0], [], []>} : vector<256x32xf32>, vector<2x32xf32>, vector<256x2xf32> -> vector<256x2xf32>
    "tpu.trace_stop"() : () -> ()
    %120 = vector.extract_strided_slice %3 {offsets = [12, 0], sizes = [1, 32], strides = [1, 1]} : vector<13x32xf32> to vector<1x32xf32>
    %121 = vector.extract_strided_slice %120 {offsets = [0, 0], sizes = [1, 2], strides = [1, 1]} : vector<1x32xf32> to vector<1x2xf32>
    %122 = vector.broadcast %121 : vector<1x2xf32> to vector<256x2xf32>
    %123 = arith.addf %119, %122 : vector<256x2xf32>
    %c0_40 = arith.constant 0 : index
    %c0_41 = arith.constant 0 : index
    %124 = vector.load %arg7[%c0_40, %c0_41] : memref<256x2xf32, #tpu.memory_space<vmem>>, vector<256x2xf32>
    tpu.vector_store %arg7[%c0_40, %c0_41], %123 {strides = array<i32>} : memref<256x2xf32, #tpu.memory_space<vmem>>, vector<256x2xf32>,
    return
  }
  func.func @transform_0(%arg0: i32) -> (i32, i32) {
    %c0_i32 = arith.constant 0 : i32
    %c0_i32_0 = arith.constant 0 : i32
    return %arg0, %c0_i32 : i32, i32
  }
  func.func @transform_1(%arg0: i32) -> (i32, i32) {
    %c0_i32 = arith.constant 0 : i32
    %c0_i32_0 = arith.constant 0 : i32
    return %arg0, %c0_i32 : i32, i32
  }
  func.func @transform_2(%arg0: i32) -> (i32, i32) {
    %c0_i32 = arith.constant 0 : i32
    %c0_i32_0 = arith.constant 0 : i32
    return %arg0, %c0_i32 : i32, i32
  }
  func.func @transform_3(%arg0: i32) -> (i32, i32) {
    %c0_i32 = arith.constant 0 : i32
    %c0_i32_0 = arith.constant 0 : i32
    %c0_i32_1 = arith.constant 0 : i32
    return %c0_i32, %c0_i32_0 : i32, i32
  }
  func.func @transform_4(%arg0: i32) -> (i32, i32) {
    %c0_i32 = arith.constant 0 : i32
    %c0_i32_0 = arith.constant 0 : i32
    %c0_i32_1 = arith.constant 0 : i32
    return %c0_i32, %c0_i32_0 : i32, i32
  }
  func.func @transform_5(%arg0: i32) -> (i32, i32) {
    %c0_i32 = arith.constant 0 : i32
    %c0_i32_0 = arith.constant 0 : i32
    %c0_i32_1 = arith.constant 0 : i32
    return %c0_i32, %c0_i32_0 : i32, i32
  }
  func.func @transform_6(%arg0: i32) -> (i32, i32) {
    %c0_i32 = arith.constant 0 : i32
    %c0_i32_0 = arith.constant 0 : i32
    return %arg0, %c0_i32 : i32, i32
  }
}

</mosaic_0001>

<llo_original>
// kernel: tpu_custom_call.1
$region0: #{tpu_custom_call.1}
  #allocation0 [shape = 'u32[]', space=smem, size = 0x4, offset = 0x4, fixed_abs, tag = 'smem constant byte address 0x4 - core index']
  #allocation1 [shape = 'u32[144,128]{1,0:T(1,128)}', space=vmem, size = 0x12000, scoped, tag = 'internal scratch']
  %s0 = inlined_call_operand.vmem [shape: f32[1024,2], index: 0, kind: input, shape index: {}]
  %s1 = inlined_call_operand.vmem [shape: f32[1024,1], index: 1, kind: input, shape index: {}]
  %s2 = inlined_call_operand.vmem [shape: f32[1024,8], index: 2, kind: input, shape index: {}]
  %s3 = inlined_call_operand.vmem [shape: f32[216,32], index: 3, kind: input, shape index: {}]
  %s4 = inlined_call_operand.vmem [shape: f32[13,32], index: 4, kind: input, shape index: {}]
  %s5 = inlined_call_operand.vmem [shape: f32[33,128], index: 5, kind: input, shape index: {}]
  %s6 = inlined_call_operand.vmem [shape: f32[1024,2], index: 6, kind: output, shape index: {}]
  %s7 = sld [smem:[#allocation0]]
  $region57: #{tpu_custom_call.1} parent=0
    _
  %s9 = ssub.s32 1, %s7
  %s10 = scalar_select 0, %s9, %s7
  loop: start=0, step=1, limit=6
  $region2: #{tpu_custom_call.1} parent=0 // loop_pre_header
    _
  $region3: #{tpu_custom_call.1} parent=0 // loop_header
    %s12 = sphi 0, %s16
    %p13 = scmp.ge.s32.totalorder %s12, 6
    %s22 = sphi 0, %s24
    %s25 = sphi 0, %s22
    %s26 = sphi 0, %s25
    %s42 = sphi 0, %s26
    %s48 = sphi 0, %s50
    %s51 = sphi 0, %s48
    %s52 = sphi 0, %s51
    %s68 = sphi 0, %s52
    %s74 = sphi 0, %s76
    %s77 = sphi 0, %s74
    %s78 = sphi 0, %s77
    %s94 = sphi 0, %s78
    %s98 = sphi 0, %s98
    %s100 = sphi 0, %s98
    %s101 = sphi 0, %s100
    %s115 = sphi 0, %s101
    %s119 = sphi 0, %s119
    %s121 = sphi 0, %s119
    %s122 = sphi 0, %s121
    %s136 = sphi 0, %s122
    %s140 = sphi 0, %s140
    %s142 = sphi 0, %s140
    %s143 = sphi 0, %s142
    %s157 = sphi 0, %s143
    %s163 = sphi 0, %s165
    %s166 = sphi 0, %s163
    %s167 = sphi 0, %s166
    %s183 = sphi 0, %s167
  $region4: #{tpu_custom_call.1} parent=0 // loop_header_branch
    %15 = sbr.rel (%p13) target = $region8
  $region5: #{tpu_custom_call.1} parent=0 // loop_body
    %s17 = ssub.s32 %s12, 1
    %s18 = ssub.s32 %s12, 2
    %s19 = sadd.s32 %s12, 1
    %s20 = ssub.s32 %s12, %s19
    %p21 = scmp.eq.s32.totalorder %s20, 0
    %s23 = sadd.s32 %s22, 1
    %s24 = scalar_select %p21, %s22, %s23
    %p27 = pneg %p21
    %p28 = scmp.eq.s32.totalorder %s12, 3
    %p29 = por %p27, %p28
    %p30 = scmp.ne.s32.totalorder %s22, %s25
    %p31 = scmp.eq.s32.totalorder %s12, 0
    %p32 = por %p30, %p31
    %p33 = scmp.ne.s32.totalorder %s22, %s25
    %p34 = scmp.eq.s32.totalorder %s17, 3
    %p35 = por %p33, %p34
    %p36 = scmp.ne.s32.totalorder %s25, %s26
    %p37 = scmp.eq.s32.totalorder %s17, 0
    %p38 = por %p36, %p37
    %p39 = scmp.ne.s32.totalorder %s25, %s26
    %p40 = scmp.eq.s32.totalorder %s18, 3
    %p41 = por %p39, %p40
    %p43 = scmp.ne.s32.totalorder %s26, %s42
    %p44 = scmp.eq.s32.totalorder %s18, 0
    %p45 = por %p43, %p44
    %s46 = ssub.s32 %s12, %s19
    %p47 = scmp.eq.s32.totalorder %s46, 0
    %s49 = sadd.s32 %s48, 1
    %s50 = scalar_select %p47, %s48, %s49
    %p53 = pneg %p47
    %p54 = scmp.eq.s32.totalorder %s12, 3
    %p55 = por %p53, %p54
    %p56 = scmp.ne.s32.totalorder %s48, %s51
    %p57 = scmp.eq.s32.totalorder %s12, 0
    %p58 = por %p56, %p57
    %p59 = scmp.ne.s32.totalorder %s48, %s51
    %p60 = scmp.eq.s32.totalorder %s17, 3
    %p61 = por %p59, %p60
    %p62 = scmp.ne.s32.totalorder %s51, %s52
    %p63 = scmp.eq.s32.totalorder %s17, 0
    %p64 = por %p62, %p63
    %p65 = scmp.ne.s32.totalorder %s51, %s52
    %p66 = scmp.eq.s32.totalorder %s18, 3
    %p67 = por %p65, %p66
    %p69 = scmp.ne.s32.totalorder %s52, %s68
    %p70 = scmp.eq.s32.totalorder %s18, 0
    %p71 = por %p69, %p70
    %s72 = ssub.s32 %s12, %s19
    %p73 = scmp.eq.s32.totalorder %s72, 0
    %s75 = sadd.s32 %s74, 1
    %s76 = scalar_select %p73, %s74, %s75
    %p79 = pneg %p73
    %p80 = scmp.eq.s32.totalorder %s12, 3
    %p81 = por %p79, %p80
    %p82 = scmp.ne.s32.totalorder %s74, %s77
    %p83 = scmp.eq.s32.totalorder %s12, 0
    %p84 = por %p82, %p83
    %p85 = scmp.ne.s32.totalorder %s74, %s77
    %p86 = scmp.eq.s32.totalorder %s17, 3
    %p87 = por %p85, %p86
    %p88 = scmp.ne.s32.totalorder %s77, %s78
    %p89 = scmp.eq.s32.totalorder %s17, 0
    %p90 = por %p88, %p89
    %p91 = scmp.ne.s32.totalorder %s77, %s78
    %p92 = scmp.eq.s32.totalorder %s18, 3
    %p93 = por %p91, %p92
    %p95 = scmp.ne.s32.totalorder %s78, %s94
    %p96 = scmp.eq.s32.totalorder %s18, 0
    %p97 = por %p95, %p96
    %s99 = sadd.s32 %s98, 1
    %p102 = scmp.eq.s32.totalorder %s12, 3
    %p103 = scmp.ne.s32.totalorder %s98, %s100
    %p104 = scmp.eq.s32.totalorder %s12, 0
    %p105 = por %p103, %p104
    %p106 = scmp.ne.s32.totalorder %s98, %s100
    %p107 = scmp.eq.s32.totalorder %s17, 3
    %p108 = por %p106, %p107
    %p109 = scmp.ne.s32.totalorder %s100, %s101
    %p110 = scmp.eq.s32.totalorder %s17, 0
    %p111 = por %p109, %p110
    %p112 = scmp.ne.s32.totalorder %s100, %s101
    %p113 = scmp.eq.s32.totalorder %s18, 3
    %p114 = por %p112, %p113
    %p116 = scmp.ne.s32.totalorder %s101, %s115
    %p117 = scmp.eq.s32.totalorder %s18, 0
    %p118 = por %p116, %p117
    %s120 = sadd.s32 %s119, 1
    %p123 = scmp.eq.s32.totalorder %s12, 3
    %p124 = scmp.ne.s32.totalorder %s119, %s121
    %p125 = scmp.eq.s32.totalorder %s12, 0
    %p126 = por %p124, %p125
    %p127 = scmp.ne.s32.totalorder %s119, %s121
    %p128 = scmp.eq.s32.totalorder %s17, 3
    %p129 = por %p127, %p128
    %p130 = scmp.ne.s32.totalorder %s121, %s122
    %p131 = scmp.eq.s32.totalorder %s17, 0
    %p132 = por %p130, %p131
    %p133 = scmp.ne.s32.totalorder %s121, %s122
    %p134 = scmp.eq.s32.totalorder %s18, 3
    %p135 = por %p133, %p134
    %p137 = scmp.ne.s32.totalorder %s122, %s136
    %p138 = scmp.eq.s32.totalorder %s18, 0
    %p139 = por %p137, %p138
    %s141 = sadd.s32 %s140, 1
    %p144 = scmp.eq.s32.totalorder %s12, 3
    %p145 = scmp.ne.s32.totalorder %s140, %s142
    %p146 = scmp.eq.s32.totalorder %s12, 0
    %p147 = por %p145, %p146
    %p148 = scmp.ne.s32.totalorder %s140, %s142
    %p149 = scmp.eq.s32.totalorder %s17, 3
    %p150 = por %p148, %p149
    %p151 = scmp.ne.s32.totalorder %s142, %s143
    %p152 = scmp.eq.s32.totalorder %s17, 0
    %p153 = por %p151, %p152
    %p154 = scmp.ne.s32.totalorder %s142, %s143
    %p155 = scmp.eq.s32.totalorder %s18, 3
    %p156 = por %p154, %p155
    %p158 = scmp.ne.s32.totalorder %s143, %s157
    %p159 = scmp.eq.s32.totalorder %s18, 0
    %p160 = por %p158, %p159
    %s161 = ssub.s32 %s12, %s19
    %p162 = scmp.eq.s32.totalorder %s161, 0
    %s164 = sadd.s32 %s163, 1
    %s165 = scalar_select %p162, %s163, %s164
    %p168 = pneg %p162
    %p169 = scmp.eq.s32.totalorder %s12, 3
    %p170 = por %p168, %p169
    %p171 = scmp.ne.s32.totalorder %s163, %s166
    %p172 = scmp.eq.s32.totalorder %s12, 0
    %p173 = por %p171, %p172
    %p174 = scmp.ne.s32.totalorder %s163, %s166
    %p175 = scmp.eq.s32.totalorder %s17, 3
    %p176 = por %p174, %p175
    %p177 = scmp.ne.s32.totalorder %s166, %s167
    %p178 = scmp.eq.s32.totalorder %s17, 0
    %p179 = por %p177, %p178
    %p180 = scmp.ne.s32.totalorder %s166, %s167
    %p181 = scmp.eq.s32.totalorder %s18, 3
    %p182 = por %p180, %p181
    %p184 = scmp.ne.s32.totalorder %s167, %s183
    %p185 = scmp.eq.s32.totalorder %s18, 0
    %p186 = por %p184, %p185
    %p187 = scmp.le.s32.totalorder 1, %s12
    %p188 = scmp.lt.s32.totalorder %s12, 5
    %p189 = pnand %p187, %p188
    %p190 = pneg %p189
    // Predicated region
    $region9: #{tpu_custom_call.1} parent=5 // pred_check
      _
    $region10: #{tpu_custom_call.1} parent=5 // pred_check_branch
      %192 = sbr.rel (%p189) target = $region12
    $region11: #{tpu_custom_call.1} parent=5 // pred_region
      %s193 = ssub.s32 %s12, 1
      // Predicated region
      $region13: #{tpu_custom_call.1} parent=11 // pred_check
        %p194 = pneg %p111
      $region14: #{tpu_custom_call.1} parent=11 // pred_check_branch
        %196 = sbr.rel (%p194) target = $region16
      $region15: #{tpu_custom_call.1} parent=11 // pred_region
        _
      $region16: #{tpu_custom_call.1} parent=11 // pred_fallthru
        _
      // Predicated region
      $region17: #{tpu_custom_call.1} parent=11 // pred_check
        %p197 = pneg %p132
      $region18: #{tpu_custom_call.1} parent=11 // pred_check_branch
        %199 = sbr.rel (%p197) target = $region20
      $region19: #{tpu_custom_call.1} parent=11 // pred_region
        _
      $region20: #{tpu_custom_call.1} parent=11 // pred_fallthru
        _
      // Predicated region
      $region21: #{tpu_custom_call.1} parent=11 // pred_check
        %p200 = pneg %p153
      $region22: #{tpu_custom_call.1} parent=11 // pred_check_branch
        %202 = sbr.rel (%p200) target = $region24
      $region23: #{tpu_custom_call.1} parent=11 // pred_region
        _
      $region24: #{tpu_custom_call.1} parent=11 // pred_fallthru
        _
    $region12: #{tpu_custom_call.1} parent=5 // pred_fallthru
      _
    %p203 = scmp.lt.s32.totalorder %s12, 4
    // Predicated region
    $region25: #{tpu_custom_call.1} parent=5 // pred_check
      %p204 = pneg %p203
    $region26: #{tpu_custom_call.1} parent=5 // pred_check_branch
      %206 = sbr.rel (%p204) target = $region28
    $region27: #{tpu_custom_call.1} parent=5 // pred_region
      // Predicated region
      $region29: #{tpu_custom_call.1} parent=27 // pred_check
        %p207 = pneg %p32
      $region30: #{tpu_custom_call.1} parent=27 // pred_check_branch
        %209 = sbr.rel (%p207) target = $region32
      $region31: #{tpu_custom_call.1} parent=27 // pred_region
        %s210 = smul.u32 32, %s12
        %p211 = scmp.lt.s32.totalorder %s210, 127
        %s212 = scalar_select %p211, %s210, 127
        %s213 = smul.addr %s212, 8
        %s214 = scalar_lea.vmem %s0, %s213
        %s215 = smul.u32 32, %s12
      $region32: #{tpu_custom_call.1} parent=27 // pred_fallthru
        _
      // Predicated region
      $region33: #{tpu_custom_call.1} parent=27 // pred_check
        %p216 = pneg %p58
      $region34: #{tpu_custom_call.1} parent=27 // pred_check_branch
        %218 = sbr.rel (%p216) target = $region36
      $region35: #{tpu_custom_call.1} parent=27 // pred_region
        %s219 = smul.u32 32, %s12
        %p220 = scmp.lt.s32.totalorder %s219, 127
        %s221 = scalar_select %p220, %s219, 127
        %s222 = smul.addr %s221, 8
        %s223 = scalar_lea.vmem %s1, %s222
        %s224 = smul.u32 32, %s12
      $region36: #{tpu_custom_call.1} parent=27 // pred_fallthru
        _
      // Predicated region
      $region37: #{tpu_custom_call.1} parent=27 // pred_check
        %p225 = pneg %p84
      $region38: #{tpu_custom_call.1} parent=27 // pred_check_branch
        %227 = sbr.rel (%p225) target = $region40
      $region39: #{tpu_custom_call.1} parent=27 // pred_region
        %s228 = smul.u32 32, %s12
        %p229 = scmp.lt.s32.totalorder %s228, 127
        %s230 = scalar_select %p229, %s228, 127
        %s231 = smul.addr %s230, 8
        %s232 = scalar_lea.vmem %s2, %s231
        %s233 = smul.u32 32, %s12
      $region40: #{tpu_custom_call.1} parent=27 // pred_fallthru
        _
    $region28: #{tpu_custom_call.1} parent=5 // pred_fallthru
      _
    %p234 = scmp.le.s32.totalorder 1, %s12
    %p235 = scmp.lt.s32.totalorder %s12, 5
    %p236 = pnand %p234, %p235
    %p237 = pneg %p236
    // Predicated region
    $region41: #{tpu_custom_call.1} parent=5 // pred_check
      _
    $region42: #{tpu_custom_call.1} parent=5 // pred_check_branch
      %239 = sbr.rel (%p236) target = $region44
    $region43: #{tpu_custom_call.1} parent=5 // pred_region
      %s240 = ssub.s32 %s12, 1
      %s241 = smul.u32 32, %s17
      %p242 = scmp.lt.s32.totalorder %s241, 127
      %s243 = scalar_select %p242, %s241, 127
      %s244 = smul.addr %s243, 8
      %s245 = scalar_lea.vmem %s0, %s244
      %p246 = pneg %p38
      %p247 = pneg %p35
      %s248 = smul.u32 32, %s17
      %p249 = scmp.lt.s32.totalorder %s248, 127
      %s250 = scalar_select %p249, %s248, 127
      %s251 = smul.addr %s250, 8
      %s252 = scalar_lea.vmem %s1, %s251
      %p253 = pneg %p64
      %p254 = pneg %p61
      %s255 = smul.u32 32, %s17
      %p256 = scmp.lt.s32.totalorder %s255, 127
      %s257 = scalar_select %p256, %s255, 127
      %s258 = smul.addr %s257, 8
      %s259 = scalar_lea.vmem %s2, %s258
      %p260 = pneg %p90
      %p261 = pneg %p87
      %p262 = pneg %p111
      %p263 = pneg %p108
      %p264 = pneg %p132
      %p265 = pneg %p129
      %p266 = pneg %p153
      %p267 = pneg %p150
      %p268 = pneg %p179
      %p269 = pneg %p176
      %s270 = smul.u32 32, %s17
      %p271 = scmp.lt.s32.totalorder %s270, 127
      %s272 = scalar_select %p271, %s270, 127
      %s273 = smul.addr %s272, 8
      %s274 = scalar_lea.vmem %s6, %s273
      %s275 = smul.u32 32, %s17
      %p276 = scmp.lt.s32.totalorder %s275, 127
      %s277 = scalar_select %p276, %s275, 127
      %s278 = smul.addr %s277, 8
      %s279 = scalar_lea.vmem %s0, %s278
      %s280 = smul.u32 32, %s17
      %s281 = smul.u32 32, %s17
      %p282 = scmp.lt.s32.totalorder %s281, 127
      %s283 = scalar_select %p282, %s281, 127
      %s284 = smul.addr %s283, 8
      %s285 = scalar_lea.vmem %s1, %s284
      %s286 = smul.u32 32, %s17
      %s287 = smul.u32 32, %s17
      %p288 = scmp.lt.s32.totalorder %s287, 127
      %s289 = scalar_select %p288, %s287, 127
      %s290 = smul.addr %s289, 8
      %s291 = scalar_lea.vmem %s2, %s290
      %s292 = smul.u32 32, %s17
      %s293 = smul.u32 32, %s17
      %p294 = scmp.lt.s32.totalorder %s293, 127
      %s295 = scalar_select %p294, %s293, 127
      %s296 = smul.addr %s295, 8
      %s297 = scalar_lea.vmem %s6, %s296
      %s298 = smul.u32 32, %s17
      %v299 = vld [vmem:[%s279] sm:$0xff]
      %v300 = vld [vmem:[%s279 + $0x8] sm:$0xff]
      %v301 = vld [vmem:[%s279 + $0x10] sm:$0xff]
      %v302 = vld [vmem:[%s279 + $0x18] sm:$0xff]
      %v303 = vld [vmem:[%s279 + $0x20] sm:$0xff]
      %v304 = vld [vmem:[%s279 + $0x28] sm:$0xff]
      %v305 = vld [vmem:[%s279 + $0x30] sm:$0xff]
      %v306 = vld [vmem:[%s279 + $0x38] sm:$0xff]
      %v307 = vld [vmem:[%s279 + $0x40] sm:$0xff]
      %v308 = vld [vmem:[%s279 + $0x48] sm:$0xff]
      %v309 = vld [vmem:[%s279 + $0x50] sm:$0xff]
      %v310 = vld [vmem:[%s279 + $0x58] sm:$0xff]
      %v311 = vld [vmem:[%s279 + $0x60] sm:$0xff]
      %v312 = vld [vmem:[%s279 + $0x68] sm:$0xff]
      %v313 = vld [vmem:[%s279 + $0x70] sm:$0xff]
      %v314 = vld [vmem:[%s279 + $0x78] sm:$0xff]
      %v315 = vld [vmem:[%s279 + $0x80] sm:$0xff]
      %v316 = vld [vmem:[%s279 + $0x88] sm:$0xff]
      %v317 = vld [vmem:[%s279 + $0x90] sm:$0xff]
      %v318 = vld [vmem:[%s279 + $0x98] sm:$0xff]
      %v319 = vld [vmem:[%s279 + $0xa0] sm:$0xff]
      %v320 = vld [vmem:[%s279 + $0xa8] sm:$0xff]
      %v321 = vld [vmem:[%s279 + $0xb0] sm:$0xff]
      %v322 = vld [vmem:[%s279 + $0xb8] sm:$0xff]
      %v323 = vld [vmem:[%s279 + $0xc0] sm:$0xff]
      %v324 = vld [vmem:[%s279 + $0xc8] sm:$0xff]
      %v325 = vld [vmem:[%s279 + $0xd0] sm:$0xff]
      %v326 = vld [vmem:[%s279 + $0xd8] sm:$0xff]
      %v327 = vld [vmem:[%s279 + $0xe0] sm:$0xff]
      %v328 = vld [vmem:[%s279 + $0xe8] sm:$0xff]
      %v329 = vld [vmem:[%s279 + $0xf0] sm:$0xff]
      %v330 = vld [vmem:[%s279 + $0xf8] sm:$0xff]
      %v331 = vld [vmem:[%s285] sm:$0xff]
      %v332 = vld [vmem:[%s285 + $0x8] sm:$0xff]
      %v333 = vld [vmem:[%s285 + $0x10] sm:$0xff]
      %v334 = vld [vmem:[%s285 + $0x18] sm:$0xff]
      %v335 = vld [vmem:[%s285 + $0x20] sm:$0xff]
      %v336 = vld [vmem:[%s285 + $0x28] sm:$0xff]
      %v337 = vld [vmem:[%s285 + $0x30] sm:$0xff]
      %v338 = vld [vmem:[%s285 + $0x38] sm:$0xff]
      %v339 = vld [vmem:[%s285 + $0x40] sm:$0xff]
      %v340 = vld [vmem:[%s285 + $0x48] sm:$0xff]
      %v341 = vld [vmem:[%s285 + $0x50] sm:$0xff]
      %v342 = vld [vmem:[%s285 + $0x58] sm:$0xff]
      %v343 = vld [vmem:[%s285 + $0x60] sm:$0xff]
      %v344 = vld [vmem:[%s285 + $0x68] sm:$0xff]
      %v345 = vld [vmem:[%s285 + $0x70] sm:$0xff]
      %v346 = vld [vmem:[%s285 + $0x78] sm:$0xff]
      %v347 = vld [vmem:[%s285 + $0x80] sm:$0xff]
      %v348 = vld [vmem:[%s285 + $0x88] sm:$0xff]
      %v349 = vld [vmem:[%s285 + $0x90] sm:$0xff]
      %v350 = vld [vmem:[%s285 + $0x98] sm:$0xff]
      %v351 = vld [vmem:[%s285 + $0xa0] sm:$0xff]
      %v352 = vld [vmem:[%s285 + $0xa8] sm:$0xff]
      %v353 = vld [vmem:[%s285 + $0xb0] sm:$0xff]
      %v354 = vld [vmem:[%s285 + $0xb8] sm:$0xff]
      %v355 = vld [vmem:[%s285 + $0xc0] sm:$0xff]
      %v356 = vld [vmem:[%s285 + $0xc8] sm:$0xff]
      %v357 = vld [vmem:[%s285 + $0xd0] sm:$0xff]
      %v358 = vld [vmem:[%s285 + $0xd8] sm:$0xff]
      %v359 = vld [vmem:[%s285 + $0xe0] sm:$0xff]
      %v360 = vld [vmem:[%s285 + $0xe8] sm:$0xff]
      %v361 = vld [vmem:[%s285 + $0xf0] sm:$0xff]
      %v362 = vld [vmem:[%s285 + $0xf8] sm:$0xff]
      %v363 = vld [vmem:[%s291] sm:$0xff]
      %v364 = vld [vmem:[%s291 + $0x8] sm:$0xff]
      %v365 = vld [vmem:[%s291 + $0x10] sm:$0xff]
      %v366 = vld [vmem:[%s291 + $0x18] sm:$0xff]
      %v367 = vld [vmem:[%s291 + $0x20] sm:$0xff]
      %v368 = vld [vmem:[%s291 + $0x28] sm:$0xff]
      %v369 = vld [vmem:[%s291 + $0x30] sm:$0xff]
      %v370 = vld [vmem:[%s291 + $0x38] sm:$0xff]
      %v371 = vld [vmem:[%s291 + $0x40] sm:$0xff]
      %v372 = vld [vmem:[%s291 + $0x48] sm:$0xff]
      %v373 = vld [vmem:[%s291 + $0x50] sm:$0xff]
      %v374 = vld [vmem:[%s291 + $0x58] sm:$0xff]
      %v375 = vld [vmem:[%s291 + $0x60] sm:$0xff]
      %v376 = vld [vmem:[%s291 + $0x68] sm:$0xff]
      %v377 = vld [vmem:[%s291 + $0x70] sm:$0xff]
      %v378 = vld [vmem:[%s291 + $0x78] sm:$0xff]
      %v379 = vld [vmem:[%s291 + $0x80] sm:$0xff]
      %v380 = vld [vmem:[%s291 + $0x88] sm:$0xff]
      %v381 = vld [vmem:[%s291 + $0x90] sm:$0xff]
      %v382 = vld [vmem:[%s291 + $0x98] sm:$0xff]
      %v383 = vld [vmem:[%s291 + $0xa0] sm:$0xff]
      %v384 = vld [vmem:[%s291 + $0xa8] sm:$0xff]
      %v385 = vld [vmem:[%s291 + $0xb0] sm:$0xff]
      %v386 = vld [vmem:[%s291 + $0xb8] sm:$0xff]
      %v387 = vld [vmem:[%s291 + $0xc0] sm:$0xff]
      %v388 = vld [vmem:[%s291 + $0xc8] sm:$0xff]
      %v389 = vld [vmem:[%s291 + $0xd0] sm:$0xff]
      %v390 = vld [vmem:[%s291 + $0xd8] sm:$0xff]
      %v391 = vld [vmem:[%s291 + $0xe0] sm:$0xff]
      %v392 = vld [vmem:[%s291 + $0xe8] sm:$0xff]
      %v393 = vld [vmem:[%s291 + $0xf0] sm:$0xff]
      %v394 = vld [vmem:[%s291 + $0xf8] sm:$0xff]
      %v395 = vld [vmem:[%s4] sm:$0xff]
      %v396 = vld [vmem:[%s4 + $0x8] sm:$0x1f]
      %v397 = vld [vmem:[%s3] sm:$0x3]
      %399 = vset.pattern.permute.xlu0 0
      %400 = vperm.xlu0 %399, %v331
      %v401 = vpop.permute.xlu0 %400
      %404 = vset.pattern.permute.xlu0 0
      %405 = vperm.xlu0 %404, %v332
      %v406 = vpop.permute.xlu0 %405
      %409 = vset.pattern.permute.xlu0 0
      %410 = vperm.xlu0 %409, %v333
      %v411 = vpop.permute.xlu0 %410
      %414 = vset.pattern.permute.xlu0 0
      %415 = vperm.xlu0 %414, %v334
      %v416 = vpop.permute.xlu0 %415
      %419 = vset.pattern.permute.xlu0 0
      %420 = vperm.xlu0 %419, %v335
      %v421 = vpop.permute.xlu0 %420
      %424 = vset.pattern.permute.xlu0 0
      %425 = vperm.xlu0 %424, %v336
      %v426 = vpop.permute.xlu0 %425
      %429 = vset.pattern.permute.xlu0 0
      %430 = vperm.xlu0 %429, %v337
      %v431 = vpop.permute.xlu0 %430
      %434 = vset.pattern.permute.xlu0 0
      %435 = vperm.xlu0 %434, %v338
      %v436 = vpop.permute.xlu0 %435
      %439 = vset.pattern.permute.xlu0 0
      %440 = vperm.xlu0 %439, %v339
      %v441 = vpop.permute.xlu0 %440
      %444 = vset.pattern.permute.xlu0 0
      %445 = vperm.xlu0 %444, %v340
      %v446 = vpop.permute.xlu0 %445
      %449 = vset.pattern.permute.xlu0 0
      %450 = vperm.xlu0 %449, %v341
      %v451 = vpop.permute.xlu0 %450
      %454 = vset.pattern.permute.xlu0 0
      %455 = vperm.xlu0 %454, %v342
      %v456 = vpop.permute.xlu0 %455
      %459 = vset.pattern.permute.xlu0 0
      %460 = vperm.xlu0 %459, %v343
      %v461 = vpop.permute.xlu0 %460
      %464 = vset.pattern.permute.xlu0 0
      %465 = vperm.xlu0 %464, %v344
      %v466 = vpop.permute.xlu0 %465
      %469 = vset.pattern.permute.xlu0 0
      %470 = vperm.xlu0 %469, %v345
      %v471 = vpop.permute.xlu0 %470
      %474 = vset.pattern.permute.xlu0 0
      %475 = vperm.xlu0 %474, %v346
      %v476 = vpop.permute.xlu0 %475
      %479 = vset.pattern.permute.xlu0 0
      %480 = vperm.xlu0 %479, %v347
      %v481 = vpop.permute.xlu0 %480
      %484 = vset.pattern.permute.xlu0 0
      %485 = vperm.xlu0 %484, %v348
      %v486 = vpop.permute.xlu0 %485
      %489 = vset.pattern.permute.xlu0 0
      %490 = vperm.xlu0 %489, %v349
      %v491 = vpop.permute.xlu0 %490
      %494 = vset.pattern.permute.xlu0 0
      %495 = vperm.xlu0 %494, %v350
      %v496 = vpop.permute.xlu0 %495
      %499 = vset.pattern.permute.xlu0 0
      %500 = vperm.xlu0 %499, %v351
      %v501 = vpop.permute.xlu0 %500
      %504 = vset.pattern.permute.xlu0 0
      %505 = vperm.xlu0 %504, %v352
      %v506 = vpop.permute.xlu0 %505
      %509 = vset.pattern.permute.xlu0 0
      %510 = vperm.xlu0 %509, %v353
      %v511 = vpop.permute.xlu0 %510
      %514 = vset.pattern.permute.xlu0 0
      %515 = vperm.xlu0 %514, %v354
      %v516 = vpop.permute.xlu0 %515
      %519 = vset.pattern.permute.xlu0 0
      %520 = vperm.xlu0 %519, %v355
      %v521 = vpop.permute.xlu0 %520
      %524 = vset.pattern.permute.xlu0 0
      %525 = vperm.xlu0 %524, %v356
      %v526 = vpop.permute.xlu0 %525
      %529 = vset.pattern.permute.xlu0 0
      %530 = vperm.xlu0 %529, %v357
      %v531 = vpop.permute.xlu0 %530
      %534 = vset.pattern.permute.xlu0 0
      %535 = vperm.xlu0 %534, %v358
      %v536 = vpop.permute.xlu0 %535
      %539 = vset.pattern.permute.xlu0 0
      %540 = vperm.xlu0 %539, %v359
      %v541 = vpop.permute.xlu0 %540
      %544 = vset.pattern.permute.xlu0 0
      %545 = vperm.xlu0 %544, %v360
      %v546 = vpop.permute.xlu0 %545
      %549 = vset.pattern.permute.xlu0 0
      %550 = vperm.xlu0 %549, %v361
      %v551 = vpop.permute.xlu0 %550
      %554 = vset.pattern.permute.xlu0 0
      %555 = vperm.xlu0 %554, %v362
      %v556 = vpop.permute.xlu0 %555
      %v558 = vlaneseq
      %v559 = vshrl.u32 %v558, 7
      %v560 = vsub.s32 0, %v559
      %v561 = vrot.slane %v395, %v560
      %v562 = vmul.f32 %v401, %v561
      %v563 = vmul.f32 %v406, %v561
      %v564 = vmul.f32 %v411, %v561
      %v565 = vmul.f32 %v416, %v561
      %v566 = vmul.f32 %v421, %v561
      %v567 = vmul.f32 %v426, %v561
      %v568 = vmul.f32 %v431, %v561
      %v569 = vmul.f32 %v436, %v561
      %v570 = vmul.f32 %v441, %v561
      %v571 = vmul.f32 %v446, %v561
      %v572 = vmul.f32 %v451, %v561
      %v573 = vmul.f32 %v456, %v561
      %v574 = vmul.f32 %v461, %v561
      %v575 = vmul.f32 %v466, %v561
      %v576 = vmul.f32 %v471, %v561
      %v577 = vmul.f32 %v476, %v561
      %v578 = vmul.f32 %v481, %v561
      %v579 = vmul.f32 %v486, %v561
      %v580 = vmul.f32 %v491, %v561
      %v581 = vmul.f32 %v496, %v561
      %v582 = vmul.f32 %v501, %v561
      %v583 = vmul.f32 %v506, %v561
      %v584 = vmul.f32 %v511, %v561
      %v585 = vmul.f32 %v516, %v561
      %v586 = vmul.f32 %v521, %v561
      %v587 = vmul.f32 %v526, %v561
      %v588 = vmul.f32 %v531, %v561
      %v589 = vmul.f32 %v536, %v561
      %v590 = vmul.f32 %v541, %v561
      %v591 = vmul.f32 %v546, %v561
      %v592 = vmul.f32 %v551, %v561
      %v593 = vmul.f32 %v556, %v561
      %vm594 = vcmask 15360
      %v596 = vsel %vm594, %v299, 0
      %v599 = vsel %vm594, %v300, 0
      %v602 = vsel %vm594, %v301, 0
      %v605 = vsel %vm594, %v302, 0
      %v608 = vsel %vm594, %v303, 0
      %v611 = vsel %vm594, %v304, 0
      %v614 = vsel %vm594, %v305, 0
      %v617 = vsel %vm594, %v306, 0
      %v620 = vsel %vm594, %v307, 0
      %v623 = vsel %vm594, %v308, 0
      %v626 = vsel %vm594, %v309, 0
      %v629 = vsel %vm594, %v310, 0
      %v632 = vsel %vm594, %v311, 0
      %v635 = vsel %vm594, %v312, 0
      %v638 = vsel %vm594, %v313, 0
      %v641 = vsel %vm594, %v314, 0
      %v644 = vsel %vm594, %v315, 0
      %v647 = vsel %vm594, %v316, 0
      %v650 = vsel %vm594, %v317, 0
      %v653 = vsel %vm594, %v318, 0
      %v656 = vsel %vm594, %v319, 0
      %v659 = vsel %vm594, %v320, 0
      %v662 = vsel %vm594, %v321, 0
      %v665 = vsel %vm594, %v322, 0
      %v668 = vsel %vm594, %v323, 0
      %v671 = vsel %vm594, %v324, 0
      %v674 = vsel %vm594, %v325, 0
      %v677 = vsel %vm594, %v326, 0
      %v680 = vsel %vm594, %v327, 0
      %v683 = vsel %vm594, %v328, 0
      %v686 = vsel %vm594, %v329, 0
      %v689 = vsel %vm594, %v330, 0
      %vm691 = vcmask 1041408
      %v693 = vsel %vm691, %v397, 0
      %695 = vmatprep.subr.mxu0 0.0
      %696 = vmatpush1.msra.mxu0 %v693
      %697 = vmatprep.subr.mxu0 0.0
      %698 = vmatpush1.msra.mxu0 0.0
      %699 = vmatprep.subr.mxu0 0.0
      %700 = vmatpush1.msra.mxu0 0.0
      %701 = vmatprep.subr.mxu0 0.0
      %702 = vmatpush1.msra.mxu0 0.0
      %703 = vmatprep.subr.mxu0 0.0
      %704 = vmatpush1.msra.mxu0 0.0
      %705 = vmatprep.subr.mxu0 0.0
      %706 = vmatpush1.msra.mxu0 0.0
      %707 = vmatprep.subr.mxu0 0.0
      %708 = vmatpush1.msra.mxu0 0.0
      %709 = vmatprep.subr.mxu0 0.0
      %710 = vmatpush1.msra.mxu0 0.0
      %711 = vmatprep.subr.mxu0 0.0
      %712 = vmatpush1.msra.mxu0 0.0
      %713 = vmatprep.subr.mxu0 0.0
      %714 = vmatpush1.msra.mxu0 0.0
      %715 = vmatprep.subr.mxu0 0.0
      %716 = vmatpush1.msra.mxu0 0.0
      %717 = vmatprep.subr.mxu0 0.0
      %718 = vmatpush1.msra.mxu0 0.0
      %719 = vmatprep.subr.mxu0 0.0
      %720 = vmatpush1.msra.mxu0 0.0
      %721 = vmatprep.subr.mxu0 0.0
      %722 = vmatpush1.msra.mxu0 0.0
      %723 = vmatprep.subr.mxu0 0.0
      %724 = vmatpush1.msra.mxu0 0.0
      %725 = vmatprep.subr.mxu0 0.0
      %726 = vmatpush1.msra.mxu0 0.0
      %727 = vmatprep.subr.mxu0 0.0
      %728 = vmatpush1.msra.mxu0 0.0
      %729 = vmatprep.subr.mxu0 0.0
      %730 = vmatpush1.msra.mxu0 0.0
      %731 = vmatprep.subr.mxu0 0.0
      %732 = vmatpush1.msra.mxu0 0.0
      %733 = vmatprep.subr.mxu0 0.0
      %734 = vmatpush1.msra.mxu0 0.0
      %735 = vmatprep.subr.mxu0 0.0
      %736 = vmatpush1.msra.mxu0 0.0
      %737 = vmatprep.subr.mxu0 0.0
      %738 = vmatpush1.msra.mxu0 0.0
      %739 = vmatprep.subr.mxu0 0.0
      %740 = vmatpush1.msra.mxu0 0.0
      %741 = vmatprep.subr.mxu0 0.0
      %742 = vmatpush1.msra.mxu0 0.0
      %743 = vmatprep.subr.mxu0 0.0
      %744 = vmatpush1.msra.mxu0 0.0
      %745 = vmatprep.subr.mxu0 0.0
      %746 = vmatpush1.msra.mxu0 0.0
      %747 = vmatprep.subr.mxu0 0.0
      %748 = vmatpush1.msra.mxu0 0.0
      %749 = vmatprep.subr.mxu0 0.0
      %750 = vmatpush1.msra.mxu0 0.0
      %751 = vmatprep.subr.mxu0 0.0
      %752 = vmatpush1.msra.mxu0 0.0
      %753 = vmatprep.subr.mxu0 0.0
      %754 = vmatpush1.msra.mxu0 0.0
      %755 = vmatprep.subr.mxu0 0.0
      %756 = vmatpush1.msra.mxu0 0.0
      %757 = vmatprep.subr.mxu0 0.0
      %758 = vmatpush1.msra.mxu0 0.0
      %759 = vmatprep.mubr.f32.mxu0 0.0
      %760 = vmatmul.mubr.f32.gmra.mrb[0].mxu0 %v596
      %v761 = vpop.f32.mrb[0].mxu0
      %v762 = vadd.f32 %v562, %v761
      %v763 = vpop.f32.mrb[0].mxu0
      %764 = vmatprep.mubr.f32.mxu0 0.0
      %765 = vmatmul.mubr.f32.gmra.mrb[0].mxu0 %v599
      %v766 = vpop.f32.mrb[0].mxu0
      %v767 = vadd.f32 %v563, %v766
      %v768 = vpop.f32.mrb[0].mxu0
      %769 = vmatprep.mubr.f32.mxu0 0.0
      %770 = vmatmul.mubr.f32.gmra.mrb[0].mxu0 %v602
      %v771 = vpop.f32.mrb[0].mxu0
      %v772 = vadd.f32 %v564, %v771
      %v773 = vpop.f32.mrb[0].mxu0
      %774 = vmatprep.mubr.f32.mxu0 0.0
      %775 = vmatmul.mubr.f32.gmra.mrb[0].mxu0 %v605
      %v776 = vpop.f32.mrb[0].mxu0
      %v777 = vadd.f32 %v565, %v776
      %v778 = vpop.f32.mrb[0].mxu0
      %779 = vmatprep.mubr.f32.mxu0 0.0
      %780 = vmatmul.mubr.f32.gmra.mrb[0].mxu0 %v608
      %v781 = vpop.f32.mrb[0].mxu0
      %v782 = vadd.f32 %v566, %v781
      %v783 = vpop.f32.mrb[0].mxu0
      %784 = vmatprep.mubr.f32.mxu0 0.0
      %785 = vmatmul.mubr.f32.gmra.mrb[0].mxu0 %v611
      %v786 = vpop.f32.mrb[0].mxu0
      %v787 = vadd.f32 %v567, %v786
      %v788 = vpop.f32.mrb[0].mxu0
      %789 = vmatprep.mubr.f32.mxu0 0.0
      %790 = vmatmul.mubr.f32.gmra.mrb[0].mxu0 %v614
      %v791 = vpop.f32.mrb[0].mxu0
      %v792 = vadd.f32 %v568, %v791
      %v793 = vpop.f32.mrb[0].mxu0
      %794 = vmatprep.mubr.f32.mxu0 0.0
      %795 = vmatmul.mubr.f32.gmra.mrb[0].mxu0 %v617
      %v796 = vpop.f32.mrb[0].mxu0
      %v797 = vadd.f32 %v569, %v796
      %v798 = vpop.f32.mrb[0].mxu0
      %799 = vmatprep.mubr.f32.mxu0 0.0
      %800 = vmatmul.mubr.f32.gmra.mrb[0].mxu0 %v620
      %v801 = vpop.f32.mrb[0].mxu0
      %v802 = vadd.f32 %v570, %v801
      %v803 = vpop.f32.mrb[0].mxu0
      %804 = vmatprep.mubr.f32.mxu0 0.0
      %805 = vmatmul.mubr.f32.gmra.mrb[0].mxu0 %v623
      %v806 = vpop.f32.mrb[0].mxu0
      %v807 = vadd.f32 %v571, %v806
      %v808 = vpop.f32.mrb[0].mxu0
      %809 = vmatprep.mubr.f32.mxu0 0.0
      %810 = vmatmul.mubr.f32.gmra.mrb[0].mxu0 %v626
      %v811 = vpop.f32.mrb[0].mxu0
      %v812 = vadd.f32 %v572, %v811
      %v813 = vpop.f32.mrb[0].mxu0
      %814 = vmatprep.mubr.f32.mxu0 0.0
      %815 = vmatmul.mubr.f32.gmra.mrb[0].mxu0 %v629
      %v816 = vpop.f32.mrb[0].mxu0
      %v817 = vadd.f32 %v573, %v816
      %v818 = vpop.f32.mrb[0].mxu0
      %819 = vmatprep.mubr.f32.mxu0 0.0
      %820 = vmatmul.mubr.f32.gmra.mrb[0].mxu0 %v632
      %v821 = vpop.f32.mrb[0].mxu0
      %v822 = vadd.f32 %v574, %v821
      %v823 = vpop.f32.mrb[0].mxu0
      %824 = vmatprep.mubr.f32.mxu0 0.0
      %825 = vmatmul.mubr.f32.gmra.mrb[0].mxu0 %v635
      %v826 = vpop.f32.mrb[0].mxu0
      %v827 = vadd.f32 %v575, %v826
      %v828 = vpop.f32.mrb[0].mxu0
      %829 = vmatprep.mubr.f32.mxu0 0.0
      %830 = vmatmul.mubr.f32.gmra.mrb[0].mxu0 %v638
      %v831 = vpop.f32.mrb[0].mxu0
      %v832 = vadd.f32 %v576, %v831
      %v833 = vpop.f32.mrb[0].mxu0
      %834 = vmatprep.mubr.f32.mxu0 0.0
      %835 = vmatmul.mubr.f32.gmra.mrb[0].mxu0 %v641
      %v836 = vpop.f32.mrb[0].mxu0
      %v837 = vadd.f32 %v577, %v836
      %v838 = vpop.f32.mrb[0].mxu0
      %839 = vmatprep.mubr.f32.mxu0 0.0
      %840 = vmatmul.mubr.f32.gmra.mrb[0].mxu0 %v644
      %v841 = vpop.f32.mrb[0].mxu0
      %v842 = vadd.f32 %v578, %v841
      %v843 = vpop.f32.mrb[0].mxu0
      %844 = vmatprep.mubr.f32.mxu0 0.0
      %845 = vmatmul.mubr.f32.gmra.mrb[0].mxu0 %v647
      %v846 = vpop.f32.mrb[0].mxu0
      %v847 = vadd.f32 %v579, %v846
      %v848 = vpop.f32.mrb[0].mxu0
      %849 = vmatprep.mubr.f32.mxu0 0.0
      %850 = vmatmul.mubr.f32.gmra.mrb[0].mxu0 %v650
      %v851 = vpop.f32.mrb[0].mxu0
      %v852 = vadd.f32 %v580, %v851
      %v853 = vpop.f32.mrb[0].mxu0
      %854 = vmatprep.mubr.f32.mxu0 0.0
      %855 = vmatmul.mubr.f32.gmra.mrb[0].mxu0 %v653
      %v856 = vpop.f32.mrb[0].mxu0
      %v857 = vadd.f32 %v581, %v856
      %v858 = vpop.f32.mrb[0].mxu0
      %859 = vmatprep.mubr.f32.mxu0 0.0
      %860 = vmatmul.mubr.f32.gmra.mrb[0].mxu0 %v656
      %v861 = vpop.f32.mrb[0].mxu0
      %v862 = vadd.f32 %v582, %v861
      %v863 = vpop.f32.mrb[0].mxu0
      %864 = vmatprep.mubr.f32.mxu0 0.0
      %865 = vmatmul.mubr.f32.gmra.mrb[0].mxu0 %v659
      %v866 = vpop.f32.mrb[0].mxu0
      %v867 = vadd.f32 %v583, %v866
      %v868 = vpop.f32.mrb[0].mxu0
      %869 = vmatprep.mubr.f32.mxu0 0.0
      %870 = vmatmul.mubr.f32.gmra.mrb[0].mxu0 %v662
      %v871 = vpop.f32.mrb[0].mxu0
      %v872 = vadd.f32 %v584, %v871
      %v873 = vpop.f32.mrb[0].mxu0
      %874 = vmatprep.mubr.f32.mxu0 0.0
      %875 = vmatmul.mubr.f32.gmra.mrb[0].mxu0 %v665
      %v876 = vpop.f32.mrb[0].mxu0
      %v877 = vadd.f32 %v585, %v876
      %v878 = vpop.f32.mrb[0].mxu0
      %879 = vmatprep.mubr.f32.mxu0 0.0
      %880 = vmatmul.mubr.f32.gmra.mrb[0].mxu0 %v668
      %v881 = vpop.f32.mrb[0].mxu0
      %v882 = vadd.f32 %v586, %v881
      %v883 = vpop.f32.mrb[0].mxu0
      %884 = vmatprep.mubr.f32.mxu0 0.0
      %885 = vmatmul.mubr.f32.gmra.mrb[0].mxu0 %v671
      %v886 = vpop.f32.mrb[0].mxu0
      %v887 = vadd.f32 %v587, %v886
      %v888 = vpop.f32.mrb[0].mxu0
      %889 = vmatprep.mubr.f32.mxu0 0.0
      %890 = vmatmul.mubr.f32.gmra.mrb[0].mxu0 %v674
      %v891 = vpop.f32.mrb[0].mxu0
      %v892 = vadd.f32 %v588, %v891
      %v893 = vpop.f32.mrb[0].mxu0
      %894 = vmatprep.mubr.f32.mxu0 0.0
      %895 = vmatmul.mubr.f32.gmra.mrb[0].mxu0 %v677
      %v896 = vpop.f32.mrb[0].mxu0
      %v897 = vadd.f32 %v589, %v896
      %v898 = vpop.f32.mrb[0].mxu0
      %899 = vmatprep.mubr.f32.mxu0 0.0
      %900 = vmatmul.mubr.f32.gmra.mrb[0].mxu0 %v680
      %v901 = vpop.f32.mrb[0].mxu0
      %v902 = vadd.f32 %v590, %v901
      %v903 = vpop.f32.mrb[0].mxu0
      %904 = vmatprep.mubr.f32.mxu0 0.0
      %905 = vmatmul.mubr.f32.gmra.mrb[0].mxu0 %v683
      %v906 = vpop.f32.mrb[0].mxu0
      %v907 = vadd.f32 %v591, %v906
      %v908 = vpop.f32.mrb[0].mxu0
      %909 = vmatprep.mubr.f32.mxu0 0.0
      %910 = vmatmul.mubr.f32.gmra.mrb[0].mxu0 %v686
      %v911 = vpop.f32.mrb[0].mxu0
      %v912 = vadd.f32 %v592, %v911
      %v913 = vpop.f32.mrb[0].mxu0
      %914 = vmatprep.mubr.f32.mxu0 0.0
      %915 = vmatmul.mubr.f32.gmra.mrb[0].mxu0 %v689
      %v916 = vpop.f32.mrb[0].mxu0
      %v917 = vadd.f32 %v593, %v916
      %v918 = vpop.f32.mrb[0].mxu0
      %919 = vdwg.mxu0
      %v920 = vlaneseq
      %v921 = vshrl.u32 %v920, 7
      %v922 = vsub.s32 1, %v921
      %v923 = vrot.slane %v395, %v922
      %v924 = vadd.f32 %v762, %v923
      %v925 = vadd.f32 %v767, %v923
      %v926 = vadd.f32 %v772, %v923
      %v927 = vadd.f32 %v777, %v923
      %v928 = vadd.f32 %v782, %v923
      %v929 = vadd.f32 %v787, %v923
      %v930 = vadd.f32 %v792, %v923
      %v931 = vadd.f32 %v797, %v923
      %v932 = vadd.f32 %v802, %v923
      %v933 = vadd.f32 %v807, %v923
      %v934 = vadd.f32 %v812, %v923
      %v935 = vadd.f32 %v817, %v923
      %v936 = vadd.f32 %v822, %v923
      %v937 = vadd.f32 %v827, %v923
      %v938 = vadd.f32 %v832, %v923
      %v939 = vadd.f32 %v837, %v923
      %v940 = vadd.f32 %v842, %v923
      %v941 = vadd.f32 %v847, %v923
      %v942 = vadd.f32 %v852, %v923
      %v943 = vadd.f32 %v857, %v923
      %v944 = vadd.f32 %v862, %v923
      %v945 = vadd.f32 %v867, %v923
      %v946 = vadd.f32 %v872, %v923
      %v947 = vadd.f32 %v877, %v923
      %v948 = vadd.f32 %v882, %v923
      %v949 = vadd.f32 %v887, %v923
      %v950 = vadd.f32 %v892, %v923
      %v951 = vadd.f32 %v897, %v923
      %v952 = vadd.f32 %v902, %v923
      %v953 = vadd.f32 %v907, %v923
      %v954 = vadd.f32 %v912, %v923
      %v955 = vadd.f32 %v917, %v923
      %v956 = vld [vmem:[%s3 + $0x18] sm:$0xff]
      %v957 = vld [vmem:[%s3 + $0x20] sm:$0xff]
      %v958 = vld [vmem:[%s3 + $0x28] sm:$0xff]
      %v959 = vld [vmem:[%s3 + $0x30] sm:$0xff]
      %v960 = vlaneseq
      %v961 = vshrl.u32 %v960, 7
      %v962 = vsub.s32 2, %v961
      %v963 = vrot.slane %v395, %v962
      %vm964 = vcmask 261120
      %v966 = vsel %vm964, %v924, 0
      %v969 = vsel %vm964, %v925, 0
      %v972 = vsel %vm964, %v926, 0
      %v975 = vsel %vm964, %v927, 0
      %v978 = vsel %vm964, %v928, 0
      %v981 = vsel %vm964, %v929, 0
      %v984 = vsel %vm964, %v930, 0
      %v987 = vsel %vm964, %v931, 0
      %v990 = vsel %vm964, %v932, 0
      %v993 = vsel %vm964, %v933, 0
      %v996 = vsel %vm964, %v934, 0
      %v999 = vsel %vm964, %v935, 0
      %v1002 = vsel %vm964, %v936, 0
      %v1005 = vsel %vm964, %v937, 0
      %v1008 = vsel %vm964, %v938, 0
      %v1011 = vsel %vm964, %v939, 0
      %v1014 = vsel %vm964, %v940, 0
      %v1017 = vsel %vm964, %v941, 0
      %v1020 = vsel %vm964, %v942, 0
      %v1023 = vsel %vm964, %v943, 0
      %v1026 = vsel %vm964, %v944, 0
      %v1029 = vsel %vm964, %v945, 0
      %v1032 = vsel %vm964, %v946, 0
      %v1035 = vsel %vm964, %v947, 0
      %v1038 = vsel %vm964, %v948, 0
      %v1041 = vsel %vm964, %v949, 0
      %v1044 = vsel %vm964, %v950, 0
      %v1047 = vsel %vm964, %v951, 0
      %v1050 = vsel %vm964, %v952, 0
      %v1053 = vsel %vm964, %v953, 0
      %v1056 = vsel %vm964, %v954, 0
      %v1059 = vsel %vm964, %v955, 0
      %1061 = vmatprep.subr.mxu0 0.0
      %1062 = vmatpush1.msra.mxu0 %v956
      %1063 = vmatprep.subr.mxu0 0.0
      %1064 = vmatpush1.msra.mxu0 %v957
      %1065 = vmatprep.subr.mxu0 0.0
      %1066 = vmatpush1.msra.mxu0 %v958
      %1067 = vmatprep.subr.mxu0 0.0
      %1068 = vmatpush1.msra.mxu0 %v959
      %1069 = vmatprep.subr.mxu0 0.0
      %1070 = vmatpush1.msra.mxu0 0.0
      %1071 = vmatprep.subr.mxu0 0.0
      %1072 = vmatpush1.msra.mxu0 0.0
      %1073 = vmatprep.subr.mxu0 0.0
      %1074 = vmatpush1.msra.mxu0 0.0
      %1075 = vmatprep.subr.mxu0 0.0
      %1076 = vmatpush1.msra.mxu0 0.0
      %1077 = vmatprep.subr.mxu0 0.0
      %1078 = vmatpush1.msra.mxu0 0.0
      %1079 = vmatprep.subr.mxu0 0.0
      %1080 = vmatpush1.msra.mxu0 0.0
      %1081 = vmatprep.subr.mxu0 0.0
      %1082 = vmatpush1.msra.mxu0 0.0
      %1083 = vmatprep.subr.mxu0 0.0
      %1084 = vmatpush1.msra.mxu0 0.0
      %1085 = vmatprep.subr.mxu0 0.0
      %1086 = vmatpush1.msra.mxu0 0.0
      %1087 = vmatprep.subr.mxu0 0.0
      %1088 = vmatpush1.msra.mxu0 0.0
      %1089 = vmatprep.subr.mxu0 0.0
      %1090 = vmatpush1.msra.mxu0 0.0
      %1091 = vmatprep.subr.mxu0 0.0
      %1092 = vmatpush1.msra.mxu0 0.0
      %1093 = vmatprep.subr.mxu0 0.0
      %1094 = vmatpush1.msra.mxu0 0.0
      %1095 = vmatprep.subr.mxu0 0.0
      %1096 = vmatpush1.msra.mxu0 0.0
      %1097 = vmatprep.subr.mxu0 0.0
      %1098 = vmatpush1.msra.mxu0 0.0
      %1099 = vmatprep.subr.mxu0 0.0
      %1100 = vmatpush1.msra.mxu0 0.0
      %1101 = vmatprep.subr.mxu0 0.0
      %1102 = vmatpush1.msra.mxu0 0.0
      %1103 = vmatprep.subr.mxu0 0.0
      %1104 = vmatpush1.msra.mxu0 0.0
      %1105 = vmatprep.subr.mxu0 0.0
      %1106 = vmatpush1.msra.mxu0 0.0
      %1107 = vmatprep.subr.mxu0 0.0
      %1108 = vmatpush1.msra.mxu0 0.0
      %1109 = vmatprep.subr.mxu0 0.0
      %1110 = vmatpush1.msra.mxu0 0.0
      %1111 = vmatprep.subr.mxu0 0.0
      %1112 = vmatpush1.msra.mxu0 0.0
      %1113 = vmatprep.subr.mxu0 0.0
      %1114 = vmatpush1.msra.mxu0 0.0
      %1115 = vmatprep.subr.mxu0 0.0
      %1116 = vmatpush1.msra.mxu0 0.0
      %1117 = vmatprep.subr.mxu0 0.0
      %1118 = vmatpush1.msra.mxu0 0.0
      %1119 = vmatprep.subr.mxu0 0.0
      %1120 = vmatpush1.msra.mxu0 0.0
      %1121 = vmatprep.subr.mxu0 0.0
      %1122 = vmatpush1.msra.mxu0 0.0
      %1123 = vmatprep.subr.mxu0 0.0
      %1124 = vmatpush1.msra.mxu0 0.0
      %1125 = vmatprep.mubr.f32.mxu0 0.0
      %1126 = vmatmul.mubr.f32.gmra.mrb[0].mxu0 %v966
      %v1127 = vpop.f32.mrb[0].mxu0
      %v1128 = vadd.f32 %v963, %v1127
      %v1129 = vpop.f32.mrb[0].mxu0
      %1130 = vmatprep.mubr.f32.mxu0 0.0
      %1131 = vmatmul.mubr.f32.gmra.mrb[0].mxu0 %v969
      %v1132 = vpop.f32.mrb[0].mxu0
      %v1133 = vadd.f32 %v963, %v1132
      %v1134 = vpop.f32.mrb[0].mxu0
      %1135 = vmatprep.mubr.f32.mxu0 0.0
      %1136 = vmatmul.mubr.f32.gmra.mrb[0].mxu0 %v972
      %v1137 = vpop.f32.mrb[0].mxu0
      %v1138 = vadd.f32 %v963, %v1137
      %v1139 = vpop.f32.mrb[0].mxu0
      %1140 = vmatprep.mubr.f32.mxu0 0.0
      %1141 = vmatmul.mubr.f32.gmra.mrb[0].mxu0 %v975
      %v1142 = vpop.f32.mrb[0].mxu0
      %v1143 = vadd.f32 %v963, %v1142
      %v1144 = vpop.f32.mrb[0].mxu0
      %1145 = vmatprep.mubr.f32.mxu0 0.0
      %1146 = vmatmul.mubr.f32.gmra.mrb[0].mxu0 %v978
      %v1147 = vpop.f32.mrb[0].mxu0
      %v1148 = vadd.f32 %v963, %v1147
      %v1149 = vpop.f32.mrb[0].mxu0
      %1150 = vmatprep.mubr.f32.mxu0 0.0
      %1151 = vmatmul.mubr.f32.gmra.mrb[0].mxu0 %v981
      %v1152 = vpop.f32.mrb[0].mxu0
      %v1153 = vadd.f32 %v963, %v1152
      %v1154 = vpop.f32.mrb[0].mxu0
      %1155 = vmatprep.mubr.f32.mxu0 0.0
      %1156 = vmatmul.mubr.f32.gmra.mrb[0].mxu0 %v984
      %v1157 = vpop.f32.mrb[0].mxu0
      %v1158 = vadd.f32 %v963, %v1157
      %v1159 = vpop.f32.mrb[0].mxu0
      %1160 = vmatprep.mubr.f32.mxu0 0.0
      %1161 = vmatmul.mubr.f32.gmra.mrb[0].mxu0 %v987
      %v1162 = vpop.f32.mrb[0].mxu0
      %v1163 = vadd.f32 %v963, %v1162
      %v1164 = vpop.f32.mrb[0].mxu0
      %1165 = vmatprep.mubr.f32.mxu0 0.0
      %1166 = vmatmul.mubr.f32.gmra.mrb[0].mxu0 %v990
      %v1167 = vpop.f32.mrb[0].mxu0
      %v1168 = vadd.f32 %v963, %v1167
      %v1169 = vpop.f32.mrb[0].mxu0
      %1170 = vmatprep.mubr.f32.mxu0 0.0
      %1171 = vmatmul.mubr.f32.gmra.mrb[0].mxu0 %v993
      %v1172 = vpop.f32.mrb[0].mxu0
      %v1173 = vadd.f32 %v963, %v1172
      %v1174 = vpop.f32.mrb[0].mxu0
      %1175 = vmatprep.mubr.f32.mxu0 0.0
      %1176 = vmatmul.mubr.f32.gmra.mrb[0].mxu0 %v996
      %v1177 = vpop.f32.mrb[0].mxu0
      %v1178 = vadd.f32 %v963, %v1177
      %v1179 = vpop.f32.mrb[0].mxu0
      %1180 = vmatprep.mubr.f32.mxu0 0.0
      %1181 = vmatmul.mubr.f32.gmra.mrb[0].mxu0 %v999
      %v1182 = vpop.f32.mrb[0].mxu0
      %v1183 = vadd.f32 %v963, %v1182
      %v1184 = vpop.f32.mrb[0].mxu0
      %1185 = vmatprep.mubr.f32.mxu0 0.0
      %1186 = vmatmul.mubr.f32.gmra.mrb[0].mxu0 %v1002
      %v1187 = vpop.f32.mrb[0].mxu0
      %v1188 = vadd.f32 %v963, %v1187
      %v1189 = vpop.f32.mrb[0].mxu0
      %1190 = vmatprep.mubr.f32.mxu0 0.0
      %1191 = vmatmul.mubr.f32.gmra.mrb[0].mxu0 %v1005
      %v1192 = vpop.f32.mrb[0].mxu0
      %v1193 = vadd.f32 %v963, %v1192
      %v1194 = vpop.f32.mrb[0].mxu0
      %1195 = vmatprep.mubr.f32.mxu0 0.0
      %1196 = vmatmul.mubr.f32.gmra.mrb[0].mxu0 %v1008
      %v1197 = vpop.f32.mrb[0].mxu0
      %v1198 = vadd.f32 %v963, %v1197
      %v1199 = vpop.f32.mrb[0].mxu0
      %1200 = vmatprep.mubr.f32.mxu0 0.0
      %1201 = vmatmul.mubr.f32.gmra.mrb[0].mxu0 %v1011
      %v1202 = vpop.f32.mrb[0].mxu0
      %v1203 = vadd.f32 %v963, %v1202
      %v1204 = vpop.f32.mrb[0].mxu0
      %1205 = vmatprep.mubr.f32.mxu0 0.0
      %1206 = vmatmul.mubr.f32.gmra.mrb[0].mxu0 %v1014
      %v1207 = vpop.f32.mrb[0].mxu0
      %v1208 = vadd.f32 %v963, %v1207
      %v1209 = vpop.f32.mrb[0].mxu0
      %1210 = vmatprep.mubr.f32.mxu0 0.0
      %1211 = vmatmul.mubr.f32.gmra.mrb[0].mxu0 %v1017
      %v1212 = vpop.f32.mrb[0].mxu0
      %v1213 = vadd.f32 %v963, %v1212
      %v1214 = vpop.f32.mrb[0].mxu0
      %1215 = vmatprep.mubr.f32.mxu0 0.0
      %1216 = vmatmul.mubr.f32.gmra.mrb[0].mxu0 %v1020
      %v1217 = vpop.f32.mrb[0].mxu0
      %v1218 = vadd.f32 %v963, %v1217
      %v1219 = vpop.f32.mrb[0].mxu0
      %1220 = vmatprep.mubr.f32.mxu0 0.0
      %1221 = vmatmul.mubr.f32.gmra.mrb[0].mxu0 %v1023
      %v1222 = vpop.f32.mrb[0].mxu0
      %v1223 = vadd.f32 %v963, %v1222
      %v1224 = vpop.f32.mrb[0].mxu0
      %1225 = vmatprep.mubr.f32.mxu0 0.0
      %1226 = vmatmul.mubr.f32.gmra.mrb[0].mxu0 %v1026
      %v1227 = vpop.f32.mrb[0].mxu0
      %v1228 = vadd.f32 %v963, %v1227
      %v1229 = vpop.f32.mrb[0].mxu0
      %1230 = vmatprep.mubr.f32.mxu0 0.0
      %1231 = vmatmul.mubr.f32.gmra.mrb[0].mxu0 %v1029
      %v1232 = vpop.f32.mrb[0].mxu0
      %v1233 = vadd.f32 %v963, %v1232
      %v1234 = vpop.f32.mrb[0].mxu0
      %1235 = vmatprep.mubr.f32.mxu0 0.0
      %1236 = vmatmul.mubr.f32.gmra.mrb[0].mxu0 %v1032
      %v1237 = vpop.f32.mrb[0].mxu0
      %v1238 = vadd.f32 %v963, %v1237
      %v1239 = vpop.f32.mrb[0].mxu0
      %1240 = vmatprep.mubr.f32.mxu0 0.0
      %1241 = vmatmul.mubr.f32.gmra.mrb[0].mxu0 %v1035
      %v1242 = vpop.f32.mrb[0].mxu0
      %v1243 = vadd.f32 %v963, %v1242
      %v1244 = vpop.f32.mrb[0].mxu0
      %1245 = vmatprep.mubr.f32.mxu0 0.0
      %1246 = vmatmul.mubr.f32.gmra.mrb[0].mxu0 %v1038
      %v1247 = vpop.f32.mrb[0].mxu0
      %v1248 = vadd.f32 %v963, %v1247
      %v1249 = vpop.f32.mrb[0].mxu0
      %1250 = vmatprep.mubr.f32.mxu0 0.0
      %1251 = vmatmul.mubr.f32.gmra.mrb[0].mxu0 %v1041
      %v1252 = vpop.f32.mrb[0].mxu0
      %v1253 = vadd.f32 %v963, %v1252
      %v1254 = vpop.f32.mrb[0].mxu0
      %1255 = vmatprep.mubr.f32.mxu0 0.0
      %1256 = vmatmul.mubr.f32.gmra.mrb[0].mxu0 %v1044
      %v1257 = vpop.f32.mrb[0].mxu0
      %v1258 = vadd.f32 %v963, %v1257
      %v1259 = vpop.f32.mrb[0].mxu0
      %1260 = vmatprep.mubr.f32.mxu0 0.0
      %1261 = vmatmul.mubr.f32.gmra.mrb[0].mxu0 %v1047
      %v1262 = vpop.f32.mrb[0].mxu0
      %v1263 = vadd.f32 %v963, %v1262
      %v1264 = vpop.f32.mrb[0].mxu0
      %1265 = vmatprep.mubr.f32.mxu0 0.0
      %1266 = vmatmul.mubr.f32.gmra.mrb[0].mxu0 %v1050
      %v1267 = vpop.f32.mrb[0].mxu0
      %v1268 = vadd.f32 %v963, %v1267
      %v1269 = vpop.f32.mrb[0].mxu0
      %1270 = vmatprep.mubr.f32.mxu0 0.0
      %1271 = vmatmul.mubr.f32.gmra.mrb[0].mxu0 %v1053
      %v1272 = vpop.f32.mrb[0].mxu0
      %v1273 = vadd.f32 %v963, %v1272
      %v1274 = vpop.f32.mrb[0].mxu0
      %1275 = vmatprep.mubr.f32.mxu0 0.0
      %1276 = vmatmul.mubr.f32.gmra.mrb[0].mxu0 %v1056
      %v1277 = vpop.f32.mrb[0].mxu0
      %v1278 = vadd.f32 %v963, %v1277
      %v1279 = vpop.f32.mrb[0].mxu0
      %1280 = vmatprep.mubr.f32.mxu0 0.0
      %1281 = vmatmul.mubr.f32.gmra.mrb[0].mxu0 %v1059
      %v1282 = vpop.f32.mrb[0].mxu0
      %v1283 = vadd.f32 %v963, %v1282
      %v1284 = vpop.f32.mrb[0].mxu0
      %1285 = vdwg.mxu0
      %v1286 = vadd.f32 %v924, %v1128
      %v1287 = vadd.f32 %v925, %v1133
      %v1288 = vadd.f32 %v926, %v1138
      %v1289 = vadd.f32 %v927, %v1143
      %v1290 = vadd.f32 %v928, %v1148
      %v1291 = vadd.f32 %v929, %v1153
      %v1292 = vadd.f32 %v930, %v1158
      %v1293 = vadd.f32 %v931, %v1163
      %v1294 = vadd.f32 %v932, %v1168
      %v1295 = vadd.f32 %v933, %v1173
      %v1296 = vadd.f32 %v934, %v1178
      %v1297 = vadd.f32 %v935, %v1183
      %v1298 = vadd.f32 %v936, %v1188
      %v1299 = vadd.f32 %v937, %v1193
      %v1300 = vadd.f32 %v938, %v1198
      %v1301 = vadd.f32 %v939, %v1203
      %v1302 = vadd.f32 %v940, %v1208
      %v1303 = vadd.f32 %v941, %v1213
      %v1304 = vadd.f32 %v942, %v1218
      %v1305 = vadd.f32 %v943, %v1223
      %v1306 = vadd.f32 %v944, %v1228
      %v1307 = vadd.f32 %v945, %v1233
      %v1308 = vadd.f32 %v946, %v1238
      %v1309 = vadd.f32 %v947, %v1243
      %v1310 = vadd.f32 %v948, %v1248
      %v1311 = vadd.f32 %v949, %v1253
      %v1312 = vadd.f32 %v950, %v1258
      %v1313 = vadd.f32 %v951, %v1263
      %v1314 = vadd.f32 %v952, %v1268
      %v1315 = vadd.f32 %v953, %v1273
      %v1316 = vadd.f32 %v954, %v1278
      %v1317 = vadd.f32 %v955, %v1283
      %v1318 = vsel %vm964, %v1286, 0.0
      %1319 = vadd.xlane.f32.xlu0 %v1318
      %v1320 = vpop.xlane.xlu0 %1319
      %v1321 = vsel %vm964, %v1287, 0.0
      %1322 = vadd.xlane.f32.xlu0 %v1321
      %v1323 = vpop.xlane.xlu0 %1322
      %v1324 = vsel %vm964, %v1288, 0.0
      %1325 = vadd.xlane.f32.xlu0 %v1324
      %v1326 = vpop.xlane.xlu0 %1325
      %v1327 = vsel %vm964, %v1289, 0.0
      %1328 = vadd.xlane.f32.xlu0 %v1327
      %v1329 = vpop.xlane.xlu0 %1328
      %v1330 = vsel %vm964, %v1290, 0.0
      %1331 = vadd.xlane.f32.xlu0 %v1330
      %v1332 = vpop.xlane.xlu0 %1331
      %v1333 = vsel %vm964, %v1291, 0.0
      %1334 = vadd.xlane.f32.xlu0 %v1333
      %v1335 = vpop.xlane.xlu0 %1334
      %v1336 = vsel %vm964, %v1292, 0.0
      %1337 = vadd.xlane.f32.xlu0 %v1336
      %v1338 = vpop.xlane.xlu0 %1337
      %v1339 = vsel %vm964, %v1293, 0.0
      %1340 = vadd.xlane.f32.xlu0 %v1339
      %v1341 = vpop.xlane.xlu0 %1340
      %v1342 = vsel %vm964, %v1294, 0.0
      %1343 = vadd.xlane.f32.xlu0 %v1342
      %v1344 = vpop.xlane.xlu0 %1343
      %v1345 = vsel %vm964, %v1295, 0.0
      %1346 = vadd.xlane.f32.xlu0 %v1345
      %v1347 = vpop.xlane.xlu0 %1346
      %v1348 = vsel %vm964, %v1296, 0.0
      %1349 = vadd.xlane.f32.xlu0 %v1348
      %v1350 = vpop.xlane.xlu0 %1349
      %v1351 = vsel %vm964, %v1297, 0.0
      %1352 = vadd.xlane.f32.xlu0 %v1351
      %v1353 = vpop.xlane.xlu0 %1352
      %v1354 = vsel %vm964, %v1298, 0.0
      %1355 = vadd.xlane.f32.xlu0 %v1354
      %v1356 = vpop.xlane.xlu0 %1355
      %v1357 = vsel %vm964, %v1299, 0.0
      %1358 = vadd.xlane.f32.xlu0 %v1357
      %v1359 = vpop.xlane.xlu0 %1358
      %v1360 = vsel %vm964, %v1300, 0.0
      %1361 = vadd.xlane.f32.xlu0 %v1360
      %v1362 = vpop.xlane.xlu0 %1361
      %v1363 = vsel %vm964, %v1301, 0.0
      %1364 = vadd.xlane.f32.xlu0 %v1363
      %v1365 = vpop.xlane.xlu0 %1364
      %v1366 = vsel %vm964, %v1302, 0.0
      %1367 = vadd.xlane.f32.xlu0 %v1366
      %v1368 = vpop.xlane.xlu0 %1367
      %v1369 = vsel %vm964, %v1303, 0.0
      %1370 = vadd.xlane.f32.xlu0 %v1369
      %v1371 = vpop.xlane.xlu0 %1370
      %v1372 = vsel %vm964, %v1304, 0.0
      %1373 = vadd.xlane.f32.xlu0 %v1372
      %v1374 = vpop.xlane.xlu0 %1373
      %v1375 = vsel %vm964, %v1305, 0.0
      %1376 = vadd.xlane.f32.xlu0 %v1375
      %v1377 = vpop.xlane.xlu0 %1376
      %v1378 = vsel %vm964, %v1306, 0.0
      %1379 = vadd.xlane.f32.xlu0 %v1378
      %v1380 = vpop.xlane.xlu0 %1379
      %v1381 = vsel %vm964, %v1307, 0.0
      %1382 = vadd.xlane.f32.xlu0 %v1381
      %v1383 = vpop.xlane.xlu0 %1382
      %v1384 = vsel %vm964, %v1308, 0.0
      %1385 = vadd.xlane.f32.xlu0 %v1384
      %v1386 = vpop.xlane.xlu0 %1385
      %v1387 = vsel %vm964, %v1309, 0.0
      %1388 = vadd.xlane.f32.xlu0 %v1387
      %v1389 = vpop.xlane.xlu0 %1388
      %v1390 = vsel %vm964, %v1310, 0.0
      %1391 = vadd.xlane.f32.xlu0 %v1390
      %v1392 = vpop.xlane.xlu0 %1391
      %v1393 = vsel %vm964, %v1311, 0.0
      %1394 = vadd.xlane.f32.xlu0 %v1393
      %v1395 = vpop.xlane.xlu0 %1394
      %v1396 = vsel %vm964, %v1312, 0.0
      %1397 = vadd.xlane.f32.xlu0 %v1396
      %v1398 = vpop.xlane.xlu0 %1397
      %v1399 = vsel %vm964, %v1313, 0.0
      %1400 = vadd.xlane.f32.xlu0 %v1399
      %v1401 = vpop.xlane.xlu0 %1400
      %v1402 = vsel %vm964, %v1314, 0.0
      %1403 = vadd.xlane.f32.xlu0 %v1402
      %v1404 = vpop.xlane.xlu0 %1403
      %v1405 = vsel %vm964, %v1315, 0.0
      %1406 = vadd.xlane.f32.xlu0 %v1405
      %v1407 = vpop.xlane.xlu0 %1406
      %v1408 = vsel %vm964, %v1316, 0.0
      %1409 = vadd.xlane.f32.xlu0 %v1408
      %v1410 = vpop.xlane.xlu0 %1409
      %v1411 = vsel %vm964, %v1317, 0.0
      %1412 = vadd.xlane.f32.xlu0 %v1411
      %v1413 = vpop.xlane.xlu0 %1412
      %v1414 = vrcp.pop 32.0
      %v1415 = vmul.f32 %v1320, %v1414
      %v1416 = vmul.f32 %v1323, %v1414
      %v1417 = vmul.f32 %v1326, %v1414
      %v1418 = vmul.f32 %v1329, %v1414
      %v1419 = vmul.f32 %v1332, %v1414
      %v1420 = vmul.f32 %v1335, %v1414
      %v1421 = vmul.f32 %v1338, %v1414
      %v1422 = vmul.f32 %v1341, %v1414
      %v1423 = vmul.f32 %v1344, %v1414
      %v1424 = vmul.f32 %v1347, %v1414
      %v1425 = vmul.f32 %v1350, %v1414
      %v1426 = vmul.f32 %v1353, %v1414
      %v1427 = vmul.f32 %v1356, %v1414
      %v1428 = vmul.f32 %v1359, %v1414
      %v1429 = vmul.f32 %v1362, %v1414
      %v1430 = vmul.f32 %v1365, %v1414
      %v1431 = vmul.f32 %v1368, %v1414
      %v1432 = vmul.f32 %v1371, %v1414
      %v1433 = vmul.f32 %v1374, %v1414
      %v1434 = vmul.f32 %v1377, %v1414
      %v1435 = vmul.f32 %v1380, %v1414
      %v1436 = vmul.f32 %v1383, %v1414
      %v1437 = vmul.f32 %v1386, %v1414
      %v1438 = vmul.f32 %v1389, %v1414
      %v1439 = vmul.f32 %v1392, %v1414
      %v1440 = vmul.f32 %v1395, %v1414
      %v1441 = vmul.f32 %v1398, %v1414
      %v1442 = vmul.f32 %v1401, %v1414
      %v1443 = vmul.f32 %v1404, %v1414
      %v1444 = vmul.f32 %v1407, %v1414
      %v1445 = vmul.f32 %v1410, %v1414
      %v1446 = vmul.f32 %v1413, %v1414
      %v1447 = vsub.f32 %v1286, %v1415
      %v1448 = vsub.f32 %v1287, %v1416
      %v1449 = vsub.f32 %v1288, %v1417
      %v1450 = vsub.f32 %v1289, %v1418
      %v1451 = vsub.f32 %v1290, %v1419
      %v1452 = vsub.f32 %v1291, %v1420
      %v1453 = vsub.f32 %v1292, %v1421
      %v1454 = vsub.f32 %v1293, %v1422
      %v1455 = vsub.f32 %v1294, %v1423
      %v1456 = vsub.f32 %v1295, %v1424
      %v1457 = vsub.f32 %v1296, %v1425
      %v1458 = vsub.f32 %v1297, %v1426
      %v1459 = vsub.f32 %v1298, %v1427
      %v1460 = vsub.f32 %v1299, %v1428
      %v1461 = vsub.f32 %v1300, %v1429
      %v1462 = vsub.f32 %v1301, %v1430
      %v1463 = vsub.f32 %v1302, %v1431
      %v1464 = vsub.f32 %v1303, %v1432
      %v1465 = vsub.f32 %v1304, %v1433
      %v1466 = vsub.f32 %v1305, %v1434
      %v1467 = vsub.f32 %v1306, %v1435
      %v1468 = vsub.f32 %v1307, %v1436
      %v1469 = vsub.f32 %v1308, %v1437
      %v1470 = vsub.f32 %v1309, %v1438
      %v1471 = vsub.f32 %v1310, %v1439
      %v1472 = vsub.f32 %v1311, %v1440
      %v1473 = vsub.f32 %v1312, %v1441
      %v1474 = vsub.f32 %v1313, %v1442
      %v1475 = vsub.f32 %v1314, %v1443
      %v1476 = vsub.f32 %v1315, %v1444
      %v1477 = vsub.f32 %v1316, %v1445
      %v1478 = vsub.f32 %v1317, %v1446
      %v1479 = vmul.f32 %v1447, %v1447
      %v1480 = vmul.f32 %v1448, %v1448
      %v1481 = vmul.f32 %v1449, %v1449
      %v1482 = vmul.f32 %v1450, %v1450
      %v1483 = vmul.f32 %v1451, %v1451
      %v1484 = vmul.f32 %v1452, %v1452
      %v1485 = vmul.f32 %v1453, %v1453
      %v1486 = vmul.f32 %v1454, %v1454
      %v1487 = vmul.f32 %v1455, %v1455
      %v1488 = vmul.f32 %v1456, %v1456
      %v1489 = vmul.f32 %v1457, %v1457
      %v1490 = vmul.f32 %v1458, %v1458
      %v1491 = vmul.f32 %v1459, %v1459
      %v1492 = vmul.f32 %v1460, %v1460
      %v1493 = vmul.f32 %v1461, %v1461
      %v1494 = vmul.f32 %v1462, %v1462
      %v1495 = vmul.f32 %v1463, %v1463
      %v1496 = vmul.f32 %v1464, %v1464
      %v1497 = vmul.f32 %v1465, %v1465
      %v1498 = vmul.f32 %v1466, %v1466
      %v1499 = vmul.f32 %v1467, %v1467
      %v1500 = vmul.f32 %v1468, %v1468
      %v1501 = vmul.f32 %v1469, %v1469
      %v1502 = vmul.f32 %v1470, %v1470
      %v1503 = vmul.f32 %v1471, %v1471
      %v1504 = vmul.f32 %v1472, %v1472
      %v1505 = vmul.f32 %v1473, %v1473
      %v1506 = vmul.f32 %v1474, %v1474
      %v1507 = vmul.f32 %v1475, %v1475
      %v1508 = vmul.f32 %v1476, %v1476
      %v1509 = vmul.f32 %v1477, %v1477
      %v1510 = vmul.f32 %v1478, %v1478
      %v1511 = vsel %vm964, %v1479, 0.0
      %1512 = vadd.xlane.f32.xlu0 %v1511
      %v1513 = vpop.xlane.xlu0 %1512
      %v1514 = vsel %vm964, %v1480, 0.0
      %1515 = vadd.xlane.f32.xlu0 %v1514
      %v1516 = vpop.xlane.xlu0 %1515
      %v1517 = vsel %vm964, %v1481, 0.0
      %1518 = vadd.xlane.f32.xlu0 %v1517
      %v1519 = vpop.xlane.xlu0 %1518
      %v1520 = vsel %vm964, %v1482, 0.0
      %1521 = vadd.xlane.f32.xlu0 %v1520
      %v1522 = vpop.xlane.xlu0 %1521
      %v1523 = vsel %vm964, %v1483, 0.0
      %1524 = vadd.xlane.f32.xlu0 %v1523
      %v1525 = vpop.xlane.xlu0 %1524
      %v1526 = vsel %vm964, %v1484, 0.0
      %1527 = vadd.xlane.f32.xlu0 %v1526
      %v1528 = vpop.xlane.xlu0 %1527
      %v1529 = vsel %vm964, %v1485, 0.0
      %1530 = vadd.xlane.f32.xlu0 %v1529
      %v1531 = vpop.xlane.xlu0 %1530
      %v1532 = vsel %vm964, %v1486, 0.0
      %1533 = vadd.xlane.f32.xlu0 %v1532
      %v1534 = vpop.xlane.xlu0 %1533
      %v1535 = vsel %vm964, %v1487, 0.0
      %1536 = vadd.xlane.f32.xlu0 %v1535
      %v1537 = vpop.xlane.xlu0 %1536
      %v1538 = vsel %vm964, %v1488, 0.0
      %1539 = vadd.xlane.f32.xlu0 %v1538
      %v1540 = vpop.xlane.xlu0 %1539
      %v1541 = vsel %vm964, %v1489, 0.0
      %1542 = vadd.xlane.f32.xlu0 %v1541
      %v1543 = vpop.xlane.xlu0 %1542
      %v1544 = vsel %vm964, %v1490, 0.0
      %1545 = vadd.xlane.f32.xlu0 %v1544
      %v1546 = vpop.xlane.xlu0 %1545
      %v1547 = vsel %vm964, %v1491, 0.0
      %1548 = vadd.xlane.f32.xlu0 %v1547
      %v1549 = vpop.xlane.xlu0 %1548
      %v1550 = vsel %vm964, %v1492, 0.0
      %1551 = vadd.xlane.f32.xlu0 %v1550
      %v1552 = vpop.xlane.xlu0 %1551
      %v1553 = vsel %vm964, %v1493, 0.0
      %1554 = vadd.xlane.f32.xlu0 %v1553
      %v1555 = vpop.xlane.xlu0 %1554
      %v1556 = vsel %vm964, %v1494, 0.0
      %1557 = vadd.xlane.f32.xlu0 %v1556
      %v1558 = vpop.xlane.xlu0 %1557
      %v1559 = vsel %vm964, %v1495, 0.0
      %1560 = vadd.xlane.f32.xlu0 %v1559
      %v1561 = vpop.xlane.xlu0 %1560
      %v1562 = vsel %vm964, %v1496, 0.0
      %1563 = vadd.xlane.f32.xlu0 %v1562
      %v1564 = vpop.xlane.xlu0 %1563
      %v1565 = vsel %vm964, %v1497, 0.0
      %1566 = vadd.xlane.f32.xlu0 %v1565
      %v1567 = vpop.xlane.xlu0 %1566
      %v1568 = vsel %vm964, %v1498, 0.0
      %1569 = vadd.xlane.f32.xlu0 %v1568
      %v1570 = vpop.xlane.xlu0 %1569
      %v1571 = vsel %vm964, %v1499, 0.0
      %1572 = vadd.xlane.f32.xlu0 %v1571
      %v1573 = vpop.xlane.xlu0 %1572
      %v1574 = vsel %vm964, %v1500, 0.0
      %1575 = vadd.xlane.f32.xlu0 %v1574
      %v1576 = vpop.xlane.xlu0 %1575
      %v1577 = vsel %vm964, %v1501, 0.0
      %1578 = vadd.xlane.f32.xlu0 %v1577
      %v1579 = vpop.xlane.xlu0 %1578
      %v1580 = vsel %vm964, %v1502, 0.0
      %1581 = vadd.xlane.f32.xlu0 %v1580
      %v1582 = vpop.xlane.xlu0 %1581
      %v1583 = vsel %vm964, %v1503, 0.0
      %1584 = vadd.xlane.f32.xlu0 %v1583
      %v1585 = vpop.xlane.xlu0 %1584
      %v1586 = vsel %vm964, %v1504, 0.0
      %1587 = vadd.xlane.f32.xlu0 %v1586
      %v1588 = vpop.xlane.xlu0 %1587
      %v1589 = vsel %vm964, %v1505, 0.0
      %1590 = vadd.xlane.f32.xlu0 %v1589
      %v1591 = vpop.xlane.xlu0 %1590
      %v1592 = vsel %vm964, %v1506, 0.0
      %1593 = vadd.xlane.f32.xlu0 %v1592
      %v1594 = vpop.xlane.xlu0 %1593
      %v1595 = vsel %vm964, %v1507, 0.0
      %1596 = vadd.xlane.f32.xlu0 %v1595
      %v1597 = vpop.xlane.xlu0 %1596
      %v1598 = vsel %vm964, %v1508, 0.0
      %1599 = vadd.xlane.f32.xlu0 %v1598
      %v1600 = vpop.xlane.xlu0 %1599
      %v1601 = vsel %vm964, %v1509, 0.0
      %1602 = vadd.xlane.f32.xlu0 %v1601
      %v1603 = vpop.xlane.xlu0 %1602
      %v1604 = vsel %vm964, %v1510, 0.0
      %1605 = vadd.xlane.f32.xlu0 %v1604
      %v1606 = vpop.xlane.xlu0 %1605
      %v1607 = vmul.f32 %v1513, %v1414
      %v1608 = vmul.f32 %v1516, %v1414
      %v1609 = vmul.f32 %v1519, %v1414
      %v1610 = vmul.f32 %v1522, %v1414
      %v1611 = vmul.f32 %v1525, %v1414
      %v1612 = vmul.f32 %v1528, %v1414
      %v1613 = vmul.f32 %v1531, %v1414
      %v1614 = vmul.f32 %v1534, %v1414
      %v1615 = vmul.f32 %v1537, %v1414
      %v1616 = vmul.f32 %v1540, %v1414
      %v1617 = vmul.f32 %v1543, %v1414
      %v1618 = vmul.f32 %v1546, %v1414
      %v1619 = vmul.f32 %v1549, %v1414
      %v1620 = vmul.f32 %v1552, %v1414
      %v1621 = vmul.f32 %v1555, %v1414
      %v1622 = vmul.f32 %v1558, %v1414
      %v1623 = vmul.f32 %v1561, %v1414
      %v1624 = vmul.f32 %v1564, %v1414
      %v1625 = vmul.f32 %v1567, %v1414
      %v1626 = vmul.f32 %v1570, %v1414
      %v1627 = vmul.f32 %v1573, %v1414
      %v1628 = vmul.f32 %v1576, %v1414
      %v1629 = vmul.f32 %v1579, %v1414
      %v1630 = vmul.f32 %v1582, %v1414
      %v1631 = vmul.f32 %v1585, %v1414
      %v1632 = vmul.f32 %v1588, %v1414
      %v1633 = vmul.f32 %v1591, %v1414
      %v1634 = vmul.f32 %v1594, %v1414
      %v1635 = vmul.f32 %v1597, %v1414
      %v1636 = vmul.f32 %v1600, %v1414
      %v1637 = vmul.f32 %v1603, %v1414
      %v1638 = vmul.f32 %v1606, %v1414
      %v1639 = vadd.f32 %v1607, 1e-05
      %v1640 = vadd.f32 %v1608, 1e-05
      %v1641 = vadd.f32 %v1609, 1e-05
      %v1642 = vadd.f32 %v1610, 1e-05
      %v1643 = vadd.f32 %v1611, 1e-05
      %v1644 = vadd.f32 %v1612, 1e-05
      %v1645 = vadd.f32 %v1613, 1e-05
      %v1646 = vadd.f32 %v1614, 1e-05
      %v1647 = vadd.f32 %v1615, 1e-05
      %v1648 = vadd.f32 %v1616, 1e-05
      %v1649 = vadd.f32 %v1617, 1e-05
      %v1650 = vadd.f32 %v1618, 1e-05
      %v1651 = vadd.f32 %v1619, 1e-05
      %v1652 = vadd.f32 %v1620, 1e-05
      %v1653 = vadd.f32 %v1621, 1e-05
      %v1654 = vadd.f32 %v1622, 1e-05
      %v1655 = vadd.f32 %v1623, 1e-05
      %v1656 = vadd.f32 %v1624, 1e-05
      %v1657 = vadd.f32 %v1625, 1e-05
      %v1658 = vadd.f32 %v1626, 1e-05
      %v1659 = vadd.f32 %v1627, 1e-05
      %v1660 = vadd.f32 %v1628, 1e-05
      %v1661 = vadd.f32 %v1629, 1e-05
      %v1662 = vadd.f32 %v1630, 1e-05
      %v1663 = vadd.f32 %v1631, 1e-05
      %v1664 = vadd.f32 %v1632, 1e-05
      %v1665 = vadd.f32 %v1633, 1e-05
      %v1666 = vadd.f32 %v1634, 1e-05
      %v1667 = vadd.f32 %v1635, 1e-05
      %v1668 = vadd.f32 %v1636, 1e-05
      %v1669 = vadd.f32 %v1637, 1e-05
      %v1670 = vadd.f32 %v1638, 1e-05
      %v1671 = vrsqrt.pop %v1639
      %v1672 = vrsqrt.pop %v1640
      %v1673 = vrsqrt.pop %v1641
      %v1674 = vrsqrt.pop %v1642
      %v1675 = vrsqrt.pop %v1643
      %v1676 = vrsqrt.pop %v1644
      %v1677 = vrsqrt.pop %v1645
      %v1678 = vrsqrt.pop %v1646
      %v1679 = vrsqrt.pop %v1647
      %v1680 = vrsqrt.pop %v1648
      %v1681 = vrsqrt.pop %v1649
      %v1682 = vrsqrt.pop %v1650
      %v1683 = vrsqrt.pop %v1651
      %v1684 = vrsqrt.pop %v1652
      %v1685 = vrsqrt.pop %v1653
      %v1686 = vrsqrt.pop %v1654
      %v1687 = vrsqrt.pop %v1655
      %v1688 = vrsqrt.pop %v1656
      %v1689 = vrsqrt.pop %v1657
      %v1690 = vrsqrt.pop %v1658
      %v1691 = vrsqrt.pop %v1659
      %v1692 = vrsqrt.pop %v1660
      %v1693 = vrsqrt.pop %v1661
      %v1694 = vrsqrt.pop %v1662
      %v1695 = vrsqrt.pop %v1663
      %v1696 = vrsqrt.pop %v1664
      %v1697 = vrsqrt.pop %v1665
      %v1698 = vrsqrt.pop %v1666
      %v1699 = vrsqrt.pop %v1667
      %v1700 = vrsqrt.pop %v1668
      %v1701 = vrsqrt.pop %v1669
      %v1702 = vrsqrt.pop %v1670
      %v1703 = vmul.f32 %v1447, %v1671
      %v1704 = vmul.f32 %v1448, %v1672
      %v1705 = vmul.f32 %v1449, %v1673
      %v1706 = vmul.f32 %v1450, %v1674
      %v1707 = vmul.f32 %v1451, %v1675
      %v1708 = vmul.f32 %v1452, %v1676
      %v1709 = vmul.f32 %v1453, %v1677
      %v1710 = vmul.f32 %v1454, %v1678
      %v1711 = vmul.f32 %v1455, %v1679
      %v1712 = vmul.f32 %v1456, %v1680
      %v1713 = vmul.f32 %v1457, %v1681
      %v1714 = vmul.f32 %v1458, %v1682
      %v1715 = vmul.f32 %v1459, %v1683
      %v1716 = vmul.f32 %v1460, %v1684
      %v1717 = vmul.f32 %v1461, %v1685
      %v1718 = vmul.f32 %v1462, %v1686
      %v1719 = vmul.f32 %v1463, %v1687
      %v1720 = vmul.f32 %v1464, %v1688
      %v1721 = vmul.f32 %v1465, %v1689
      %v1722 = vmul.f32 %v1466, %v1690
      %v1723 = vmul.f32 %v1467, %v1691
      %v1724 = vmul.f32 %v1468, %v1692
      %v1725 = vmul.f32 %v1469, %v1693
      %v1726 = vmul.f32 %v1470, %v1694
      %v1727 = vmul.f32 %v1471, %v1695
      %v1728 = vmul.f32 %v1472, %v1696
      %v1729 = vmul.f32 %v1473, %v1697
      %v1730 = vmul.f32 %v1474, %v1698
      %v1731 = vmul.f32 %v1475, %v1699
      %v1732 = vmul.f32 %v1476, %v1700
      %v1733 = vmul.f32 %v1477, %v1701
      %v1734 = vmul.f32 %v1478, %v1702
      %v1735 = vlaneseq
      %v1736 = vshrl.u32 %v1735, 7
      %v1737 = vsub.s32 4, %v1736
      %v1738 = vrot.slane %v395, %v1737
      %v1739 = vmul.f32 %v1703, %v1738
      %v1740 = vmul.f32 %v1704, %v1738
      %v1741 = vmul.f32 %v1705, %v1738
      %v1742 = vmul.f32 %v1706, %v1738
      %v1743 = vmul.f32 %v1707, %v1738
      %v1744 = vmul.f32 %v1708, %v1738
      %v1745 = vmul.f32 %v1709, %v1738
      %v1746 = vmul.f32 %v1710, %v1738
      %v1747 = vmul.f32 %v1711, %v1738
      %v1748 = vmul.f32 %v1712, %v1738
      %v1749 = vmul.f32 %v1713, %v1738
      %v1750 = vmul.f32 %v1714, %v1738
      %v1751 = vmul.f32 %v1715, %v1738
      %v1752 = vmul.f32 %v1716, %v1738
      %v1753 = vmul.f32 %v1717, %v1738
      %v1754 = vmul.f32 %v1718, %v1738
      %v1755 = vmul.f32 %v1719, %v1738
      %v1756 = vmul.f32 %v1720, %v1738
      %v1757 = vmul.f32 %v1721, %v1738
      %v1758 = vmul.f32 %v1722, %v1738
      %v1759 = vmul.f32 %v1723, %v1738
      %v1760 = vmul.f32 %v1724, %v1738
      %v1761 = vmul.f32 %v1725, %v1738
      %v1762 = vmul.f32 %v1726, %v1738
      %v1763 = vmul.f32 %v1727, %v1738
      %v1764 = vmul.f32 %v1728, %v1738
      %v1765 = vmul.f32 %v1729, %v1738
      %v1766 = vmul.f32 %v1730, %v1738
      %v1767 = vmul.f32 %v1731, %v1738
      %v1768 = vmul.f32 %v1732, %v1738
      %v1769 = vmul.f32 %v1733, %v1738
      %v1770 = vmul.f32 %v1734, %v1738
      %v1771 = vlaneseq
      %v1772 = vshrl.u32 %v1771, 7
      %v1773 = vsub.s32 5, %v1772
      %v1774 = vrot.slane %v395, %v1773
      %v1775 = vadd.f32 %v1739, %v1774
      %v1776 = vadd.f32 %v1740, %v1774
      %v1777 = vadd.f32 %v1741, %v1774
      %v1778 = vadd.f32 %v1742, %v1774
      %v1779 = vadd.f32 %v1743, %v1774
      %v1780 = vadd.f32 %v1744, %v1774
      %v1781 = vadd.f32 %v1745, %v1774
      %v1782 = vadd.f32 %v1746, %v1774
      %v1783 = vadd.f32 %v1747, %v1774
      %v1784 = vadd.f32 %v1748, %v1774
      %v1785 = vadd.f32 %v1749, %v1774
      %v1786 = vadd.f32 %v1750, %v1774
      %v1787 = vadd.f32 %v1751, %v1774
      %v1788 = vadd.f32 %v1752, %v1774
      %v1789 = vadd.f32 %v1753, %v1774
      %v1790 = vadd.f32 %v1754, %v1774
      %v1791 = vadd.f32 %v1755, %v1774
      %v1792 = vadd.f32 %v1756, %v1774
      %v1793 = vadd.f32 %v1757, %v1774
      %v1794 = vadd.f32 %v1758, %v1774
      %v1795 = vadd.f32 %v1759, %v1774
      %v1796 = vadd.f32 %v1760, %v1774
      %v1797 = vadd.f32 %v1761, %v1774
      %v1798 = vadd.f32 %v1762, %v1774
      %v1799 = vadd.f32 %v1763, %v1774
      %v1800 = vadd.f32 %v1764, %v1774
      %v1801 = vadd.f32 %v1765, %v1774
      %v1802 = vadd.f32 %v1766, %v1774
      %v1803 = vadd.f32 %v1767, %v1774
      %v1804 = vadd.f32 %v1768, %v1774
      %v1805 = vadd.f32 %v1769, %v1774
      %v1806 = vadd.f32 %v1770, %v1774
      %v1807 = vld [vmem:[%s3 + $0x8] sm:$0xff]
      %v1808 = vlaneseq
      %v1809 = vshrl.u32 %v1808, 7
      %v1810 = vsub.s32 3, %v1809
      %v1811 = vrot.slane %v395, %v1810
      %vm1812 = vcmask 64512
      %v1814 = vsel %vm1812, %v363, 0
      %v1817 = vsel %vm1812, %v364, 0
      %v1820 = vsel %vm1812, %v365, 0
      %v1823 = vsel %vm1812, %v366, 0
      %v1826 = vsel %vm1812, %v367, 0
      %v1829 = vsel %vm1812, %v368, 0
      %v1832 = vsel %vm1812, %v369, 0
      %v1835 = vsel %vm1812, %v370, 0
      %v1838 = vsel %vm1812, %v371, 0
      %v1841 = vsel %vm1812, %v372, 0
      %v1844 = vsel %vm1812, %v373, 0
      %v1847 = vsel %vm1812, %v374, 0
      %v1850 = vsel %vm1812, %v375, 0
      %v1853 = vsel %vm1812, %v376, 0
      %v1856 = vsel %vm1812, %v377, 0
      %v1859 = vsel %vm1812, %v378, 0
      %v1862 = vsel %vm1812, %v379, 0
      %v1865 = vsel %vm1812, %v380, 0
      %v1868 = vsel %vm1812, %v381, 0
      %v1871 = vsel %vm1812, %v382, 0
      %v1874 = vsel %vm1812, %v383, 0
      %v1877 = vsel %vm1812, %v384, 0
      %v1880 = vsel %vm1812, %v385, 0
      %v1883 = vsel %vm1812, %v386, 0
      %v1886 = vsel %vm1812, %v387, 0
      %v1889 = vsel %vm1812, %v388, 0
      %v1892 = vsel %vm1812, %v389, 0
      %v1895 = vsel %vm1812, %v390, 0
      %v1898 = vsel %vm1812, %v391, 0
      %v1901 = vsel %vm1812, %v392, 0
      %v1904 = vsel %vm1812, %v393, 0
      %v1907 = vsel %vm1812, %v394, 0
      %1909 = vmatprep.subr.mxu0 0.0
      %1910 = vmatpush1.msra.mxu0 %v1807
      %1911 = vmatprep.subr.mxu0 0.0
      %1912 = vmatpush1.msra.mxu0 0.0
      %1913 = vmatprep.subr.mxu0 0.0
      %1914 = vmatpush1.msra.mxu0 0.0
      %1915 = vmatprep.subr.mxu0 0.0
      %1916 = vmatpush1.msra.mxu0 0.0
      %1917 = vmatprep.subr.mxu0 0.0
      %1918 = vmatpush1.msra.mxu0 0.0
      %1919 = vmatprep.subr.mxu0 0.0
      %1920 = vmatpush1.msra.mxu0 0.0
      %1921 = vmatprep.subr.mxu0 0.0
      %1922 = vmatpush1.msra.mxu0 0.0
      %1923 = vmatprep.subr.mxu0 0.0
      %1924 = vmatpush1.msra.mxu0 0.0
      %1925 = vmatprep.subr.mxu0 0.0
      %1926 = vmatpush1.msra.mxu0 0.0
      %1927 = vmatprep.subr.mxu0 0.0
      %1928 = vmatpush1.msra.mxu0 0.0
      %1929 = vmatprep.subr.mxu0 0.0
      %1930 = vmatpush1.msra.mxu0 0.0
      %1931 = vmatprep.subr.mxu0 0.0
      %1932 = vmatpush1.msra.mxu0 0.0
      %1933 = vmatprep.subr.mxu0 0.0
      %1934 = vmatpush1.msra.mxu0 0.0
      %1935 = vmatprep.subr.mxu0 0.0
      %1936 = vmatpush1.msra.mxu0 0.0
      %1937 = vmatprep.subr.mxu0 0.0
      %1938 = vmatpush1.msra.mxu0 0.0
      %1939 = vmatprep.subr.mxu0 0.0
      %1940 = vmatpush1.msra.mxu0 0.0
      %1941 = vmatprep.subr.mxu0 0.0
      %1942 = vmatpush1.msra.mxu0 0.0
      %1943 = vmatprep.subr.mxu0 0.0
      %1944 = vmatpush1.msra.mxu0 0.0
      %1945 = vmatprep.subr.mxu0 0.0
      %1946 = vmatpush1.msra.mxu0 0.0
      %1947 = vmatprep.subr.mxu0 0.0
      %1948 = vmatpush1.msra.mxu0 0.0
      %1949 = vmatprep.subr.mxu0 0.0
      %1950 = vmatpush1.msra.mxu0 0.0
      %1951 = vmatprep.subr.mxu0 0.0
      %1952 = vmatpush1.msra.mxu0 0.0
      %1953 = vmatprep.subr.mxu0 0.0
      %1954 = vmatpush1.msra.mxu0 0.0
      %1955 = vmatprep.subr.mxu0 0.0
      %1956 = vmatpush1.msra.mxu0 0.0
      %1957 = vmatprep.subr.mxu0 0.0
      %1958 = vmatpush1.msra.mxu0 0.0
      %1959 = vmatprep.subr.mxu0 0.0
      %1960 = vmatpush1.msra.mxu0 0.0
      %1961 = vmatprep.subr.mxu0 0.0
      %1962 = vmatpush1.msra.mxu0 0.0
      %1963 = vmatprep.subr.mxu0 0.0
      %1964 = vmatpush1.msra.mxu0 0.0
      %1965 = vmatprep.subr.mxu0 0.0
      %1966 = vmatpush1.msra.mxu0 0.0
      %1967 = vmatprep.subr.mxu0 0.0
      %1968 = vmatpush1.msra.mxu0 0.0
      %1969 = vmatprep.subr.mxu0 0.0
      %1970 = vmatpush1.msra.mxu0 0.0
      %1971 = vmatprep.subr.mxu0 0.0
      %1972 = vmatpush1.msra.mxu0 0.0
      %1973 = vmatprep.mubr.f32.mxu0 0.0
      %1974 = vmatmul.mubr.f32.gmra.mrb[0].mxu0 %v1814
      %v1975 = vpop.f32.mrb[0].mxu0
      %v1976 = vadd.f32 %v1811, %v1975
      %v1977 = vpop.f32.mrb[0].mxu0
      %1978 = vmatprep.mubr.f32.mxu0 0.0
      %1979 = vmatmul.mubr.f32.gmra.mrb[0].mxu0 %v1817
      %v1980 = vpop.f32.mrb[0].mxu0
      %v1981 = vadd.f32 %v1811, %v1980
      %v1982 = vpop.f32.mrb[0].mxu0
      %1983 = vmatprep.mubr.f32.mxu0 0.0
      %1984 = vmatmul.mubr.f32.gmra.mrb[0].mxu0 %v1820
      %v1985 = vpop.f32.mrb[0].mxu0
      %v1986 = vadd.f32 %v1811, %v1985
      %v1987 = vpop.f32.mrb[0].mxu0
      %1988 = vmatprep.mubr.f32.mxu0 0.0
      %1989 = vmatmul.mubr.f32.gmra.mrb[0].mxu0 %v1823
      %v1990 = vpop.f32.mrb[0].mxu0
      %v1991 = vadd.f32 %v1811, %v1990
      %v1992 = vpop.f32.mrb[0].mxu0
      %1993 = vmatprep.mubr.f32.mxu0 0.0
      %1994 = vmatmul.mubr.f32.gmra.mrb[0].mxu0 %v1826
      %v1995 = vpop.f32.mrb[0].mxu0
      %v1996 = vadd.f32 %v1811, %v1995
      %v1997 = vpop.f32.mrb[0].mxu0
      %1998 = vmatprep.mubr.f32.mxu0 0.0
      %1999 = vmatmul.mubr.f32.gmra.mrb[0].mxu0 %v1829
      %v2000 = vpop.f32.mrb[0].mxu0
      %v2001 = vadd.f32 %v1811, %v2000
      %v2002 = vpop.f32.mrb[0].mxu0
      %2003 = vmatprep.mubr.f32.mxu0 0.0
      %2004 = vmatmul.mubr.f32.gmra.mrb[0].mxu0 %v1832
      %v2005 = vpop.f32.mrb[0].mxu0
      %v2006 = vadd.f32 %v1811, %v2005
      %v2007 = vpop.f32.mrb[0].mxu0
      %2008 = vmatprep.mubr.f32.mxu0 0.0
      %2009 = vmatmul.mubr.f32.gmra.mrb[0].mxu0 %v1835
      %v2010 = vpop.f32.mrb[0].mxu0
      %v2011 = vadd.f32 %v1811, %v2010
      %v2012 = vpop.f32.mrb[0].mxu0
      %2013 = vmatprep.mubr.f32.mxu0 0.0
      %2014 = vmatmul.mubr.f32.gmra.mrb[0].mxu0 %v1838
      %v2015 = vpop.f32.mrb[0].mxu0
      %v2016 = vadd.f32 %v1811, %v2015
      %v2017 = vpop.f32.mrb[0].mxu0
      %2018 = vmatprep.mubr.f32.mxu0 0.0
      %2019 = vmatmul.mubr.f32.gmra.mrb[0].mxu0 %v1841
      %v2020 = vpop.f32.mrb[0].mxu0
      %v2021 = vadd.f32 %v1811, %v2020
      %v2022 = vpop.f32.mrb[0].mxu0
      %2023 = vmatprep.mubr.f32.mxu0 0.0
      %2024 = vmatmul.mubr.f32.gmra.mrb[0].mxu0 %v1844
      %v2025 = vpop.f32.mrb[0].mxu0
      %v2026 = vadd.f32 %v1811, %v2025
      %v2027 = vpop.f32.mrb[0].mxu0
      %2028 = vmatprep.mubr.f32.mxu0 0.0
      %2029 = vmatmul.mubr.f32.gmra.mrb[0].mxu0 %v1847
      %v2030 = vpop.f32.mrb[0].mxu0
      %v2031 = vadd.f32 %v1811, %v2030
      %v2032 = vpop.f32.mrb[0].mxu0
      %2033 = vmatprep.mubr.f32.mxu0 0.0
      %2034 = vmatmul.mubr.f32.gmra.mrb[0].mxu0 %v1850
      %v2035 = vpop.f32.mrb[0].mxu0
      %v2036 = vadd.f32 %v1811, %v2035
      %v2037 = vpop.f32.mrb[0].mxu0
      %2038 = vmatprep.mubr.f32.mxu0 0.0
      %2039 = vmatmul.mubr.f32.gmra.mrb[0].mxu0 %v1853
      %v2040 = vpop.f32.mrb[0].mxu0
      %v2041 = vadd.f32 %v1811, %v2040
      %v2042 = vpop.f32.mrb[0].mxu0
      %2043 = vmatprep.mubr.f32.mxu0 0.0
      %2044 = vmatmul.mubr.f32.gmra.mrb[0].mxu0 %v1856
      %v2045 = vpop.f32.mrb[0].mxu0
      %v2046 = vadd.f32 %v1811, %v2045
      %v2047 = vpop.f32.mrb[0].mxu0
      %2048 = vmatprep.mubr.f32.mxu0 0.0
      %2049 = vmatmul.mubr.f32.gmra.mrb[0].mxu0 %v1859
      %v2050 = vpop.f32.mrb[0].mxu0
      %v2051 = vadd.f32 %v1811, %v2050
      %v2052 = vpop.f32.mrb[0].mxu0
      %2053 = vmatprep.mubr.f32.mxu0 0.0
      %2054 = vmatmul.mubr.f32.gmra.mrb[0].mxu0 %v1862
      %v2055 = vpop.f32.mrb[0].mxu0
      %v2056 = vadd.f32 %v1811, %v2055
      %v2057 = vpop.f32.mrb[0].mxu0
      %2058 = vmatprep.mubr.f32.mxu0 0.0
      %2059 = vmatmul.mubr.f32.gmra.mrb[0].mxu0 %v1865
      %v2060 = vpop.f32.mrb[0].mxu0
      %v2061 = vadd.f32 %v1811, %v2060
      %v2062 = vpop.f32.mrb[0].mxu0
      %2063 = vmatprep.mubr.f32.mxu0 0.0
      %2064 = vmatmul.mubr.f32.gmra.mrb[0].mxu0 %v1868
      %v2065 = vpop.f32.mrb[0].mxu0
      %v2066 = vadd.f32 %v1811, %v2065
      %v2067 = vpop.f32.mrb[0].mxu0
      %2068 = vmatprep.mubr.f32.mxu0 0.0
      %2069 = vmatmul.mubr.f32.gmra.mrb[0].mxu0 %v1871
      %v2070 = vpop.f32.mrb[0].mxu0
      %v2071 = vadd.f32 %v1811, %v2070
      %v2072 = vpop.f32.mrb[0].mxu0
      %2073 = vmatprep.mubr.f32.mxu0 0.0
      %2074 = vmatmul.mubr.f32.gmra.mrb[0].mxu0 %v1874
      %v2075 = vpop.f32.mrb[0].mxu0
      %v2076 = vadd.f32 %v1811, %v2075
      %v2077 = vpop.f32.mrb[0].mxu0
      %2078 = vmatprep.mubr.f32.mxu0 0.0
      %2079 = vmatmul.mubr.f32.gmra.mrb[0].mxu0 %v1877
      %v2080 = vpop.f32.mrb[0].mxu0
      %v2081 = vadd.f32 %v1811, %v2080
      %v2082 = vpop.f32.mrb[0].mxu0
      %2083 = vmatprep.mubr.f32.mxu0 0.0
      %2084 = vmatmul.mubr.f32.gmra.mrb[0].mxu0 %v1880
      %v2085 = vpop.f32.mrb[0].mxu0
      %v2086 = vadd.f32 %v1811, %v2085
      %v2087 = vpop.f32.mrb[0].mxu0
      %2088 = vmatprep.mubr.f32.mxu0 0.0
      %2089 = vmatmul.mubr.f32.gmra.mrb[0].mxu0 %v1883
      %v2090 = vpop.f32.mrb[0].mxu0
      %v2091 = vadd.f32 %v1811, %v2090
      %v2092 = vpop.f32.mrb[0].mxu0
      %2093 = vmatprep.mubr.f32.mxu0 0.0
      %2094 = vmatmul.mubr.f32.gmra.mrb[0].mxu0 %v1886
      %v2095 = vpop.f32.mrb[0].mxu0
      %v2096 = vadd.f32 %v1811, %v2095
      %v2097 = vpop.f32.mrb[0].mxu0
      %2098 = vmatprep.mubr.f32.mxu0 0.0
      %2099 = vmatmul.mubr.f32.gmra.mrb[0].mxu0 %v1889
      %v2100 = vpop.f32.mrb[0].mxu0
      %v2101 = vadd.f32 %v1811, %v2100
      %v2102 = vpop.f32.mrb[0].mxu0
      %2103 = vmatprep.mubr.f32.mxu0 0.0
      %2104 = vmatmul.mubr.f32.gmra.mrb[0].mxu0 %v1892
      %v2105 = vpop.f32.mrb[0].mxu0
      %v2106 = vadd.f32 %v1811, %v2105
      %v2107 = vpop.f32.mrb[0].mxu0
      %2108 = vmatprep.mubr.f32.mxu0 0.0
      %2109 = vmatmul.mubr.f32.gmra.mrb[0].mxu0 %v1895
      %v2110 = vpop.f32.mrb[0].mxu0
      %v2111 = vadd.f32 %v1811, %v2110
      %v2112 = vpop.f32.mrb[0].mxu0
      %2113 = vmatprep.mubr.f32.mxu0 0.0
      %2114 = vmatmul.mubr.f32.gmra.mrb[0].mxu0 %v1898
      %v2115 = vpop.f32.mrb[0].mxu0
      %v2116 = vadd.f32 %v1811, %v2115
      %v2117 = vpop.f32.mrb[0].mxu0
      %2118 = vmatprep.mubr.f32.mxu0 0.0
      %2119 = vmatmul.mubr.f32.gmra.mrb[0].mxu0 %v1901
      %v2120 = vpop.f32.mrb[0].mxu0
      %v2121 = vadd.f32 %v1811, %v2120
      %v2122 = vpop.f32.mrb[0].mxu0
      %2123 = vmatprep.mubr.f32.mxu0 0.0
      %2124 = vmatmul.mubr.f32.gmra.mrb[0].mxu0 %v1904
      %v2125 = vpop.f32.mrb[0].mxu0
      %v2126 = vadd.f32 %v1811, %v2125
      %v2127 = vpop.f32.mrb[0].mxu0
      %2128 = vmatprep.mubr.f32.mxu0 0.0
      %2129 = vmatmul.mubr.f32.gmra.mrb[0].mxu0 %v1907
      %v2130 = vpop.f32.mrb[0].mxu0
      %v2131 = vadd.f32 %v1811, %v2130
      %v2132 = vpop.f32.mrb[0].mxu0
      %2133 = vdwg.mxu0
      %v2134 = vadd.f32 %v1775, %v1976
      %v2135 = vadd.f32 %v1776, %v1981
      %v2136 = vadd.f32 %v1777, %v1986
      %v2137 = vadd.f32 %v1778, %v1991
      %v2138 = vadd.f32 %v1779, %v1996
      %v2139 = vadd.f32 %v1780, %v2001
      %v2140 = vadd.f32 %v1781, %v2006
      %v2141 = vadd.f32 %v1782, %v2011
      %v2142 = vadd.f32 %v1783, %v2016
      %v2143 = vadd.f32 %v1784, %v2021
      %v2144 = vadd.f32 %v1785, %v2026
      %v2145 = vadd.f32 %v1786, %v2031
      %v2146 = vadd.f32 %v1787, %v2036
      %v2147 = vadd.f32 %v1788, %v2041
      %v2148 = vadd.f32 %v1789, %v2046
      %v2149 = vadd.f32 %v1790, %v2051
      %v2150 = vadd.f32 %v1791, %v2056
      %v2151 = vadd.f32 %v1792, %v2061
      %v2152 = vadd.f32 %v1793, %v2066
      %v2153 = vadd.f32 %v1794, %v2071
      %v2154 = vadd.f32 %v1795, %v2076
      %v2155 = vadd.f32 %v1796, %v2081
      %v2156 = vadd.f32 %v1797, %v2086
      %v2157 = vadd.f32 %v1798, %v2091
      %v2158 = vadd.f32 %v1799, %v2096
      %v2159 = vadd.f32 %v1800, %v2101
      %v2160 = vadd.f32 %v1801, %v2106
      %v2161 = vadd.f32 %v1802, %v2111
      %v2162 = vadd.f32 %v1803, %v2116
      %v2163 = vadd.f32 %v1804, %v2121
      %v2164 = vadd.f32 %v1805, %v2126
      %v2165 = vadd.f32 %v1806, %v2131
      %v2166 = vsel %vm964, %v2134, 0.0
      %2167 = vadd.xlane.f32.xlu0 %v2166
      %v2168 = vpop.xlane.xlu0 %2167
      %v2169 = vsel %vm964, %v2135, 0.0
      %2170 = vadd.xlane.f32.xlu0 %v2169
      %v2171 = vpop.xlane.xlu0 %2170
      %v2172 = vsel %vm964, %v2136, 0.0
      %2173 = vadd.xlane.f32.xlu0 %v2172
      %v2174 = vpop.xlane.xlu0 %2173
      %v2175 = vsel %vm964, %v2137, 0.0
      %2176 = vadd.xlane.f32.xlu0 %v2175
      %v2177 = vpop.xlane.xlu0 %2176
      %v2178 = vsel %vm964, %v2138, 0.0
      %2179 = vadd.xlane.f32.xlu0 %v2178
      %v2180 = vpop.xlane.xlu0 %2179
      %v2181 = vsel %vm964, %v2139, 0.0
      %2182 = vadd.xlane.f32.xlu0 %v2181
      %v2183 = vpop.xlane.xlu0 %2182
      %v2184 = vsel %vm964, %v2140, 0.0
      %2185 = vadd.xlane.f32.xlu0 %v2184
      %v2186 = vpop.xlane.xlu0 %2185
      %v2187 = vsel %vm964, %v2141, 0.0
      %2188 = vadd.xlane.f32.xlu0 %v2187
      %v2189 = vpop.xlane.xlu0 %2188
      %v2190 = vsel %vm964, %v2142, 0.0
      %2191 = vadd.xlane.f32.xlu0 %v2190
      %v2192 = vpop.xlane.xlu0 %2191
      %v2193 = vsel %vm964, %v2143, 0.0
      %2194 = vadd.xlane.f32.xlu0 %v2193
      %v2195 = vpop.xlane.xlu0 %2194
      %v2196 = vsel %vm964, %v2144, 0.0
      %2197 = vadd.xlane.f32.xlu0 %v2196
      %v2198 = vpop.xlane.xlu0 %2197
      %v2199 = vsel %vm964, %v2145, 0.0
      %2200 = vadd.xlane.f32.xlu0 %v2199
      %v2201 = vpop.xlane.xlu0 %2200
      %v2202 = vsel %vm964, %v2146, 0.0
      %2203 = vadd.xlane.f32.xlu0 %v2202
      %v2204 = vpop.xlane.xlu0 %2203
      %v2205 = vsel %vm964, %v2147, 0.0
      %2206 = vadd.xlane.f32.xlu0 %v2205
      %v2207 = vpop.xlane.xlu0 %2206
      %v2208 = vsel %vm964, %v2148, 0.0
      %2209 = vadd.xlane.f32.xlu0 %v2208
      %v2210 = vpop.xlane.xlu0 %2209
      %v2211 = vsel %vm964, %v2149, 0.0
      %2212 = vadd.xlane.f32.xlu0 %v2211
      %v2213 = vpop.xlane.xlu0 %2212
      %v2214 = vsel %vm964, %v2150, 0.0
      %2215 = vadd.xlane.f32.xlu0 %v2214
      %v2216 = vpop.xlane.xlu0 %2215
      %v2217 = vsel %vm964, %v2151, 0.0
      %2218 = vadd.xlane.f32.xlu0 %v2217
      %v2219 = vpop.xlane.xlu0 %2218
      %v2220 = vsel %vm964, %v2152, 0.0
      %2221 = vadd.xlane.f32.xlu0 %v2220
      %v2222 = vpop.xlane.xlu0 %2221
      %v2223 = vsel %vm964, %v2153, 0.0
      %2224 = vadd.xlane.f32.xlu0 %v2223
      %v2225 = vpop.xlane.xlu0 %2224
      %v2226 = vsel %vm964, %v2154, 0.0
      %2227 = vadd.xlane.f32.xlu0 %v2226
      %v2228 = vpop.xlane.xlu0 %2227
      %v2229 = vsel %vm964, %v2155, 0.0
      %2230 = vadd.xlane.f32.xlu0 %v2229
      %v2231 = vpop.xlane.xlu0 %2230
      %v2232 = vsel %vm964, %v2156, 0.0
      %2233 = vadd.xlane.f32.xlu0 %v2232
      %v2234 = vpop.xlane.xlu0 %2233
      %v2235 = vsel %vm964, %v2157, 0.0
      %2236 = vadd.xlane.f32.xlu0 %v2235
      %v2237 = vpop.xlane.xlu0 %2236
      %v2238 = vsel %vm964, %v2158, 0.0
      %2239 = vadd.xlane.f32.xlu0 %v2238
      %v2240 = vpop.xlane.xlu0 %2239
      %v2241 = vsel %vm964, %v2159, 0.0
      %2242 = vadd.xlane.f32.xlu0 %v2241
      %v2243 = vpop.xlane.xlu0 %2242
      %v2244 = vsel %vm964, %v2160, 0.0
      %2245 = vadd.xlane.f32.xlu0 %v2244
      %v2246 = vpop.xlane.xlu0 %2245
      %v2247 = vsel %vm964, %v2161, 0.0
      %2248 = vadd.xlane.f32.xlu0 %v2247
      %v2249 = vpop.xlane.xlu0 %2248
      %v2250 = vsel %vm964, %v2162, 0.0
      %2251 = vadd.xlane.f32.xlu0 %v2250
      %v2252 = vpop.xlane.xlu0 %2251
      %v2253 = vsel %vm964, %v2163, 0.0
      %2254 = vadd.xlane.f32.xlu0 %v2253
      %v2255 = vpop.xlane.xlu0 %2254
      %v2256 = vsel %vm964, %v2164, 0.0
      %2257 = vadd.xlane.f32.xlu0 %v2256
      %v2258 = vpop.xlane.xlu0 %2257
      %v2259 = vsel %vm964, %v2165, 0.0
      %2260 = vadd.xlane.f32.xlu0 %v2259
      %v2261 = vpop.xlane.xlu0 %2260
      %v2262 = vmul.f32 %v2168, %v1414
      %v2263 = vmul.f32 %v2171, %v1414
      %v2264 = vmul.f32 %v2174, %v1414
      %v2265 = vmul.f32 %v2177, %v1414
      %v2266 = vmul.f32 %v2180, %v1414
      %v2267 = vmul.f32 %v2183, %v1414
      %v2268 = vmul.f32 %v2186, %v1414
      %v2269 = vmul.f32 %v2189, %v1414
      %v2270 = vmul.f32 %v2192, %v1414
      %v2271 = vmul.f32 %v2195, %v1414
      %v2272 = vmul.f32 %v2198, %v1414
      %v2273 = vmul.f32 %v2201, %v1414
      %v2274 = vmul.f32 %v2204, %v1414
      %v2275 = vmul.f32 %v2207, %v1414
      %v2276 = vmul.f32 %v2210, %v1414
      %v2277 = vmul.f32 %v2213, %v1414
      %v2278 = vmul.f32 %v2216, %v1414
      %v2279 = vmul.f32 %v2219, %v1414
      %v2280 = vmul.f32 %v2222, %v1414
      %v2281 = vmul.f32 %v2225, %v1414
      %v2282 = vmul.f32 %v2228, %v1414
      %v2283 = vmul.f32 %v2231, %v1414
      %v2284 = vmul.f32 %v2234, %v1414
      %v2285 = vmul.f32 %v2237, %v1414
      %v2286 = vmul.f32 %v2240, %v1414
      %v2287 = vmul.f32 %v2243, %v1414
      %v2288 = vmul.f32 %v2246, %v1414
      %v2289 = vmul.f32 %v2249, %v1414
      %v2290 = vmul.f32 %v2252, %v1414
      %v2291 = vmul.f32 %v2255, %v1414
      %v2292 = vmul.f32 %v2258, %v1414
      %v2293 = vmul.f32 %v2261, %v1414
      %v2294 = vsub.f32 %v2134, %v2262
      %v2295 = vsub.f32 %v2135, %v2263
      %v2296 = vsub.f32 %v2136, %v2264
      %v2297 = vsub.f32 %v2137, %v2265
      %v2298 = vsub.f32 %v2138, %v2266
      %v2299 = vsub.f32 %v2139, %v2267
      %v2300 = vsub.f32 %v2140, %v2268
      %v2301 = vsub.f32 %v2141, %v2269
      %v2302 = vsub.f32 %v2142, %v2270
      %v2303 = vsub.f32 %v2143, %v2271
      %v2304 = vsub.f32 %v2144, %v2272
      %v2305 = vsub.f32 %v2145, %v2273
      %v2306 = vsub.f32 %v2146, %v2274
      %v2307 = vsub.f32 %v2147, %v2275
      %v2308 = vsub.f32 %v2148, %v2276
      %v2309 = vsub.f32 %v2149, %v2277
      %v2310 = vsub.f32 %v2150, %v2278
      %v2311 = vsub.f32 %v2151, %v2279
      %v2312 = vsub.f32 %v2152, %v2280
      %v2313 = vsub.f32 %v2153, %v2281
      %v2314 = vsub.f32 %v2154, %v2282
      %v2315 = vsub.f32 %v2155, %v2283
      %v2316 = vsub.f32 %v2156, %v2284
      %v2317 = vsub.f32 %v2157, %v2285
      %v2318 = vsub.f32 %v2158, %v2286
      %v2319 = vsub.f32 %v2159, %v2287
      %v2320 = vsub.f32 %v2160, %v2288
      %v2321 = vsub.f32 %v2161, %v2289
      %v2322 = vsub.f32 %v2162, %v2290
      %v2323 = vsub.f32 %v2163, %v2291
      %v2324 = vsub.f32 %v2164, %v2292
      %v2325 = vsub.f32 %v2165, %v2293
      %v2326 = vmul.f32 %v2294, %v2294
      %v2327 = vmul.f32 %v2295, %v2295
      %v2328 = vmul.f32 %v2296, %v2296
      %v2329 = vmul.f32 %v2297, %v2297
      %v2330 = vmul.f32 %v2298, %v2298
      %v2331 = vmul.f32 %v2299, %v2299
      %v2332 = vmul.f32 %v2300, %v2300
      %v2333 = vmul.f32 %v2301, %v2301
      %v2334 = vmul.f32 %v2302, %v2302
      %v2335 = vmul.f32 %v2303, %v2303
      %v2336 = vmul.f32 %v2304, %v2304
      %v2337 = vmul.f32 %v2305, %v2305
      %v2338 = vmul.f32 %v2306, %v2306
      %v2339 = vmul.f32 %v2307, %v2307
      %v2340 = vmul.f32 %v2308, %v2308
      %v2341 = vmul.f32 %v2309, %v2309
      %v2342 = vmul.f32 %v2310, %v2310
      %v2343 = vmul.f32 %v2311, %v2311
      %v2344 = vmul.f32 %v2312, %v2312
      %v2345 = vmul.f32 %v2313, %v2313
      %v2346 = vmul.f32 %v2314, %v2314
      %v2347 = vmul.f32 %v2315, %v2315
      %v2348 = vmul.f32 %v2316, %v2316
      %v2349 = vmul.f32 %v2317, %v2317
      %v2350 = vmul.f32 %v2318, %v2318
      %v2351 = vmul.f32 %v2319, %v2319
      %v2352 = vmul.f32 %v2320, %v2320
      %v2353 = vmul.f32 %v2321, %v2321
      %v2354 = vmul.f32 %v2322, %v2322
      %v2355 = vmul.f32 %v2323, %v2323
      %v2356 = vmul.f32 %v2324, %v2324
      %v2357 = vmul.f32 %v2325, %v2325
      %v2358 = vsel %vm964, %v2326, 0.0
      %2359 = vadd.xlane.f32.xlu0 %v2358
      %v2360 = vpop.xlane.xlu0 %2359
      %v2361 = vsel %vm964, %v2327, 0.0
      %2362 = vadd.xlane.f32.xlu0 %v2361
      %v2363 = vpop.xlane.xlu0 %2362
      %v2364 = vsel %vm964, %v2328, 0.0
      %2365 = vadd.xlane.f32.xlu0 %v2364
      %v2366 = vpop.xlane.xlu0 %2365
      %v2367 = vsel %vm964, %v2329, 0.0
      %2368 = vadd.xlane.f32.xlu0 %v2367
      %v2369 = vpop.xlane.xlu0 %2368
      %v2370 = vsel %vm964, %v2330, 0.0
      %2371 = vadd.xlane.f32.xlu0 %v2370
      %v2372 = vpop.xlane.xlu0 %2371
      %v2373 = vsel %vm964, %v2331, 0.0
      %2374 = vadd.xlane.f32.xlu0 %v2373
      %v2375 = vpop.xlane.xlu0 %2374
      %v2376 = vsel %vm964, %v2332, 0.0
      %2377 = vadd.xlane.f32.xlu0 %v2376
      %v2378 = vpop.xlane.xlu0 %2377
      %v2379 = vsel %vm964, %v2333, 0.0
      %2380 = vadd.xlane.f32.xlu0 %v2379
      %v2381 = vpop.xlane.xlu0 %2380
      %v2382 = vsel %vm964, %v2334, 0.0
      %2383 = vadd.xlane.f32.xlu0 %v2382
      %v2384 = vpop.xlane.xlu0 %2383
      %v2385 = vsel %vm964, %v2335, 0.0
      %2386 = vadd.xlane.f32.xlu0 %v2385
      %v2387 = vpop.xlane.xlu0 %2386
      %v2388 = vsel %vm964, %v2336, 0.0
      %2389 = vadd.xlane.f32.xlu0 %v2388
      %v2390 = vpop.xlane.xlu0 %2389
      %v2391 = vsel %vm964, %v2337, 0.0
      %2392 = vadd.xlane.f32.xlu0 %v2391
      %v2393 = vpop.xlane.xlu0 %2392
      %v2394 = vsel %vm964, %v2338, 0.0
      %2395 = vadd.xlane.f32.xlu0 %v2394
      %v2396 = vpop.xlane.xlu0 %2395
      %v2397 = vsel %vm964, %v2339, 0.0
      %2398 = vadd.xlane.f32.xlu0 %v2397
      %v2399 = vpop.xlane.xlu0 %2398
      %v2400 = vsel %vm964, %v2340, 0.0
      %2401 = vadd.xlane.f32.xlu0 %v2400
      %v2402 = vpop.xlane.xlu0 %2401
      %v2403 = vsel %vm964, %v2341, 0.0
      %2404 = vadd.xlane.f32.xlu0 %v2403
      %v2405 = vpop.xlane.xlu0 %2404
      %v2406 = vsel %vm964, %v2342, 0.0
      %2407 = vadd.xlane.f32.xlu0 %v2406
      %v2408 = vpop.xlane.xlu0 %2407
      %v2409 = vsel %vm964, %v2343, 0.0
      %2410 = vadd.xlane.f32.xlu0 %v2409
      %v2411 = vpop.xlane.xlu0 %2410
      %v2412 = vsel %vm964, %v2344, 0.0
      %2413 = vadd.xlane.f32.xlu0 %v2412
      %v2414 = vpop.xlane.xlu0 %2413
      %v2415 = vsel %vm964, %v2345, 0.0
      %2416 = vadd.xlane.f32.xlu0 %v2415
      %v2417 = vpop.xlane.xlu0 %2416
      %v2418 = vsel %vm964, %v2346, 0.0
      %2419 = vadd.xlane.f32.xlu0 %v2418
      %v2420 = vpop.xlane.xlu0 %2419
      %v2421 = vsel %vm964, %v2347, 0.0
      %2422 = vadd.xlane.f32.xlu0 %v2421
      %v2423 = vpop.xlane.xlu0 %2422
      %v2424 = vsel %vm964, %v2348, 0.0
      %2425 = vadd.xlane.f32.xlu0 %v2424
      %v2426 = vpop.xlane.xlu0 %2425
      %v2427 = vsel %vm964, %v2349, 0.0
      %2428 = vadd.xlane.f32.xlu0 %v2427
      %v2429 = vpop.xlane.xlu0 %2428
      %v2430 = vsel %vm964, %v2350, 0.0
      %2431 = vadd.xlane.f32.xlu0 %v2430
      %v2432 = vpop.xlane.xlu0 %2431
      %v2433 = vsel %vm964, %v2351, 0.0
      %2434 = vadd.xlane.f32.xlu0 %v2433
      %v2435 = vpop.xlane.xlu0 %2434
      %v2436 = vsel %vm964, %v2352, 0.0
      %2437 = vadd.xlane.f32.xlu0 %v2436
      %v2438 = vpop.xlane.xlu0 %2437
      %v2439 = vsel %vm964, %v2353, 0.0
      %2440 = vadd.xlane.f32.xlu0 %v2439
      %v2441 = vpop.xlane.xlu0 %2440
      %v2442 = vsel %vm964, %v2354, 0.0
      %2443 = vadd.xlane.f32.xlu0 %v2442
      %v2444 = vpop.xlane.xlu0 %2443
      %v2445 = vsel %vm964, %v2355, 0.0
      %2446 = vadd.xlane.f32.xlu0 %v2445
      %v2447 = vpop.xlane.xlu0 %2446
      %v2448 = vsel %vm964, %v2356, 0.0
      %2449 = vadd.xlane.f32.xlu0 %v2448
      %v2450 = vpop.xlane.xlu0 %2449
      %v2451 = vsel %vm964, %v2357, 0.0
      %2452 = vadd.xlane.f32.xlu0 %v2451
      %v2453 = vpop.xlane.xlu0 %2452
      %v2454 = vmul.f32 %v2360, %v1414
      %v2455 = vmul.f32 %v2363, %v1414
      %v2456 = vmul.f32 %v2366, %v1414
      %v2457 = vmul.f32 %v2369, %v1414
      %v2458 = vmul.f32 %v2372, %v1414
      %v2459 = vmul.f32 %v2375, %v1414
      %v2460 = vmul.f32 %v2378, %v1414
      %v2461 = vmul.f32 %v2381, %v1414
      %v2462 = vmul.f32 %v2384, %v1414
      %v2463 = vmul.f32 %v2387, %v1414
      %v2464 = vmul.f32 %v2390, %v1414
      %v2465 = vmul.f32 %v2393, %v1414
      %v2466 = vmul.f32 %v2396, %v1414
      %v2467 = vmul.f32 %v2399, %v1414
      %v2468 = vmul.f32 %v2402, %v1414
      %v2469 = vmul.f32 %v2405, %v1414
      %v2470 = vmul.f32 %v2408, %v1414
      %v2471 = vmul.f32 %v2411, %v1414
      %v2472 = vmul.f32 %v2414, %v1414
      %v2473 = vmul.f32 %v2417, %v1414
      %v2474 = vmul.f32 %v2420, %v1414
      %v2475 = vmul.f32 %v2423, %v1414
      %v2476 = vmul.f32 %v2426, %v1414
      %v2477 = vmul.f32 %v2429, %v1414
      %v2478 = vmul.f32 %v2432, %v1414
      %v2479 = vmul.f32 %v2435, %v1414
      %v2480 = vmul.f32 %v2438, %v1414
      %v2481 = vmul.f32 %v2441, %v1414
      %v2482 = vmul.f32 %v2444, %v1414
      %v2483 = vmul.f32 %v2447, %v1414
      %v2484 = vmul.f32 %v2450, %v1414
      %v2485 = vmul.f32 %v2453, %v1414
      %v2486 = vadd.f32 %v2454, 1e-05
      %v2487 = vadd.f32 %v2455, 1e-05
      %v2488 = vadd.f32 %v2456, 1e-05
      %v2489 = vadd.f32 %v2457, 1e-05
      %v2490 = vadd.f32 %v2458, 1e-05
      %v2491 = vadd.f32 %v2459, 1e-05
      %v2492 = vadd.f32 %v2460, 1e-05
      %v2493 = vadd.f32 %v2461, 1e-05
      %v2494 = vadd.f32 %v2462, 1e-05
      %v2495 = vadd.f32 %v2463, 1e-05
      %v2496 = vadd.f32 %v2464, 1e-05
      %v2497 = vadd.f32 %v2465, 1e-05
      %v2498 = vadd.f32 %v2466, 1e-05
      %v2499 = vadd.f32 %v2467, 1e-05
      %v2500 = vadd.f32 %v2468, 1e-05
      %v2501 = vadd.f32 %v2469, 1e-05
      %v2502 = vadd.f32 %v2470, 1e-05
      %v2503 = vadd.f32 %v2471, 1e-05
      %v2504 = vadd.f32 %v2472, 1e-05
      %v2505 = vadd.f32 %v2473, 1e-05
      %v2506 = vadd.f32 %v2474, 1e-05
      %v2507 = vadd.f32 %v2475, 1e-05
      %v2508 = vadd.f32 %v2476, 1e-05
      %v2509 = vadd.f32 %v2477, 1e-05
      %v2510 = vadd.f32 %v2478, 1e-05
      %v2511 = vadd.f32 %v2479, 1e-05
      %v2512 = vadd.f32 %v2480, 1e-05
      %v2513 = vadd.f32 %v2481, 1e-05
      %v2514 = vadd.f32 %v2482, 1e-05
      %v2515 = vadd.f32 %v2483, 1e-05
      %v2516 = vadd.f32 %v2484, 1e-05
      %v2517 = vadd.f32 %v2485, 1e-05
      %v2518 = vrsqrt.pop %v2486
      %v2519 = vrsqrt.pop %v2487
      %v2520 = vrsqrt.pop %v2488
      %v2521 = vrsqrt.pop %v2489
      %v2522 = vrsqrt.pop %v2490
      %v2523 = vrsqrt.pop %v2491
      %v2524 = vrsqrt.pop %v2492
      %v2525 = vrsqrt.pop %v2493
      %v2526 = vrsqrt.pop %v2494
      %v2527 = vrsqrt.pop %v2495
      %v2528 = vrsqrt.pop %v2496
      %v2529 = vrsqrt.pop %v2497
      %v2530 = vrsqrt.pop %v2498
      %v2531 = vrsqrt.pop %v2499
      %v2532 = vrsqrt.pop %v2500
      %v2533 = vrsqrt.pop %v2501
      %v2534 = vrsqrt.pop %v2502
      %v2535 = vrsqrt.pop %v2503
      %v2536 = vrsqrt.pop %v2504
      %v2537 = vrsqrt.pop %v2505
      %v2538 = vrsqrt.pop %v2506
      %v2539 = vrsqrt.pop %v2507
      %v2540 = vrsqrt.pop %v2508
      %v2541 = vrsqrt.pop %v2509
      %v2542 = vrsqrt.pop %v2510
      %v2543 = vrsqrt.pop %v2511
      %v2544 = vrsqrt.pop %v2512
      %v2545 = vrsqrt.pop %v2513
      %v2546 = vrsqrt.pop %v2514
      %v2547 = vrsqrt.pop %v2515
      %v2548 = vrsqrt.pop %v2516
      %v2549 = vrsqrt.pop %v2517
      %v2550 = vmul.f32 %v2294, %v2518
      %v2551 = vmul.f32 %v2295, %v2519
      %v2552 = vmul.f32 %v2296, %v2520
      %v2553 = vmul.f32 %v2297, %v2521
      %v2554 = vmul.f32 %v2298, %v2522
      %v2555 = vmul.f32 %v2299, %v2523
      %v2556 = vmul.f32 %v2300, %v2524
      %v2557 = vmul.f32 %v2301, %v2525
      %v2558 = vmul.f32 %v2302, %v2526
      %v2559 = vmul.f32 %v2303, %v2527
      %v2560 = vmul.f32 %v2304, %v2528
      %v2561 = vmul.f32 %v2305, %v2529
      %v2562 = vmul.f32 %v2306, %v2530
      %v2563 = vmul.f32 %v2307, %v2531
      %v2564 = vmul.f32 %v2308, %v2532
      %v2565 = vmul.f32 %v2309, %v2533
      %v2566 = vmul.f32 %v2310, %v2534
      %v2567 = vmul.f32 %v2311, %v2535
      %v2568 = vmul.f32 %v2312, %v2536
      %v2569 = vmul.f32 %v2313, %v2537
      %v2570 = vmul.f32 %v2314, %v2538
      %v2571 = vmul.f32 %v2315, %v2539
      %v2572 = vmul.f32 %v2316, %v2540
      %v2573 = vmul.f32 %v2317, %v2541
      %v2574 = vmul.f32 %v2318, %v2542
      %v2575 = vmul.f32 %v2319, %v2543
      %v2576 = vmul.f32 %v2320, %v2544
      %v2577 = vmul.f32 %v2321, %v2545
      %v2578 = vmul.f32 %v2322, %v2546
      %v2579 = vmul.f32 %v2323, %v2547
      %v2580 = vmul.f32 %v2324, %v2548
      %v2581 = vmul.f32 %v2325, %v2549
      %v2582 = vlaneseq
      %v2583 = vshrl.u32 %v2582, 7
      %v2584 = vsub.s32 6, %v2583
      %v2585 = vrot.slane %v395, %v2584
      %v2586 = vmul.f32 %v2550, %v2585
      %v2587 = vmul.f32 %v2551, %v2585
      %v2588 = vmul.f32 %v2552, %v2585
      %v2589 = vmul.f32 %v2553, %v2585
      %v2590 = vmul.f32 %v2554, %v2585
      %v2591 = vmul.f32 %v2555, %v2585
      %v2592 = vmul.f32 %v2556, %v2585
      %v2593 = vmul.f32 %v2557, %v2585
      %v2594 = vmul.f32 %v2558, %v2585
      %v2595 = vmul.f32 %v2559, %v2585
      %v2596 = vmul.f32 %v2560, %v2585
      %v2597 = vmul.f32 %v2561, %v2585
      %v2598 = vmul.f32 %v2562, %v2585
      %v2599 = vmul.f32 %v2563, %v2585
      %v2600 = vmul.f32 %v2564, %v2585
      %v2601 = vmul.f32 %v2565, %v2585
      %v2602 = vmul.f32 %v2566, %v2585
      %v2603 = vmul.f32 %v2567, %v2585
      %v2604 = vmul.f32 %v2568, %v2585
      %v2605 = vmul.f32 %v2569, %v2585
      %v2606 = vmul.f32 %v2570, %v2585
      %v2607 = vmul.f32 %v2571, %v2585
      %v2608 = vmul.f32 %v2572, %v2585
      %v2609 = vmul.f32 %v2573, %v2585
      %v2610 = vmul.f32 %v2574, %v2585
      %v2611 = vmul.f32 %v2575, %v2585
      %v2612 = vmul.f32 %v2576, %v2585
      %v2613 = vmul.f32 %v2577, %v2585
      %v2614 = vmul.f32 %v2578, %v2585
      %v2615 = vmul.f32 %v2579, %v2585
      %v2616 = vmul.f32 %v2580, %v2585
      %v2617 = vmul.f32 %v2581, %v2585
      %v2618 = vlaneseq
      %v2619 = vshrl.u32 %v2618, 7
      %v2620 = vsub.s32 7, %v2619
      %v2621 = vrot.slane %v395, %v2620
      %v2622 = vadd.f32 %v2586, %v2621
      %v2623 = vadd.f32 %v2587, %v2621
      %v2624 = vadd.f32 %v2588, %v2621
      %v2625 = vadd.f32 %v2589, %v2621
      %v2626 = vadd.f32 %v2590, %v2621
      %v2627 = vadd.f32 %v2591, %v2621
      %v2628 = vadd.f32 %v2592, %v2621
      %v2629 = vadd.f32 %v2593, %v2621
      %v2630 = vadd.f32 %v2594, %v2621
      %v2631 = vadd.f32 %v2595, %v2621
      %v2632 = vadd.f32 %v2596, %v2621
      %v2633 = vadd.f32 %v2597, %v2621
      %v2634 = vadd.f32 %v2598, %v2621
      %v2635 = vadd.f32 %v2599, %v2621
      %v2636 = vadd.f32 %v2600, %v2621
      %v2637 = vadd.f32 %v2601, %v2621
      %v2638 = vadd.f32 %v2602, %v2621
      %v2639 = vadd.f32 %v2603, %v2621
      %v2640 = vadd.f32 %v2604, %v2621
      %v2641 = vadd.f32 %v2605, %v2621
      %v2642 = vadd.f32 %v2606, %v2621
      %v2643 = vadd.f32 %v2607, %v2621
      %v2644 = vadd.f32 %v2608, %v2621
      %v2645 = vadd.f32 %v2609, %v2621
      %v2646 = vadd.f32 %v2610, %v2621
      %v2647 = vadd.f32 %v2611, %v2621
      %v2648 = vadd.f32 %v2612, %v2621
      %v2649 = vadd.f32 %v2613, %v2621
      %v2650 = vadd.f32 %v2614, %v2621
      %v2651 = vadd.f32 %v2615, %v2621
      %v2652 = vadd.f32 %v2616, %v2621
      %v2653 = vadd.f32 %v2617, %v2621
      %v2654 = vld [vmem:[%s5] sm:$0xff]
      %v2655 = vld [vmem:[%s5 + $0x8] sm:$0xff]
      %v2656 = vld [vmem:[%s5 + $0x10] sm:$0xff]
      %v2657 = vld [vmem:[%s5 + $0x18] sm:$0xff]
      %v2658 = vld [vmem:[%s5 + $0x20] sm:$0x1]
      %v2659 = vlaneseq
      %v2660 = vshrl.u32 %v2659, 7
      %v2661 = vsub.s32 0, %v2660
      %v2662 = vrot.slane %v2658, %v2661
      %v2664 = vsel %vm964, %v2622, 0
      %v2667 = vsel %vm964, %v2623, 0
      %v2670 = vsel %vm964, %v2624, 0
      %v2673 = vsel %vm964, %v2625, 0
      %v2676 = vsel %vm964, %v2626, 0
      %v2679 = vsel %vm964, %v2627, 0
      %v2682 = vsel %vm964, %v2628, 0
      %v2685 = vsel %vm964, %v2629, 0
      %v2688 = vsel %vm964, %v2630, 0
      %v2691 = vsel %vm964, %v2631, 0
      %v2694 = vsel %vm964, %v2632, 0
      %v2697 = vsel %vm964, %v2633, 0
      %v2700 = vsel %vm964, %v2634, 0
      %v2703 = vsel %vm964, %v2635, 0
      %v2706 = vsel %vm964, %v2636, 0
      %v2709 = vsel %vm964, %v2637, 0
      %v2712 = vsel %vm964, %v2638, 0
      %v2715 = vsel %vm964, %v2639, 0
      %v2718 = vsel %vm964, %v2640, 0
      %v2721 = vsel %vm964, %v2641, 0
      %v2724 = vsel %vm964, %v2642, 0
      %v2727 = vsel %vm964, %v2643, 0
      %v2730 = vsel %vm964, %v2644, 0
      %v2733 = vsel %vm964, %v2645, 0
      %v2736 = vsel %vm964, %v2646, 0
      %v2739 = vsel %vm964, %v2647, 0
      %v2742 = vsel %vm964, %v2648, 0
      %v2745 = vsel %vm964, %v2649, 0
      %v2748 = vsel %vm964, %v2650, 0
      %v2751 = vsel %vm964, %v2651, 0
      %v2754 = vsel %vm964, %v2652, 0
      %v2757 = vsel %vm964, %v2653, 0
      %2759 = vmatprep.subr.mxu0 0.0
      %2760 = vmatpush1.msra.mxu0 %v2654
      %2761 = vmatprep.subr.mxu0 0.0
      %2762 = vmatpush1.msra.mxu0 %v2655
      %2763 = vmatprep.subr.mxu0 0.0
      %2764 = vmatpush1.msra.mxu0 %v2656
      %2765 = vmatprep.subr.mxu0 0.0
      %2766 = vmatpush1.msra.mxu0 %v2657
      %2767 = vmatprep.subr.mxu0 0.0
      %2768 = vmatpush1.msra.mxu0 0.0
      %2769 = vmatprep.subr.mxu0 0.0
      %2770 = vmatpush1.msra.mxu0 0.0
      %2771 = vmatprep.subr.mxu0 0.0
      %2772 = vmatpush1.msra.mxu0 0.0
      %2773 = vmatprep.subr.mxu0 0.0
      %2774 = vmatpush1.msra.mxu0 0.0
      %2775 = vmatprep.subr.mxu0 0.0
      %2776 = vmatpush1.msra.mxu0 0.0
      %2777 = vmatprep.subr.mxu0 0.0
      %2778 = vmatpush1.msra.mxu0 0.0
      %2779 = vmatprep.subr.mxu0 0.0
      %2780 = vmatpush1.msra.mxu0 0.0
      %2781 = vmatprep.subr.mxu0 0.0
      %2782 = vmatpush1.msra.mxu0 0.0
      %2783 = vmatprep.subr.mxu0 0.0
      %2784 = vmatpush1.msra.mxu0 0.0
      %2785 = vmatprep.subr.mxu0 0.0
      %2786 = vmatpush1.msra.mxu0 0.0
      %2787 = vmatprep.subr.mxu0 0.0
      %2788 = vmatpush1.msra.mxu0 0.0
      %2789 = vmatprep.subr.mxu0 0.0
      %2790 = vmatpush1.msra.mxu0 0.0
      %2791 = vmatprep.subr.mxu0 0.0
      %2792 = vmatpush1.msra.mxu0 0.0
      %2793 = vmatprep.subr.mxu0 0.0
      %2794 = vmatpush1.msra.mxu0 0.0
      %2795 = vmatprep.subr.mxu0 0.0
      %2796 = vmatpush1.msra.mxu0 0.0
      %2797 = vmatprep.subr.mxu0 0.0
      %2798 = vmatpush1.msra.mxu0 0.0
      %2799 = vmatprep.subr.mxu0 0.0
      %2800 = vmatpush1.msra.mxu0 0.0
      %2801 = vmatprep.subr.mxu0 0.0
      %2802 = vmatpush1.msra.mxu0 0.0
      %2803 = vmatprep.subr.mxu0 0.0
      %2804 = vmatpush1.msra.mxu0 0.0
      %2805 = vmatprep.subr.mxu0 0.0
      %2806 = vmatpush1.msra.mxu0 0.0
      %2807 = vmatprep.subr.mxu0 0.0
      %2808 = vmatpush1.msra.mxu0 0.0
      %2809 = vmatprep.subr.mxu0 0.0
      %2810 = vmatpush1.msra.mxu0 0.0
      %2811 = vmatprep.subr.mxu0 0.0
      %2812 = vmatpush1.msra.mxu0 0.0
      %2813 = vmatprep.subr.mxu0 0.0
      %2814 = vmatpush1.msra.mxu0 0.0
      %2815 = vmatprep.subr.mxu0 0.0
      %2816 = vmatpush1.msra.mxu0 0.0
      %2817 = vmatprep.subr.mxu0 0.0
      %2818 = vmatpush1.msra.mxu0 0.0
      %2819 = vmatprep.subr.mxu0 0.0
      %2820 = vmatpush1.msra.mxu0 0.0
      %2821 = vmatprep.subr.mxu0 0.0
      %2822 = vmatpush1.msra.mxu0 0.0
      %2823 = vmatprep.mubr.f32.mxu0 0.0
      %2824 = vmatmul.mubr.f32.gmra.mrb[0].mxu0 %v2664
      %v2825 = vpop.f32.mrb[0].mxu0
      %v2826 = vadd.f32 %v2662, %v2825
      %v2827 = vpop.f32.mrb[0].mxu0
      %2828 = vmatprep.mubr.f32.mxu0 0.0
      %2829 = vmatmul.mubr.f32.gmra.mrb[0].mxu0 %v2667
      %v2830 = vpop.f32.mrb[0].mxu0
      %v2831 = vadd.f32 %v2662, %v2830
      %v2832 = vpop.f32.mrb[0].mxu0
      %2833 = vmatprep.mubr.f32.mxu0 0.0
      %2834 = vmatmul.mubr.f32.gmra.mrb[0].mxu0 %v2670
      %v2835 = vpop.f32.mrb[0].mxu0
      %v2836 = vadd.f32 %v2662, %v2835
      %v2837 = vpop.f32.mrb[0].mxu0
      %2838 = vmatprep.mubr.f32.mxu0 0.0
      %2839 = vmatmul.mubr.f32.gmra.mrb[0].mxu0 %v2673
      %v2840 = vpop.f32.mrb[0].mxu0
      %v2841 = vadd.f32 %v2662, %v2840
      %v2842 = vpop.f32.mrb[0].mxu0
      %2843 = vmatprep.mubr.f32.mxu0 0.0
      %2844 = vmatmul.mubr.f32.gmra.mrb[0].mxu0 %v2676
      %v2845 = vpop.f32.mrb[0].mxu0
      %v2846 = vadd.f32 %v2662, %v2845
      %v2847 = vpop.f32.mrb[0].mxu0
      %2848 = vmatprep.mubr.f32.mxu0 0.0
      %2849 = vmatmul.mubr.f32.gmra.mrb[0].mxu0 %v2679
      %v2850 = vpop.f32.mrb[0].mxu0
      %v2851 = vadd.f32 %v2662, %v2850
      %v2852 = vpop.f32.mrb[0].mxu0
      %2853 = vmatprep.mubr.f32.mxu0 0.0
      %2854 = vmatmul.mubr.f32.gmra.mrb[0].mxu0 %v2682
      %v2855 = vpop.f32.mrb[0].mxu0
      %v2856 = vadd.f32 %v2662, %v2855
      %v2857 = vpop.f32.mrb[0].mxu0
      %2858 = vmatprep.mubr.f32.mxu0 0.0
      %2859 = vmatmul.mubr.f32.gmra.mrb[0].mxu0 %v2685
      %v2860 = vpop.f32.mrb[0].mxu0
      %v2861 = vadd.f32 %v2662, %v2860
      %v2862 = vpop.f32.mrb[0].mxu0
      %2863 = vmatprep.mubr.f32.mxu0 0.0
      %2864 = vmatmul.mubr.f32.gmra.mrb[0].mxu0 %v2688
      %v2865 = vpop.f32.mrb[0].mxu0
      %v2866 = vadd.f32 %v2662, %v2865
      %v2867 = vpop.f32.mrb[0].mxu0
      %2868 = vmatprep.mubr.f32.mxu0 0.0
      %2869 = vmatmul.mubr.f32.gmra.mrb[0].mxu0 %v2691
      %v2870 = vpop.f32.mrb[0].mxu0
      %v2871 = vadd.f32 %v2662, %v2870
      %v2872 = vpop.f32.mrb[0].mxu0
      %2873 = vmatprep.mubr.f32.mxu0 0.0
      %2874 = vmatmul.mubr.f32.gmra.mrb[0].mxu0 %v2694
      %v2875 = vpop.f32.mrb[0].mxu0
      %v2876 = vadd.f32 %v2662, %v2875
      %v2877 = vpop.f32.mrb[0].mxu0
      %2878 = vmatprep.mubr.f32.mxu0 0.0
      %2879 = vmatmul.mubr.f32.gmra.mrb[0].mxu0 %v2697
      %v2880 = vpop.f32.mrb[0].mxu0
      %v2881 = vadd.f32 %v2662, %v2880
      %v2882 = vpop.f32.mrb[0].mxu0
      %2883 = vmatprep.mubr.f32.mxu0 0.0
      %2884 = vmatmul.mubr.f32.gmra.mrb[0].mxu0 %v2700
      %v2885 = vpop.f32.mrb[0].mxu0
      %v2886 = vadd.f32 %v2662, %v2885
      %v2887 = vpop.f32.mrb[0].mxu0
      %2888 = vmatprep.mubr.f32.mxu0 0.0
      %2889 = vmatmul.mubr.f32.gmra.mrb[0].mxu0 %v2703
      %v2890 = vpop.f32.mrb[0].mxu0
      %v2891 = vadd.f32 %v2662, %v2890
      %v2892 = vpop.f32.mrb[0].mxu0
      %2893 = vmatprep.mubr.f32.mxu0 0.0
      %2894 = vmatmul.mubr.f32.gmra.mrb[0].mxu0 %v2706
      %v2895 = vpop.f32.mrb[0].mxu0
      %v2896 = vadd.f32 %v2662, %v2895
      %v2897 = vpop.f32.mrb[0].mxu0
      %2898 = vmatprep.mubr.f32.mxu0 0.0
      %2899 = vmatmul.mubr.f32.gmra.mrb[0].mxu0 %v2709
      %v2900 = vpop.f32.mrb[0].mxu0
      %v2901 = vadd.f32 %v2662, %v2900
      %v2902 = vpop.f32.mrb[0].mxu0
      %2903 = vmatprep.mubr.f32.mxu0 0.0
      %2904 = vmatmul.mubr.f32.gmra.mrb[0].mxu0 %v2712
      %v2905 = vpop.f32.mrb[0].mxu0
      %v2906 = vadd.f32 %v2662, %v2905
      %v2907 = vpop.f32.mrb[0].mxu0
      %2908 = vmatprep.mubr.f32.mxu0 0.0
      %2909 = vmatmul.mubr.f32.gmra.mrb[0].mxu0 %v2715
      %v2910 = vpop.f32.mrb[0].mxu0
      %v2911 = vadd.f32 %v2662, %v2910
      %v2912 = vpop.f32.mrb[0].mxu0
      %2913 = vmatprep.mubr.f32.mxu0 0.0
      %2914 = vmatmul.mubr.f32.gmra.mrb[0].mxu0 %v2718
      %v2915 = vpop.f32.mrb[0].mxu0
      %v2916 = vadd.f32 %v2662, %v2915
      %v2917 = vpop.f32.mrb[0].mxu0
      %2918 = vmatprep.mubr.f32.mxu0 0.0
      %2919 = vmatmul.mubr.f32.gmra.mrb[0].mxu0 %v2721
      %v2920 = vpop.f32.mrb[0].mxu0
      %v2921 = vadd.f32 %v2662, %v2920
      %v2922 = vpop.f32.mrb[0].mxu0
      %2923 = vmatprep.mubr.f32.mxu0 0.0
      %2924 = vmatmul.mubr.f32.gmra.mrb[0].mxu0 %v2724
      %v2925 = vpop.f32.mrb[0].mxu0
      %v2926 = vadd.f32 %v2662, %v2925
      %v2927 = vpop.f32.mrb[0].mxu0
      %2928 = vmatprep.mubr.f32.mxu0 0.0
      %2929 = vmatmul.mubr.f32.gmra.mrb[0].mxu0 %v2727
      %v2930 = vpop.f32.mrb[0].mxu0
      %v2931 = vadd.f32 %v2662, %v2930
      %v2932 = vpop.f32.mrb[0].mxu0
      %2933 = vmatprep.mubr.f32.mxu0 0.0
      %2934 = vmatmul.mubr.f32.gmra.mrb[0].mxu0 %v2730
      %v2935 = vpop.f32.mrb[0].mxu0
      %v2936 = vadd.f32 %v2662, %v2935
      %v2937 = vpop.f32.mrb[0].mxu0
      %2938 = vmatprep.mubr.f32.mxu0 0.0
      %2939 = vmatmul.mubr.f32.gmra.mrb[0].mxu0 %v2733
      %v2940 = vpop.f32.mrb[0].mxu0
      %v2941 = vadd.f32 %v2662, %v2940
      %v2942 = vpop.f32.mrb[0].mxu0
      %2943 = vmatprep.mubr.f32.mxu0 0.0
      %2944 = vmatmul.mubr.f32.gmra.mrb[0].mxu0 %v2736
      %v2945 = vpop.f32.mrb[0].mxu0
      %v2946 = vadd.f32 %v2662, %v2945
      %v2947 = vpop.f32.mrb[0].mxu0
      %2948 = vmatprep.mubr.f32.mxu0 0.0
      %2949 = vmatmul.mubr.f32.gmra.mrb[0].mxu0 %v2739
      %v2950 = vpop.f32.mrb[0].mxu0
      %v2951 = vadd.f32 %v2662, %v2950
      %v2952 = vpop.f32.mrb[0].mxu0
      %2953 = vmatprep.mubr.f32.mxu0 0.0
      %2954 = vmatmul.mubr.f32.gmra.mrb[0].mxu0 %v2742
      %v2955 = vpop.f32.mrb[0].mxu0
      %v2956 = vadd.f32 %v2662, %v2955
      %v2957 = vpop.f32.mrb[0].mxu0
      %2958 = vmatprep.mubr.f32.mxu0 0.0
      %2959 = vmatmul.mubr.f32.gmra.mrb[0].mxu0 %v2745
      %v2960 = vpop.f32.mrb[0].mxu0
      %v2961 = vadd.f32 %v2662, %v2960
      %v2962 = vpop.f32.mrb[0].mxu0
      %2963 = vmatprep.mubr.f32.mxu0 0.0
      %2964 = vmatmul.mubr.f32.gmra.mrb[0].mxu0 %v2748
      %v2965 = vpop.f32.mrb[0].mxu0
      %v2966 = vadd.f32 %v2662, %v2965
      %v2967 = vpop.f32.mrb[0].mxu0
      %2968 = vmatprep.mubr.f32.mxu0 0.0
      %2969 = vmatmul.mubr.f32.gmra.mrb[0].mxu0 %v2751
      %v2970 = vpop.f32.mrb[0].mxu0
      %v2971 = vadd.f32 %v2662, %v2970
      %v2972 = vpop.f32.mrb[0].mxu0
      %2973 = vmatprep.mubr.f32.mxu0 0.0
      %2974 = vmatmul.mubr.f32.gmra.mrb[0].mxu0 %v2754
      %v2975 = vpop.f32.mrb[0].mxu0
      %v2976 = vadd.f32 %v2662, %v2975
      %v2977 = vpop.f32.mrb[0].mxu0
      %2978 = vmatprep.mubr.f32.mxu0 0.0
      %2979 = vmatmul.mubr.f32.gmra.mrb[0].mxu0 %v2757
      %v2980 = vpop.f32.mrb[0].mxu0
      %v2981 = vadd.f32 %v2662, %v2980
      %v2982 = vpop.f32.mrb[0].mxu0
      %2983 = vdwg.mxu0
      %v2984 = vmax.f32 %v2826, 0.0
      %v2985 = vmax.f32 %v2831, 0.0
      %v2986 = vmax.f32 %v2836, 0.0
      %v2987 = vmax.f32 %v2841, 0.0
      %v2988 = vmax.f32 %v2846, 0.0
      %v2989 = vmax.f32 %v2851, 0.0
      %v2990 = vmax.f32 %v2856, 0.0
      %v2991 = vmax.f32 %v2861, 0.0
      %v2992 = vmax.f32 %v2866, 0.0
      %v2993 = vmax.f32 %v2871, 0.0
      %v2994 = vmax.f32 %v2876, 0.0
      %v2995 = vmax.f32 %v2881, 0.0
      %v2996 = vmax.f32 %v2886, 0.0
      %v2997 = vmax.f32 %v2891, 0.0
      %v2998 = vmax.f32 %v2896, 0.0
      %v2999 = vmax.f32 %v2901, 0.0
      %v3000 = vmax.f32 %v2906, 0.0
      %v3001 = vmax.f32 %v2911, 0.0
      %v3002 = vmax.f32 %v2916, 0.0
      %v3003 = vmax.f32 %v2921, 0.0
      %v3004 = vmax.f32 %v2926, 0.0
      %v3005 = vmax.f32 %v2931, 0.0
      %v3006 = vmax.f32 %v2936, 0.0
      %v3007 = vmax.f32 %v2941, 0.0
      %v3008 = vmax.f32 %v2946, 0.0
      %v3009 = vmax.f32 %v2951, 0.0
      %v3010 = vmax.f32 %v2956, 0.0
      %v3011 = vmax.f32 %v2961, 0.0
      %v3012 = vmax.f32 %v2966, 0.0
      %v3013 = vmax.f32 %v2971, 0.0
      %v3014 = vmax.f32 %v2976, 0.0
      %v3015 = vmax.f32 %v2981, 0.0
      %v3016 = vld [vmem:[%s3 + $0x38] sm:$0xff]
      %v3017 = vld [vmem:[%s3 + $0x40] sm:$0xff]
      %v3018 = vld [vmem:[%s3 + $0x48] sm:$0xff]
      %v3019 = vld [vmem:[%s3 + $0x50] sm:$0xff]
      %v3020 = vld [vmem:[%s3 + $0x58] sm:$0xff]
      %v3021 = vld [vmem:[%s3 + $0x60] sm:$0xff]
      %v3022 = vld [vmem:[%s3 + $0x68] sm:$0xff]
      %v3023 = vld [vmem:[%s3 + $0x70] sm:$0xff]
      %v3024 = vld [vmem:[%s3 + $0x78] sm:$0xff]
      %v3025 = vld [vmem:[%s3 + $0x80] sm:$0xff]
      %v3026 = vld [vmem:[%s3 + $0x88] sm:$0xff]
      %v3027 = vld [vmem:[%s3 + $0x90] sm:$0xff]
      %v3028 = vld [vmem:[%s3 + $0x98] sm:$0xff]
      %v3029 = vld [vmem:[%s3 + $0xa0] sm:$0xff]
      %v3030 = vld [vmem:[%s3 + $0xa8] sm:$0xff]
      %v3031 = vld [vmem:[%s3 + $0xb0] sm:$0xff]
      %v3032 = vlaneseq
      %v3033 = vshrl.u32 %v3032, 7
      %v3034 = vsub.s32 2, %v3033
      %v3035 = vrot.slane %v396, %v3034
      %3036 = vmatprep.subr.mxu0 0.0
      %3037 = vmatpush1.msra.mxu0 %v3016
      %3038 = vmatprep.subr.mxu0 0.0
      %3039 = vmatpush1.msra.mxu0 %v3017
      %3040 = vmatprep.subr.mxu0 0.0
      %3041 = vmatpush1.msra.mxu0 %v3018
      %3042 = vmatprep.subr.mxu0 0.0
      %3043 = vmatpush1.msra.mxu0 %v3019
      %3044 = vmatprep.subr.mxu0 0.0
      %3045 = vmatpush1.msra.mxu0 %v3020
      %3046 = vmatprep.subr.mxu0 0.0
      %3047 = vmatpush1.msra.mxu0 %v3021
      %3048 = vmatprep.subr.mxu0 0.0
      %3049 = vmatpush1.msra.mxu0 %v3022
      %3050 = vmatprep.subr.mxu0 0.0
      %3051 = vmatpush1.msra.mxu0 %v3023
      %3052 = vmatprep.subr.mxu0 0.0
      %3053 = vmatpush1.msra.mxu0 %v3024
      %3054 = vmatprep.subr.mxu0 0.0
      %3055 = vmatpush1.msra.mxu0 %v3025
      %3056 = vmatprep.subr.mxu0 0.0
      %3057 = vmatpush1.msra.mxu0 %v3026
      %3058 = vmatprep.subr.mxu0 0.0
      %3059 = vmatpush1.msra.mxu0 %v3027
      %3060 = vmatprep.subr.mxu0 0.0
      %3061 = vmatpush1.msra.mxu0 %v3028
      %3062 = vmatprep.subr.mxu0 0.0
      %3063 = vmatpush1.msra.mxu0 %v3029
      %3064 = vmatprep.subr.mxu0 0.0
      %3065 = vmatpush1.msra.mxu0 %v3030
      %3066 = vmatprep.subr.mxu0 0.0
      %3067 = vmatpush1.msra.mxu0 %v3031
      %3068 = vmatprep.subr.mxu0 0.0
      %3069 = vmatpush1.msra.mxu0 0.0
      %3070 = vmatprep.subr.mxu0 0.0
      %3071 = vmatpush1.msra.mxu0 0.0
      %3072 = vmatprep.subr.mxu0 0.0
      %3073 = vmatpush1.msra.mxu0 0.0
      %3074 = vmatprep.subr.mxu0 0.0
      %3075 = vmatpush1.msra.mxu0 0.0
      %3076 = vmatprep.subr.mxu0 0.0
      %3077 = vmatpush1.msra.mxu0 0.0
      %3078 = vmatprep.subr.mxu0 0.0
      %3079 = vmatpush1.msra.mxu0 0.0
      %3080 = vmatprep.subr.mxu0 0.0
      %3081 = vmatpush1.msra.mxu0 0.0
      %3082 = vmatprep.subr.mxu0 0.0
      %3083 = vmatpush1.msra.mxu0 0.0
      %3084 = vmatprep.subr.mxu0 0.0
      %3085 = vmatpush1.msra.mxu0 0.0
      %3086 = vmatprep.subr.mxu0 0.0
      %3087 = vmatpush1.msra.mxu0 0.0
      %3088 = vmatprep.subr.mxu0 0.0
      %3089 = vmatpush1.msra.mxu0 0.0
      %3090 = vmatprep.subr.mxu0 0.0
      %3091 = vmatpush1.msra.mxu0 0.0
      %3092 = vmatprep.subr.mxu0 0.0
      %3093 = vmatpush1.msra.mxu0 0.0
      %3094 = vmatprep.subr.mxu0 0.0
      %3095 = vmatpush1.msra.mxu0 0.0
      %3096 = vmatprep.subr.mxu0 0.0
      %3097 = vmatpush1.msra.mxu0 0.0
      %3098 = vmatprep.subr.mxu0 0.0
      %3099 = vmatpush1.msra.mxu0 0.0
      %3100 = vmatprep.mubr.f32.mxu0 0.0
      %3101 = vmatmul.mubr.f32.gmra.mrb[0].mxu0 %v2984
      %v3102 = vpop.f32.mrb[0].mxu0
      %v3103 = vadd.f32 %v3035, %v3102
      %v3104 = vpop.f32.mrb[0].mxu0
      %3105 = vmatprep.mubr.f32.mxu0 0.0
      %3106 = vmatmul.mubr.f32.gmra.mrb[0].mxu0 %v2985
      %v3107 = vpop.f32.mrb[0].mxu0
      %v3108 = vadd.f32 %v3035, %v3107
      %v3109 = vpop.f32.mrb[0].mxu0
      %3110 = vmatprep.mubr.f32.mxu0 0.0
      %3111 = vmatmul.mubr.f32.gmra.mrb[0].mxu0 %v2986
      %v3112 = vpop.f32.mrb[0].mxu0
      %v3113 = vadd.f32 %v3035, %v3112
      %v3114 = vpop.f32.mrb[0].mxu0
      %3115 = vmatprep.mubr.f32.mxu0 0.0
      %3116 = vmatmul.mubr.f32.gmra.mrb[0].mxu0 %v2987
      %v3117 = vpop.f32.mrb[0].mxu0
      %v3118 = vadd.f32 %v3035, %v3117
      %v3119 = vpop.f32.mrb[0].mxu0
      %3120 = vmatprep.mubr.f32.mxu0 0.0
      %3121 = vmatmul.mubr.f32.gmra.mrb[0].mxu0 %v2988
      %v3122 = vpop.f32.mrb[0].mxu0
      %v3123 = vadd.f32 %v3035, %v3122
      %v3124 = vpop.f32.mrb[0].mxu0
      %3125 = vmatprep.mubr.f32.mxu0 0.0
      %3126 = vmatmul.mubr.f32.gmra.mrb[0].mxu0 %v2989
      %v3127 = vpop.f32.mrb[0].mxu0
      %v3128 = vadd.f32 %v3035, %v3127
      %v3129 = vpop.f32.mrb[0].mxu0
      %3130 = vmatprep.mubr.f32.mxu0 0.0
      %3131 = vmatmul.mubr.f32.gmra.mrb[0].mxu0 %v2990
      %v3132 = vpop.f32.mrb[0].mxu0
      %v3133 = vadd.f32 %v3035, %v3132
      %v3134 = vpop.f32.mrb[0].mxu0
      %3135 = vmatprep.mubr.f32.mxu0 0.0
      %3136 = vmatmul.mubr.f32.gmra.mrb[0].mxu0 %v2991
      %v3137 = vpop.f32.mrb[0].mxu0
      %v3138 = vadd.f32 %v3035, %v3137
      %v3139 = vpop.f32.mrb[0].mxu0
      %3140 = vmatprep.mubr.f32.mxu0 0.0
      %3141 = vmatmul.mubr.f32.gmra.mrb[0].mxu0 %v2992
      %v3142 = vpop.f32.mrb[0].mxu0
      %v3143 = vadd.f32 %v3035, %v3142
      %v3144 = vpop.f32.mrb[0].mxu0
      %3145 = vmatprep.mubr.f32.mxu0 0.0
      %3146 = vmatmul.mubr.f32.gmra.mrb[0].mxu0 %v2993
      %v3147 = vpop.f32.mrb[0].mxu0
      %v3148 = vadd.f32 %v3035, %v3147
      %v3149 = vpop.f32.mrb[0].mxu0
      %3150 = vmatprep.mubr.f32.mxu0 0.0
      %3151 = vmatmul.mubr.f32.gmra.mrb[0].mxu0 %v2994
      %v3152 = vpop.f32.mrb[0].mxu0
      %v3153 = vadd.f32 %v3035, %v3152
      %v3154 = vpop.f32.mrb[0].mxu0
      %3155 = vmatprep.mubr.f32.mxu0 0.0
      %3156 = vmatmul.mubr.f32.gmra.mrb[0].mxu0 %v2995
      %v3157 = vpop.f32.mrb[0].mxu0
      %v3158 = vadd.f32 %v3035, %v3157
      %v3159 = vpop.f32.mrb[0].mxu0
      %3160 = vmatprep.mubr.f32.mxu0 0.0
      %3161 = vmatmul.mubr.f32.gmra.mrb[0].mxu0 %v2996
      %v3162 = vpop.f32.mrb[0].mxu0
      %v3163 = vadd.f32 %v3035, %v3162
      %v3164 = vpop.f32.mrb[0].mxu0
      %3165 = vmatprep.mubr.f32.mxu0 0.0
      %3166 = vmatmul.mubr.f32.gmra.mrb[0].mxu0 %v2997
      %v3167 = vpop.f32.mrb[0].mxu0
      %v3168 = vadd.f32 %v3035, %v3167
      %v3169 = vpop.f32.mrb[0].mxu0
      %3170 = vmatprep.mubr.f32.mxu0 0.0
      %3171 = vmatmul.mubr.f32.gmra.mrb[0].mxu0 %v2998
      %v3172 = vpop.f32.mrb[0].mxu0
      %v3173 = vadd.f32 %v3035, %v3172
      %v3174 = vpop.f32.mrb[0].mxu0
      %3175 = vmatprep.mubr.f32.mxu0 0.0
      %3176 = vmatmul.mubr.f32.gmra.mrb[0].mxu0 %v2999
      %v3177 = vpop.f32.mrb[0].mxu0
      %v3178 = vadd.f32 %v3035, %v3177
      %v3179 = vpop.f32.mrb[0].mxu0
      %3180 = vmatprep.mubr.f32.mxu0 0.0
      %3181 = vmatmul.mubr.f32.gmra.mrb[0].mxu0 %v3000
      %v3182 = vpop.f32.mrb[0].mxu0
      %v3183 = vadd.f32 %v3035, %v3182
      %v3184 = vpop.f32.mrb[0].mxu0
      %3185 = vmatprep.mubr.f32.mxu0 0.0
      %3186 = vmatmul.mubr.f32.gmra.mrb[0].mxu0 %v3001
      %v3187 = vpop.f32.mrb[0].mxu0
      %v3188 = vadd.f32 %v3035, %v3187
      %v3189 = vpop.f32.mrb[0].mxu0
      %3190 = vmatprep.mubr.f32.mxu0 0.0
      %3191 = vmatmul.mubr.f32.gmra.mrb[0].mxu0 %v3002
      %v3192 = vpop.f32.mrb[0].mxu0
      %v3193 = vadd.f32 %v3035, %v3192
      %v3194 = vpop.f32.mrb[0].mxu0
      %3195 = vmatprep.mubr.f32.mxu0 0.0
      %3196 = vmatmul.mubr.f32.gmra.mrb[0].mxu0 %v3003
      %v3197 = vpop.f32.mrb[0].mxu0
      %v3198 = vadd.f32 %v3035, %v3197
      %v3199 = vpop.f32.mrb[0].mxu0
      %3200 = vmatprep.mubr.f32.mxu0 0.0
      %3201 = vmatmul.mubr.f32.gmra.mrb[0].mxu0 %v3004
      %v3202 = vpop.f32.mrb[0].mxu0
      %v3203 = vadd.f32 %v3035, %v3202
      %v3204 = vpop.f32.mrb[0].mxu0
      %3205 = vmatprep.mubr.f32.mxu0 0.0
      %3206 = vmatmul.mubr.f32.gmra.mrb[0].mxu0 %v3005
      %v3207 = vpop.f32.mrb[0].mxu0
      %v3208 = vadd.f32 %v3035, %v3207
      %v3209 = vpop.f32.mrb[0].mxu0
      %3210 = vmatprep.mubr.f32.mxu0 0.0
      %3211 = vmatmul.mubr.f32.gmra.mrb[0].mxu0 %v3006
      %v3212 = vpop.f32.mrb[0].mxu0
      %v3213 = vadd.f32 %v3035, %v3212
      %v3214 = vpop.f32.mrb[0].mxu0
      %3215 = vmatprep.mubr.f32.mxu0 0.0
      %3216 = vmatmul.mubr.f32.gmra.mrb[0].mxu0 %v3007
      %v3217 = vpop.f32.mrb[0].mxu0
      %v3218 = vadd.f32 %v3035, %v3217
      %v3219 = vpop.f32.mrb[0].mxu0
      %3220 = vmatprep.mubr.f32.mxu0 0.0
      %3221 = vmatmul.mubr.f32.gmra.mrb[0].mxu0 %v3008
      %v3222 = vpop.f32.mrb[0].mxu0
      %v3223 = vadd.f32 %v3035, %v3222
      %v3224 = vpop.f32.mrb[0].mxu0
      %3225 = vmatprep.mubr.f32.mxu0 0.0
      %3226 = vmatmul.mubr.f32.gmra.mrb[0].mxu0 %v3009
      %v3227 = vpop.f32.mrb[0].mxu0
      %v3228 = vadd.f32 %v3035, %v3227
      %v3229 = vpop.f32.mrb[0].mxu0
      %3230 = vmatprep.mubr.f32.mxu0 0.0
      %3231 = vmatmul.mubr.f32.gmra.mrb[0].mxu0 %v3010
      %v3232 = vpop.f32.mrb[0].mxu0
      %v3233 = vadd.f32 %v3035, %v3232
      %v3234 = vpop.f32.mrb[0].mxu0
      %3235 = vmatprep.mubr.f32.mxu0 0.0
      %3236 = vmatmul.mubr.f32.gmra.mrb[0].mxu0 %v3011
      %v3237 = vpop.f32.mrb[0].mxu0
      %v3238 = vadd.f32 %v3035, %v3237
      %v3239 = vpop.f32.mrb[0].mxu0
      %3240 = vmatprep.mubr.f32.mxu0 0.0
      %3241 = vmatmul.mubr.f32.gmra.mrb[0].mxu0 %v3012
      %v3242 = vpop.f32.mrb[0].mxu0
      %v3243 = vadd.f32 %v3035, %v3242
      %v3244 = vpop.f32.mrb[0].mxu0
      %3245 = vmatprep.mubr.f32.mxu0 0.0
      %3246 = vmatmul.mubr.f32.gmra.mrb[0].mxu0 %v3013
      %v3247 = vpop.f32.mrb[0].mxu0
      %v3248 = vadd.f32 %v3035, %v3247
      %v3249 = vpop.f32.mrb[0].mxu0
      %3250 = vmatprep.mubr.f32.mxu0 0.0
      %3251 = vmatmul.mubr.f32.gmra.mrb[0].mxu0 %v3014
      %v3252 = vpop.f32.mrb[0].mxu0
      %v3253 = vadd.f32 %v3035, %v3252
      %v3254 = vpop.f32.mrb[0].mxu0
      %3255 = vmatprep.mubr.f32.mxu0 0.0
      %3256 = vmatmul.mubr.f32.gmra.mrb[0].mxu0 %v3015
      %v3257 = vpop.f32.mrb[0].mxu0
      %v3258 = vadd.f32 %v3035, %v3257
      %v3259 = vpop.f32.mrb[0].mxu0
      %3260 = vdwg.mxu0
      %v3261 = vadd.f32 %v2622, %v3103
      %v3262 = vadd.f32 %v2623, %v3108
      %v3263 = vadd.f32 %v2624, %v3113
      %v3264 = vadd.f32 %v2625, %v3118
      %v3265 = vadd.f32 %v2626, %v3123
      %v3266 = vadd.f32 %v2627, %v3128
      %v3267 = vadd.f32 %v2628, %v3133
      %v3268 = vadd.f32 %v2629, %v3138
      %v3269 = vadd.f32 %v2630, %v3143
      %v3270 = vadd.f32 %v2631, %v3148
      %v3271 = vadd.f32 %v2632, %v3153
      %v3272 = vadd.f32 %v2633, %v3158
      %v3273 = vadd.f32 %v2634, %v3163
      %v3274 = vadd.f32 %v2635, %v3168
      %v3275 = vadd.f32 %v2636, %v3173
      %v3276 = vadd.f32 %v2637, %v3178
      %v3277 = vadd.f32 %v2638, %v3183
      %v3278 = vadd.f32 %v2639, %v3188
      %v3279 = vadd.f32 %v2640, %v3193
      %v3280 = vadd.f32 %v2641, %v3198
      %v3281 = vadd.f32 %v2642, %v3203
      %v3282 = vadd.f32 %v2643, %v3208
      %v3283 = vadd.f32 %v2644, %v3213
      %v3284 = vadd.f32 %v2645, %v3218
      %v3285 = vadd.f32 %v2646, %v3223
      %v3286 = vadd.f32 %v2647, %v3228
      %v3287 = vadd.f32 %v2648, %v3233
      %v3288 = vadd.f32 %v2649, %v3238
      %v3289 = vadd.f32 %v2650, %v3243
      %v3290 = vadd.f32 %v2651, %v3248
      %v3291 = vadd.f32 %v2652, %v3253
      %v3292 = vadd.f32 %v2653, %v3258
      %v3293 = vsel %vm964, %v3261, 0.0
      %3294 = vadd.xlane.f32.xlu0 %v3293
      %v3295 = vpop.xlane.xlu0 %3294
      %v3296 = vsel %vm964, %v3262, 0.0
      %3297 = vadd.xlane.f32.xlu0 %v3296
      %v3298 = vpop.xlane.xlu0 %3297
      %v3299 = vsel %vm964, %v3263, 0.0
      %3300 = vadd.xlane.f32.xlu0 %v3299
      %v3301 = vpop.xlane.xlu0 %3300
      %v3302 = vsel %vm964, %v3264, 0.0
      %3303 = vadd.xlane.f32.xlu0 %v3302
      %v3304 = vpop.xlane.xlu0 %3303
      %v3305 = vsel %vm964, %v3265, 0.0
      %3306 = vadd.xlane.f32.xlu0 %v3305
      %v3307 = vpop.xlane.xlu0 %3306
      %v3308 = vsel %vm964, %v3266, 0.0
      %3309 = vadd.xlane.f32.xlu0 %v3308
      %v3310 = vpop.xlane.xlu0 %3309
      %v3311 = vsel %vm964, %v3267, 0.0
      %3312 = vadd.xlane.f32.xlu0 %v3311
      %v3313 = vpop.xlane.xlu0 %3312
      %v3314 = vsel %vm964, %v3268, 0.0
      %3315 = vadd.xlane.f32.xlu0 %v3314
      %v3316 = vpop.xlane.xlu0 %3315
      %v3317 = vsel %vm964, %v3269, 0.0
      %3318 = vadd.xlane.f32.xlu0 %v3317
      %v3319 = vpop.xlane.xlu0 %3318
      %v3320 = vsel %vm964, %v3270, 0.0
      %3321 = vadd.xlane.f32.xlu0 %v3320
      %v3322 = vpop.xlane.xlu0 %3321
      %v3323 = vsel %vm964, %v3271, 0.0
      %3324 = vadd.xlane.f32.xlu0 %v3323
      %v3325 = vpop.xlane.xlu0 %3324
      %v3326 = vsel %vm964, %v3272, 0.0
      %3327 = vadd.xlane.f32.xlu0 %v3326
      %v3328 = vpop.xlane.xlu0 %3327
      %v3329 = vsel %vm964, %v3273, 0.0
      %3330 = vadd.xlane.f32.xlu0 %v3329
      %v3331 = vpop.xlane.xlu0 %3330
      %v3332 = vsel %vm964, %v3274, 0.0
      %3333 = vadd.xlane.f32.xlu0 %v3332
      %v3334 = vpop.xlane.xlu0 %3333
      %v3335 = vsel %vm964, %v3275, 0.0
      %3336 = vadd.xlane.f32.xlu0 %v3335
      %v3337 = vpop.xlane.xlu0 %3336
      %v3338 = vsel %vm964, %v3276, 0.0
      %3339 = vadd.xlane.f32.xlu0 %v3338
      %v3340 = vpop.xlane.xlu0 %3339
      %v3341 = vsel %vm964, %v3277, 0.0
      %3342 = vadd.xlane.f32.xlu0 %v3341
      %v3343 = vpop.xlane.xlu0 %3342
      %v3344 = vsel %vm964, %v3278, 0.0
      %3345 = vadd.xlane.f32.xlu0 %v3344
      %v3346 = vpop.xlane.xlu0 %3345
      %v3347 = vsel %vm964, %v3279, 0.0
      %3348 = vadd.xlane.f32.xlu0 %v3347
      %v3349 = vpop.xlane.xlu0 %3348
      %v3350 = vsel %vm964, %v3280, 0.0
      %3351 = vadd.xlane.f32.xlu0 %v3350
      %v3352 = vpop.xlane.xlu0 %3351
      %v3353 = vsel %vm964, %v3281, 0.0
      %3354 = vadd.xlane.f32.xlu0 %v3353
      %v3355 = vpop.xlane.xlu0 %3354
      %v3356 = vsel %vm964, %v3282, 0.0
      %3357 = vadd.xlane.f32.xlu0 %v3356
      %v3358 = vpop.xlane.xlu0 %3357
      %v3359 = vsel %vm964, %v3283, 0.0
      %3360 = vadd.xlane.f32.xlu0 %v3359
      %v3361 = vpop.xlane.xlu0 %3360
      %v3362 = vsel %vm964, %v3284, 0.0
      %3363 = vadd.xlane.f32.xlu0 %v3362
      %v3364 = vpop.xlane.xlu0 %3363
      %v3365 = vsel %vm964, %v3285, 0.0
      %3366 = vadd.xlane.f32.xlu0 %v3365
      %v3367 = vpop.xlane.xlu0 %3366
      %v3368 = vsel %vm964, %v3286, 0.0
      %3369 = vadd.xlane.f32.xlu0 %v3368
      %v3370 = vpop.xlane.xlu0 %3369
      %v3371 = vsel %vm964, %v3287, 0.0
      %3372 = vadd.xlane.f32.xlu0 %v3371
      %v3373 = vpop.xlane.xlu0 %3372
      %v3374 = vsel %vm964, %v3288, 0.0
      %3375 = vadd.xlane.f32.xlu0 %v3374
      %v3376 = vpop.xlane.xlu0 %3375
      %v3377 = vsel %vm964, %v3289, 0.0
      %3378 = vadd.xlane.f32.xlu0 %v3377
      %v3379 = vpop.xlane.xlu0 %3378
      %v3380 = vsel %vm964, %v3290, 0.0
      %3381 = vadd.xlane.f32.xlu0 %v3380
      %v3382 = vpop.xlane.xlu0 %3381
      %v3383 = vsel %vm964, %v3291, 0.0
      %3384 = vadd.xlane.f32.xlu0 %v3383
      %v3385 = vpop.xlane.xlu0 %3384
      %v3386 = vsel %vm964, %v3292, 0.0
      %3387 = vadd.xlane.f32.xlu0 %v3386
      %v3388 = vpop.xlane.xlu0 %3387
      %v3389 = vmul.f32 %v3295, %v1414
      %v3390 = vmul.f32 %v3298, %v1414
      %v3391 = vmul.f32 %v3301, %v1414
      %v3392 = vmul.f32 %v3304, %v1414
      %v3393 = vmul.f32 %v3307, %v1414
      %v3394 = vmul.f32 %v3310, %v1414
      %v3395 = vmul.f32 %v3313, %v1414
      %v3396 = vmul.f32 %v3316, %v1414
      %v3397 = vmul.f32 %v3319, %v1414
      %v3398 = vmul.f32 %v3322, %v1414
      %v3399 = vmul.f32 %v3325, %v1414
      %v3400 = vmul.f32 %v3328, %v1414
      %v3401 = vmul.f32 %v3331, %v1414
      %v3402 = vmul.f32 %v3334, %v1414
      %v3403 = vmul.f32 %v3337, %v1414
      %v3404 = vmul.f32 %v3340, %v1414
      %v3405 = vmul.f32 %v3343, %v1414
      %v3406 = vmul.f32 %v3346, %v1414
      %v3407 = vmul.f32 %v3349, %v1414
      %v3408 = vmul.f32 %v3352, %v1414
      %v3409 = vmul.f32 %v3355, %v1414
      %v3410 = vmul.f32 %v3358, %v1414
      %v3411 = vmul.f32 %v3361, %v1414
      %v3412 = vmul.f32 %v3364, %v1414
      %v3413 = vmul.f32 %v3367, %v1414
      %v3414 = vmul.f32 %v3370, %v1414
      %v3415 = vmul.f32 %v3373, %v1414
      %v3416 = vmul.f32 %v3376, %v1414
      %v3417 = vmul.f32 %v3379, %v1414
      %v3418 = vmul.f32 %v3382, %v1414
      %v3419 = vmul.f32 %v3385, %v1414
      %v3420 = vmul.f32 %v3388, %v1414
      %v3421 = vsub.f32 %v3261, %v3389
      %v3422 = vsub.f32 %v3262, %v3390
      %v3423 = vsub.f32 %v3263, %v3391
      %v3424 = vsub.f32 %v3264, %v3392
      %v3425 = vsub.f32 %v3265, %v3393
      %v3426 = vsub.f32 %v3266, %v3394
      %v3427 = vsub.f32 %v3267, %v3395
      %v3428 = vsub.f32 %v3268, %v3396
      %v3429 = vsub.f32 %v3269, %v3397
      %v3430 = vsub.f32 %v3270, %v3398
      %v3431 = vsub.f32 %v3271, %v3399
      %v3432 = vsub.f32 %v3272, %v3400
      %v3433 = vsub.f32 %v3273, %v3401
      %v3434 = vsub.f32 %v3274, %v3402
      %v3435 = vsub.f32 %v3275, %v3403
      %v3436 = vsub.f32 %v3276, %v3404
      %v3437 = vsub.f32 %v3277, %v3405
      %v3438 = vsub.f32 %v3278, %v3406
      %v3439 = vsub.f32 %v3279, %v3407
      %v3440 = vsub.f32 %v3280, %v3408
      %v3441 = vsub.f32 %v3281, %v3409
      %v3442 = vsub.f32 %v3282, %v3410
      %v3443 = vsub.f32 %v3283, %v3411
      %v3444 = vsub.f32 %v3284, %v3412
      %v3445 = vsub.f32 %v3285, %v3413
      %v3446 = vsub.f32 %v3286, %v3414
      %v3447 = vsub.f32 %v3287, %v3415
      %v3448 = vsub.f32 %v3288, %v3416
      %v3449 = vsub.f32 %v3289, %v3417
      %v3450 = vsub.f32 %v3290, %v3418
      %v3451 = vsub.f32 %v3291, %v3419
      %v3452 = vsub.f32 %v3292, %v3420
      %v3453 = vmul.f32 %v3421, %v3421
      %v3454 = vmul.f32 %v3422, %v3422
      %v3455 = vmul.f32 %v3423, %v3423
      %v3456 = vmul.f32 %v3424, %v3424
      %v3457 = vmul.f32 %v3425, %v3425
      %v3458 = vmul.f32 %v3426, %v3426
      %v3459 = vmul.f32 %v3427, %v3427
      %v3460 = vmul.f32 %v3428, %v3428
      %v3461 = vmul.f32 %v3429, %v3429
      %v3462 = vmul.f32 %v3430, %v3430
      %v3463 = vmul.f32 %v3431, %v3431
      %v3464 = vmul.f32 %v3432, %v3432
      %v3465 = vmul.f32 %v3433, %v3433
      %v3466 = vmul.f32 %v3434, %v3434
      %v3467 = vmul.f32 %v3435, %v3435
      %v3468 = vmul.f32 %v3436, %v3436
      %v3469 = vmul.f32 %v3437, %v3437
      %v3470 = vmul.f32 %v3438, %v3438
      %v3471 = vmul.f32 %v3439, %v3439
      %v3472 = vmul.f32 %v3440, %v3440
      %v3473 = vmul.f32 %v3441, %v3441
      %v3474 = vmul.f32 %v3442, %v3442
      %v3475 = vmul.f32 %v3443, %v3443
      %v3476 = vmul.f32 %v3444, %v3444
      %v3477 = vmul.f32 %v3445, %v3445
      %v3478 = vmul.f32 %v3446, %v3446
      %v3479 = vmul.f32 %v3447, %v3447
      %v3480 = vmul.f32 %v3448, %v3448
      %v3481 = vmul.f32 %v3449, %v3449
      %v3482 = vmul.f32 %v3450, %v3450
      %v3483 = vmul.f32 %v3451, %v3451
      %v3484 = vmul.f32 %v3452, %v3452
      %v3485 = vsel %vm964, %v3453, 0.0
      %3486 = vadd.xlane.f32.xlu0 %v3485
      %v3487 = vpop.xlane.xlu0 %3486
      %v3488 = vsel %vm964, %v3454, 0.0
      %3489 = vadd.xlane.f32.xlu0 %v3488
      %v3490 = vpop.xlane.xlu0 %3489
      %v3491 = vsel %vm964, %v3455, 0.0
      %3492 = vadd.xlane.f32.xlu0 %v3491
      %v3493 = vpop.xlane.xlu0 %3492
      %v3494 = vsel %vm964, %v3456, 0.0
      %3495 = vadd.xlane.f32.xlu0 %v3494
      %v3496 = vpop.xlane.xlu0 %3495
      %v3497 = vsel %vm964, %v3457, 0.0
      %3498 = vadd.xlane.f32.xlu0 %v3497
      %v3499 = vpop.xlane.xlu0 %3498
      %v3500 = vsel %vm964, %v3458, 0.0
      %3501 = vadd.xlane.f32.xlu0 %v3500
      %v3502 = vpop.xlane.xlu0 %3501
      %v3503 = vsel %vm964, %v3459, 0.0
      %3504 = vadd.xlane.f32.xlu0 %v3503
      %v3505 = vpop.xlane.xlu0 %3504
      %v3506 = vsel %vm964, %v3460, 0.0
      %3507 = vadd.xlane.f32.xlu0 %v3506
      %v3508 = vpop.xlane.xlu0 %3507
      %v3509 = vsel %vm964, %v3461, 0.0
      %3510 = vadd.xlane.f32.xlu0 %v3509
      %v3511 = vpop.xlane.xlu0 %3510
      %v3512 = vsel %vm964, %v3462, 0.0
      %3513 = vadd.xlane.f32.xlu0 %v3512
      %v3514 = vpop.xlane.xlu0 %3513
      %v3515 = vsel %vm964, %v3463, 0.0
      %3516 = vadd.xlane.f32.xlu0 %v3515
      %v3517 = vpop.xlane.xlu0 %3516
      %v3518 = vsel %vm964, %v3464, 0.0
      %3519 = vadd.xlane.f32.xlu0 %v3518
      %v3520 = vpop.xlane.xlu0 %3519
      %v3521 = vsel %vm964, %v3465, 0.0
      %3522 = vadd.xlane.f32.xlu0 %v3521
      %v3523 = vpop.xlane.xlu0 %3522
      %v3524 = vsel %vm964, %v3466, 0.0
      %3525 = vadd.xlane.f32.xlu0 %v3524
      %v3526 = vpop.xlane.xlu0 %3525
      %v3527 = vsel %vm964, %v3467, 0.0
      %3528 = vadd.xlane.f32.xlu0 %v3527
      %v3529 = vpop.xlane.xlu0 %3528
      %v3530 = vsel %vm964, %v3468, 0.0
      %3531 = vadd.xlane.f32.xlu0 %v3530
      %v3532 = vpop.xlane.xlu0 %3531
      %v3533 = vsel %vm964, %v3469, 0.0
      %3534 = vadd.xlane.f32.xlu0 %v3533
      %v3535 = vpop.xlane.xlu0 %3534
      %v3536 = vsel %vm964, %v3470, 0.0
      %3537 = vadd.xlane.f32.xlu0 %v3536
      %v3538 = vpop.xlane.xlu0 %3537
      %v3539 = vsel %vm964, %v3471, 0.0
      %3540 = vadd.xlane.f32.xlu0 %v3539
      %v3541 = vpop.xlane.xlu0 %3540
      %v3542 = vsel %vm964, %v3472, 0.0
      %3543 = vadd.xlane.f32.xlu0 %v3542
      %v3544 = vpop.xlane.xlu0 %3543
      %v3545 = vsel %vm964, %v3473, 0.0
      %3546 = vadd.xlane.f32.xlu0 %v3545
      %v3547 = vpop.xlane.xlu0 %3546
      %v3548 = vsel %vm964, %v3474, 0.0
      %3549 = vadd.xlane.f32.xlu0 %v3548
      %v3550 = vpop.xlane.xlu0 %3549
      %v3551 = vsel %vm964, %v3475, 0.0
      %3552 = vadd.xlane.f32.xlu0 %v3551
      %v3553 = vpop.xlane.xlu0 %3552
      %v3554 = vsel %vm964, %v3476, 0.0
      %3555 = vadd.xlane.f32.xlu0 %v3554
      %v3556 = vpop.xlane.xlu0 %3555
      %v3557 = vsel %vm964, %v3477, 0.0
      %3558 = vadd.xlane.f32.xlu0 %v3557
      %v3559 = vpop.xlane.xlu0 %3558
      %v3560 = vsel %vm964, %v3478, 0.0
      %3561 = vadd.xlane.f32.xlu0 %v3560
      %v3562 = vpop.xlane.xlu0 %3561
      %v3563 = vsel %vm964, %v3479, 0.0
      %3564 = vadd.xlane.f32.xlu0 %v3563
      %v3565 = vpop.xlane.xlu0 %3564
      %v3566 = vsel %vm964, %v3480, 0.0
      %3567 = vadd.xlane.f32.xlu0 %v3566
      %v3568 = vpop.xlane.xlu0 %3567
      %v3569 = vsel %vm964, %v3481, 0.0
      %3570 = vadd.xlane.f32.xlu0 %v3569
      %v3571 = vpop.xlane.xlu0 %3570
      %v3572 = vsel %vm964, %v3482, 0.0
      %3573 = vadd.xlane.f32.xlu0 %v3572
      %v3574 = vpop.xlane.xlu0 %3573
      %v3575 = vsel %vm964, %v3483, 0.0
      %3576 = vadd.xlane.f32.xlu0 %v3575
      %v3577 = vpop.xlane.xlu0 %3576
      %v3578 = vsel %vm964, %v3484, 0.0
      %3579 = vadd.xlane.f32.xlu0 %v3578
      %v3580 = vpop.xlane.xlu0 %3579
      %v3581 = vmul.f32 %v3487, %v1414
      %v3582 = vmul.f32 %v3490, %v1414
      %v3583 = vmul.f32 %v3493, %v1414
      %v3584 = vmul.f32 %v3496, %v1414
      %v3585 = vmul.f32 %v3499, %v1414
      %v3586 = vmul.f32 %v3502, %v1414
      %v3587 = vmul.f32 %v3505, %v1414
      %v3588 = vmul.f32 %v3508, %v1414
      %v3589 = vmul.f32 %v3511, %v1414
      %v3590 = vmul.f32 %v3514, %v1414
      %v3591 = vmul.f32 %v3517, %v1414
      %v3592 = vmul.f32 %v3520, %v1414
      %v3593 = vmul.f32 %v3523, %v1414
      %v3594 = vmul.f32 %v3526, %v1414
      %v3595 = vmul.f32 %v3529, %v1414
      %v3596 = vmul.f32 %v3532, %v1414
      %v3597 = vmul.f32 %v3535, %v1414
      %v3598 = vmul.f32 %v3538, %v1414
      %v3599 = vmul.f32 %v3541, %v1414
      %v3600 = vmul.f32 %v3544, %v1414
      %v3601 = vmul.f32 %v3547, %v1414
      %v3602 = vmul.f32 %v3550, %v1414
      %v3603 = vmul.f32 %v3553, %v1414
      %v3604 = vmul.f32 %v3556, %v1414
      %v3605 = vmul.f32 %v3559, %v1414
      %v3606 = vmul.f32 %v3562, %v1414
      %v3607 = vmul.f32 %v3565, %v1414
      %v3608 = vmul.f32 %v3568, %v1414
      %v3609 = vmul.f32 %v3571, %v1414
      %v3610 = vmul.f32 %v3574, %v1414
      %v3611 = vmul.f32 %v3577, %v1414
      %v3612 = vmul.f32 %v3580, %v1414
      %v3613 = vadd.f32 %v3581, 1e-05
      %v3614 = vadd.f32 %v3582, 1e-05
      %v3615 = vadd.f32 %v3583, 1e-05
      %v3616 = vadd.f32 %v3584, 1e-05
      %v3617 = vadd.f32 %v3585, 1e-05
      %v3618 = vadd.f32 %v3586, 1e-05
      %v3619 = vadd.f32 %v3587, 1e-05
      %v3620 = vadd.f32 %v3588, 1e-05
      %v3621 = vadd.f32 %v3589, 1e-05
      %v3622 = vadd.f32 %v3590, 1e-05
      %v3623 = vadd.f32 %v3591, 1e-05
      %v3624 = vadd.f32 %v3592, 1e-05
      %v3625 = vadd.f32 %v3593, 1e-05
      %v3626 = vadd.f32 %v3594, 1e-05
      %v3627 = vadd.f32 %v3595, 1e-05
      %v3628 = vadd.f32 %v3596, 1e-05
      %v3629 = vadd.f32 %v3597, 1e-05
      %v3630 = vadd.f32 %v3598, 1e-05
      %v3631 = vadd.f32 %v3599, 1e-05
      %v3632 = vadd.f32 %v3600, 1e-05
      %v3633 = vadd.f32 %v3601, 1e-05
      %v3634 = vadd.f32 %v3602, 1e-05
      %v3635 = vadd.f32 %v3603, 1e-05
      %v3636 = vadd.f32 %v3604, 1e-05
      %v3637 = vadd.f32 %v3605, 1e-05
      %v3638 = vadd.f32 %v3606, 1e-05
      %v3639 = vadd.f32 %v3607, 1e-05
      %v3640 = vadd.f32 %v3608, 1e-05
      %v3641 = vadd.f32 %v3609, 1e-05
      %v3642 = vadd.f32 %v3610, 1e-05
      %v3643 = vadd.f32 %v3611, 1e-05
      %v3644 = vadd.f32 %v3612, 1e-05
      %v3645 = vrsqrt.pop %v3613
      %v3646 = vrsqrt.pop %v3614
      %v3647 = vrsqrt.pop %v3615
      %v3648 = vrsqrt.pop %v3616
      %v3649 = vrsqrt.pop %v3617
      %v3650 = vrsqrt.pop %v3618
      %v3651 = vrsqrt.pop %v3619
      %v3652 = vrsqrt.pop %v3620
      %v3653 = vrsqrt.pop %v3621
      %v3654 = vrsqrt.pop %v3622
      %v3655 = vrsqrt.pop %v3623
      %v3656 = vrsqrt.pop %v3624
      %v3657 = vrsqrt.pop %v3625
      %v3658 = vrsqrt.pop %v3626
      %v3659 = vrsqrt.pop %v3627
      %v3660 = vrsqrt.pop %v3628
      %v3661 = vrsqrt.pop %v3629
      %v3662 = vrsqrt.pop %v3630
      %v3663 = vrsqrt.pop %v3631
      %v3664 = vrsqrt.pop %v3632
      %v3665 = vrsqrt.pop %v3633
      %v3666 = vrsqrt.pop %v3634
      %v3667 = vrsqrt.pop %v3635
      %v3668 = vrsqrt.pop %v3636
      %v3669 = vrsqrt.pop %v3637
      %v3670 = vrsqrt.pop %v3638
      %v3671 = vrsqrt.pop %v3639
      %v3672 = vrsqrt.pop %v3640
      %v3673 = vrsqrt.pop %v3641
      %v3674 = vrsqrt.pop %v3642
      %v3675 = vrsqrt.pop %v3643
      %v3676 = vrsqrt.pop %v3644
      %v3677 = vmul.f32 %v3421, %v3645
      %v3678 = vmul.f32 %v3422, %v3646
      %v3679 = vmul.f32 %v3423, %v3647
      %v3680 = vmul.f32 %v3424, %v3648
      %v3681 = vmul.f32 %v3425, %v3649
      %v3682 = vmul.f32 %v3426, %v3650
      %v3683 = vmul.f32 %v3427, %v3651
      %v3684 = vmul.f32 %v3428, %v3652
      %v3685 = vmul.f32 %v3429, %v3653
      %v3686 = vmul.f32 %v3430, %v3654
      %v3687 = vmul.f32 %v3431, %v3655
      %v3688 = vmul.f32 %v3432, %v3656
      %v3689 = vmul.f32 %v3433, %v3657
      %v3690 = vmul.f32 %v3434, %v3658
      %v3691 = vmul.f32 %v3435, %v3659
      %v3692 = vmul.f32 %v3436, %v3660
      %v3693 = vmul.f32 %v3437, %v3661
      %v3694 = vmul.f32 %v3438, %v3662
      %v3695 = vmul.f32 %v3439, %v3663
      %v3696 = vmul.f32 %v3440, %v3664
      %v3697 = vmul.f32 %v3441, %v3665
      %v3698 = vmul.f32 %v3442, %v3666
      %v3699 = vmul.f32 %v3443, %v3667
      %v3700 = vmul.f32 %v3444, %v3668
      %v3701 = vmul.f32 %v3445, %v3669
      %v3702 = vmul.f32 %v3446, %v3670
      %v3703 = vmul.f32 %v3447, %v3671
      %v3704 = vmul.f32 %v3448, %v3672
      %v3705 = vmul.f32 %v3449, %v3673
      %v3706 = vmul.f32 %v3450, %v3674
      %v3707 = vmul.f32 %v3451, %v3675
      %v3708 = vmul.f32 %v3452, %v3676
      %v3709 = vlaneseq
      %v3710 = vshrl.u32 %v3709, 7
      %v3711 = vsub.s32 0, %v3710
      %v3712 = vrot.slane %v396, %v3711
      %v3713 = vmul.f32 %v3677, %v3712
      %v3714 = vmul.f32 %v3678, %v3712
      %v3715 = vmul.f32 %v3679, %v3712
      %v3716 = vmul.f32 %v3680, %v3712
      %v3717 = vmul.f32 %v3681, %v3712
      %v3718 = vmul.f32 %v3682, %v3712
      %v3719 = vmul.f32 %v3683, %v3712
      %v3720 = vmul.f32 %v3684, %v3712
      %v3721 = vmul.f32 %v3685, %v3712
      %v3722 = vmul.f32 %v3686, %v3712
      %v3723 = vmul.f32 %v3687, %v3712
      %v3724 = vmul.f32 %v3688, %v3712
      %v3725 = vmul.f32 %v3689, %v3712
      %v3726 = vmul.f32 %v3690, %v3712
      %v3727 = vmul.f32 %v3691, %v3712
      %v3728 = vmul.f32 %v3692, %v3712
      %v3729 = vmul.f32 %v3693, %v3712
      %v3730 = vmul.f32 %v3694, %v3712
      %v3731 = vmul.f32 %v3695, %v3712
      %v3732 = vmul.f32 %v3696, %v3712
      %v3733 = vmul.f32 %v3697, %v3712
      %v3734 = vmul.f32 %v3698, %v3712
      %v3735 = vmul.f32 %v3699, %v3712
      %v3736 = vmul.f32 %v3700, %v3712
      %v3737 = vmul.f32 %v3701, %v3712
      %v3738 = vmul.f32 %v3702, %v3712
      %v3739 = vmul.f32 %v3703, %v3712
      %v3740 = vmul.f32 %v3704, %v3712
      %v3741 = vmul.f32 %v3705, %v3712
      %v3742 = vmul.f32 %v3706, %v3712
      %v3743 = vmul.f32 %v3707, %v3712
      %v3744 = vmul.f32 %v3708, %v3712
      %v3745 = vlaneseq
      %v3746 = vshrl.u32 %v3745, 7
      %v3747 = vsub.s32 1, %v3746
      %v3748 = vrot.slane %v396, %v3747
      %v3749 = vadd.f32 %v3713, %v3748
      %v3750 = vadd.f32 %v3714, %v3748
      %v3751 = vadd.f32 %v3715, %v3748
      %v3752 = vadd.f32 %v3716, %v3748
      %v3753 = vadd.f32 %v3717, %v3748
      %v3754 = vadd.f32 %v3718, %v3748
      %v3755 = vadd.f32 %v3719, %v3748
      %v3756 = vadd.f32 %v3720, %v3748
      %v3757 = vadd.f32 %v3721, %v3748
      %v3758 = vadd.f32 %v3722, %v3748
      %v3759 = vadd.f32 %v3723, %v3748
      %v3760 = vadd.f32 %v3724, %v3748
      %v3761 = vadd.f32 %v3725, %v3748
      %v3762 = vadd.f32 %v3726, %v3748
      %v3763 = vadd.f32 %v3727, %v3748
      %v3764 = vadd.f32 %v3728, %v3748
      %v3765 = vadd.f32 %v3729, %v3748
      %v3766 = vadd.f32 %v3730, %v3748
      %v3767 = vadd.f32 %v3731, %v3748
      %v3768 = vadd.f32 %v3732, %v3748
      %v3769 = vadd.f32 %v3733, %v3748
      %v3770 = vadd.f32 %v3734, %v3748
      %v3771 = vadd.f32 %v3735, %v3748
      %v3772 = vadd.f32 %v3736, %v3748
      %v3773 = vadd.f32 %v3737, %v3748
      %v3774 = vadd.f32 %v3738, %v3748
      %v3775 = vadd.f32 %v3739, %v3748
      %v3776 = vadd.f32 %v3740, %v3748
      %v3777 = vadd.f32 %v3741, %v3748
      %v3778 = vadd.f32 %v3742, %v3748
      %v3779 = vadd.f32 %v3743, %v3748
      %v3780 = vadd.f32 %v3744, %v3748
      %v3781 = vld [vmem:[%s3 + $0xb8] sm:$0xff]
      %v3782 = vld [vmem:[%s3 + $0xc0] sm:$0xff]
      %v3783 = vld [vmem:[%s3 + $0xc8] sm:$0xff]
      %v3784 = vld [vmem:[%s3 + $0xd0] sm:$0xff]
      %v3785 = vlaneseq
      %v3786 = vshrl.u32 %v3785, 7
      %v3787 = vsub.s32 3, %v3786
      %v3788 = vrot.slane %v396, %v3787
      %v3790 = vsel %vm964, %v3749, 0
      %v3793 = vsel %vm964, %v3750, 0
      %v3796 = vsel %vm964, %v3751, 0
      %v3799 = vsel %vm964, %v3752, 0
      %v3802 = vsel %vm964, %v3753, 0
      %v3805 = vsel %vm964, %v3754, 0
      %v3808 = vsel %vm964, %v3755, 0
      %v3811 = vsel %vm964, %v3756, 0
      %v3814 = vsel %vm964, %v3757, 0
      %v3817 = vsel %vm964, %v3758, 0
      %v3820 = vsel %vm964, %v3759, 0
      %v3823 = vsel %vm964, %v3760, 0
      %v3826 = vsel %vm964, %v3761, 0
      %v3829 = vsel %vm964, %v3762, 0
      %v3832 = vsel %vm964, %v3763, 0
      %v3835 = vsel %vm964, %v3764, 0
      %v3838 = vsel %vm964, %v3765, 0
      %v3841 = vsel %vm964, %v3766, 0
      %v3844 = vsel %vm964, %v3767, 0
      %v3847 = vsel %vm964, %v3768, 0
      %v3850 = vsel %vm964, %v3769, 0
      %v3853 = vsel %vm964, %v3770, 0
      %v3856 = vsel %vm964, %v3771, 0
      %v3859 = vsel %vm964, %v3772, 0
      %v3862 = vsel %vm964, %v3773, 0
      %v3865 = vsel %vm964, %v3774, 0
      %v3868 = vsel %vm964, %v3775, 0
      %v3871 = vsel %vm964, %v3776, 0
      %v3874 = vsel %vm964, %v3777, 0
      %v3877 = vsel %vm964, %v3778, 0
      %v3880 = vsel %vm964, %v3779, 0
      %v3883 = vsel %vm964, %v3780, 0
      %3885 = vmatprep.subr.mxu0 0.0
      %3886 = vmatpush1.msra.mxu0 %v3781
      %3887 = vmatprep.subr.mxu0 0.0
      %3888 = vmatpush1.msra.mxu0 %v3782
      %3889 = vmatprep.subr.mxu0 0.0
      %3890 = vmatpush1.msra.mxu0 %v3783
      %3891 = vmatprep.subr.mxu0 0.0
      %3892 = vmatpush1.msra.mxu0 %v3784
      %3893 = vmatprep.subr.mxu0 0.0
      %3894 = vmatpush1.msra.mxu0 0.0
      %3895 = vmatprep.subr.mxu0 0.0
      %3896 = vmatpush1.msra.mxu0 0.0
      %3897 = vmatprep.subr.mxu0 0.0
      %3898 = vmatpush1.msra.mxu0 0.0
      %3899 = vmatprep.subr.mxu0 0.0
      %3900 = vmatpush1.msra.mxu0 0.0
      %3901 = vmatprep.subr.mxu0 0.0
      %3902 = vmatpush1.msra.mxu0 0.0
      %3903 = vmatprep.subr.mxu0 0.0
      %3904 = vmatpush1.msra.mxu0 0.0
      %3905 = vmatprep.subr.mxu0 0.0
      %3906 = vmatpush1.msra.mxu0 0.0
      %3907 = vmatprep.subr.mxu0 0.0
      %3908 = vmatpush1.msra.mxu0 0.0
      %3909 = vmatprep.subr.mxu0 0.0
      %3910 = vmatpush1.msra.mxu0 0.0
      %3911 = vmatprep.subr.mxu0 0.0
      %3912 = vmatpush1.msra.mxu0 0.0
      %3913 = vmatprep.subr.mxu0 0.0
      %3914 = vmatpush1.msra.mxu0 0.0
      %3915 = vmatprep.subr.mxu0 0.0
      %3916 = vmatpush1.msra.mxu0 0.0
      %3917 = vmatprep.subr.mxu0 0.0
      %3918 = vmatpush1.msra.mxu0 0.0
      %3919 = vmatprep.subr.mxu0 0.0
      %3920 = vmatpush1.msra.mxu0 0.0
      %3921 = vmatprep.subr.mxu0 0.0
      %3922 = vmatpush1.msra.mxu0 0.0
      %3923 = vmatprep.subr.mxu0 0.0
      %3924 = vmatpush1.msra.mxu0 0.0
      %3925 = vmatprep.subr.mxu0 0.0
      %3926 = vmatpush1.msra.mxu0 0.0
      %3927 = vmatprep.subr.mxu0 0.0
      %3928 = vmatpush1.msra.mxu0 0.0
      %3929 = vmatprep.subr.mxu0 0.0
      %3930 = vmatpush1.msra.mxu0 0.0
      %3931 = vmatprep.subr.mxu0 0.0
      %3932 = vmatpush1.msra.mxu0 0.0
      %3933 = vmatprep.subr.mxu0 0.0
      %3934 = vmatpush1.msra.mxu0 0.0
      %3935 = vmatprep.subr.mxu0 0.0
      %3936 = vmatpush1.msra.mxu0 0.0
      %3937 = vmatprep.subr.mxu0 0.0
      %3938 = vmatpush1.msra.mxu0 0.0
      %3939 = vmatprep.subr.mxu0 0.0
      %3940 = vmatpush1.msra.mxu0 0.0
      %3941 = vmatprep.subr.mxu0 0.0
      %3942 = vmatpush1.msra.mxu0 0.0
      %3943 = vmatprep.subr.mxu0 0.0
      %3944 = vmatpush1.msra.mxu0 0.0
      %3945 = vmatprep.subr.mxu0 0.0
      %3946 = vmatpush1.msra.mxu0 0.0
      %3947 = vmatprep.subr.mxu0 0.0
      %3948 = vmatpush1.msra.mxu0 0.0
      %3949 = vmatprep.mubr.f32.mxu0 0.0
      %3950 = vmatmul.mubr.f32.gmra.mrb[0].mxu0 %v3790
      %v3951 = vpop.f32.mrb[0].mxu0
      %v3952 = vadd.f32 %v3788, %v3951
      %v3953 = vpop.f32.mrb[0].mxu0
      %3954 = vmatprep.mubr.f32.mxu0 0.0
      %3955 = vmatmul.mubr.f32.gmra.mrb[0].mxu0 %v3793
      %v3956 = vpop.f32.mrb[0].mxu0
      %v3957 = vadd.f32 %v3788, %v3956
      %v3958 = vpop.f32.mrb[0].mxu0
      %3959 = vmatprep.mubr.f32.mxu0 0.0
      %3960 = vmatmul.mubr.f32.gmra.mrb[0].mxu0 %v3796
      %v3961 = vpop.f32.mrb[0].mxu0
      %v3962 = vadd.f32 %v3788, %v3961
      %v3963 = vpop.f32.mrb[0].mxu0
      %3964 = vmatprep.mubr.f32.mxu0 0.0
      %3965 = vmatmul.mubr.f32.gmra.mrb[0].mxu0 %v3799
      %v3966 = vpop.f32.mrb[0].mxu0
      %v3967 = vadd.f32 %v3788, %v3966
      %v3968 = vpop.f32.mrb[0].mxu0
      %3969 = vmatprep.mubr.f32.mxu0 0.0
      %3970 = vmatmul.mubr.f32.gmra.mrb[0].mxu0 %v3802
      %v3971 = vpop.f32.mrb[0].mxu0
      %v3972 = vadd.f32 %v3788, %v3971
      %v3973 = vpop.f32.mrb[0].mxu0
      %3974 = vmatprep.mubr.f32.mxu0 0.0
      %3975 = vmatmul.mubr.f32.gmra.mrb[0].mxu0 %v3805
      %v3976 = vpop.f32.mrb[0].mxu0
      %v3977 = vadd.f32 %v3788, %v3976
      %v3978 = vpop.f32.mrb[0].mxu0
      %3979 = vmatprep.mubr.f32.mxu0 0.0
      %3980 = vmatmul.mubr.f32.gmra.mrb[0].mxu0 %v3808
      %v3981 = vpop.f32.mrb[0].mxu0
      %v3982 = vadd.f32 %v3788, %v3981
      %v3983 = vpop.f32.mrb[0].mxu0
      %3984 = vmatprep.mubr.f32.mxu0 0.0
      %3985 = vmatmul.mubr.f32.gmra.mrb[0].mxu0 %v3811
      %v3986 = vpop.f32.mrb[0].mxu0
      %v3987 = vadd.f32 %v3788, %v3986
      %v3988 = vpop.f32.mrb[0].mxu0
      %3989 = vmatprep.mubr.f32.mxu0 0.0
      %3990 = vmatmul.mubr.f32.gmra.mrb[0].mxu0 %v3814
      %v3991 = vpop.f32.mrb[0].mxu0
      %v3992 = vadd.f32 %v3788, %v3991
      %v3993 = vpop.f32.mrb[0].mxu0
      %3994 = vmatprep.mubr.f32.mxu0 0.0
      %3995 = vmatmul.mubr.f32.gmra.mrb[0].mxu0 %v3817
      %v3996 = vpop.f32.mrb[0].mxu0
      %v3997 = vadd.f32 %v3788, %v3996
      %v3998 = vpop.f32.mrb[0].mxu0
      %3999 = vmatprep.mubr.f32.mxu0 0.0
      %4000 = vmatmul.mubr.f32.gmra.mrb[0].mxu0 %v3820
      %v4001 = vpop.f32.mrb[0].mxu0
      %v4002 = vadd.f32 %v3788, %v4001
      %v4003 = vpop.f32.mrb[0].mxu0
      %4004 = vmatprep.mubr.f32.mxu0 0.0
      %4005 = vmatmul.mubr.f32.gmra.mrb[0].mxu0 %v3823
      %v4006 = vpop.f32.mrb[0].mxu0
      %v4007 = vadd.f32 %v3788, %v4006
      %v4008 = vpop.f32.mrb[0].mxu0
      %4009 = vmatprep.mubr.f32.mxu0 0.0
      %4010 = vmatmul.mubr.f32.gmra.mrb[0].mxu0 %v3826
      %v4011 = vpop.f32.mrb[0].mxu0
      %v4012 = vadd.f32 %v3788, %v4011
      %v4013 = vpop.f32.mrb[0].mxu0
      %4014 = vmatprep.mubr.f32.mxu0 0.0
      %4015 = vmatmul.mubr.f32.gmra.mrb[0].mxu0 %v3829
      %v4016 = vpop.f32.mrb[0].mxu0
      %v4017 = vadd.f32 %v3788, %v4016
      %v4018 = vpop.f32.mrb[0].mxu0
      %4019 = vmatprep.mubr.f32.mxu0 0.0
      %4020 = vmatmul.mubr.f32.gmra.mrb[0].mxu0 %v3832
      %v4021 = vpop.f32.mrb[0].mxu0
      %v4022 = vadd.f32 %v3788, %v4021
      %v4023 = vpop.f32.mrb[0].mxu0
      %4024 = vmatprep.mubr.f32.mxu0 0.0
      %4025 = vmatmul.mubr.f32.gmra.mrb[0].mxu0 %v3835
      %v4026 = vpop.f32.mrb[0].mxu0
      %v4027 = vadd.f32 %v3788, %v4026
      %v4028 = vpop.f32.mrb[0].mxu0
      %4029 = vmatprep.mubr.f32.mxu0 0.0
      %4030 = vmatmul.mubr.f32.gmra.mrb[0].mxu0 %v3838
      %v4031 = vpop.f32.mrb[0].mxu0
      %v4032 = vadd.f32 %v3788, %v4031
      %v4033 = vpop.f32.mrb[0].mxu0
      %4034 = vmatprep.mubr.f32.mxu0 0.0
      %4035 = vmatmul.mubr.f32.gmra.mrb[0].mxu0 %v3841
      %v4036 = vpop.f32.mrb[0].mxu0
      %v4037 = vadd.f32 %v3788, %v4036
      %v4038 = vpop.f32.mrb[0].mxu0
      %4039 = vmatprep.mubr.f32.mxu0 0.0
      %4040 = vmatmul.mubr.f32.gmra.mrb[0].mxu0 %v3844
      %v4041 = vpop.f32.mrb[0].mxu0
      %v4042 = vadd.f32 %v3788, %v4041
      %v4043 = vpop.f32.mrb[0].mxu0
      %4044 = vmatprep.mubr.f32.mxu0 0.0
      %4045 = vmatmul.mubr.f32.gmra.mrb[0].mxu0 %v3847
      %v4046 = vpop.f32.mrb[0].mxu0
      %v4047 = vadd.f32 %v3788, %v4046
      %v4048 = vpop.f32.mrb[0].mxu0
      %4049 = vmatprep.mubr.f32.mxu0 0.0
      %4050 = vmatmul.mubr.f32.gmra.mrb[0].mxu0 %v3850
      %v4051 = vpop.f32.mrb[0].mxu0
      %v4052 = vadd.f32 %v3788, %v4051
      %v4053 = vpop.f32.mrb[0].mxu0
      %4054 = vmatprep.mubr.f32.mxu0 0.0
      %4055 = vmatmul.mubr.f32.gmra.mrb[0].mxu0 %v3853
      %v4056 = vpop.f32.mrb[0].mxu0
      %v4057 = vadd.f32 %v3788, %v4056
      %v4058 = vpop.f32.mrb[0].mxu0
      %4059 = vmatprep.mubr.f32.mxu0 0.0
      %4060 = vmatmul.mubr.f32.gmra.mrb[0].mxu0 %v3856
      %v4061 = vpop.f32.mrb[0].mxu0
      %v4062 = vadd.f32 %v3788, %v4061
      %v4063 = vpop.f32.mrb[0].mxu0
      %4064 = vmatprep.mubr.f32.mxu0 0.0
      %4065 = vmatmul.mubr.f32.gmra.mrb[0].mxu0 %v3859
      %v4066 = vpop.f32.mrb[0].mxu0
      %v4067 = vadd.f32 %v3788, %v4066
      %v4068 = vpop.f32.mrb[0].mxu0
      %4069 = vmatprep.mubr.f32.mxu0 0.0
      %4070 = vmatmul.mubr.f32.gmra.mrb[0].mxu0 %v3862
      %v4071 = vpop.f32.mrb[0].mxu0
      %v4072 = vadd.f32 %v3788, %v4071
      %v4073 = vpop.f32.mrb[0].mxu0
      %4074 = vmatprep.mubr.f32.mxu0 0.0
      %4075 = vmatmul.mubr.f32.gmra.mrb[0].mxu0 %v3865
      %v4076 = vpop.f32.mrb[0].mxu0
      %v4077 = vadd.f32 %v3788, %v4076
      %v4078 = vpop.f32.mrb[0].mxu0
      %4079 = vmatprep.mubr.f32.mxu0 0.0
      %4080 = vmatmul.mubr.f32.gmra.mrb[0].mxu0 %v3868
      %v4081 = vpop.f32.mrb[0].mxu0
      %v4082 = vadd.f32 %v3788, %v4081
      %v4083 = vpop.f32.mrb[0].mxu0
      %4084 = vmatprep.mubr.f32.mxu0 0.0
      %4085 = vmatmul.mubr.f32.gmra.mrb[0].mxu0 %v3871
      %v4086 = vpop.f32.mrb[0].mxu0
      %v4087 = vadd.f32 %v3788, %v4086
      %v4088 = vpop.f32.mrb[0].mxu0
      %4089 = vmatprep.mubr.f32.mxu0 0.0
      %4090 = vmatmul.mubr.f32.gmra.mrb[0].mxu0 %v3874
      %v4091 = vpop.f32.mrb[0].mxu0
      %v4092 = vadd.f32 %v3788, %v4091
      %v4093 = vpop.f32.mrb[0].mxu0
      %4094 = vmatprep.mubr.f32.mxu0 0.0
      %4095 = vmatmul.mubr.f32.gmra.mrb[0].mxu0 %v3877
      %v4096 = vpop.f32.mrb[0].mxu0
      %v4097 = vadd.f32 %v3788, %v4096
      %v4098 = vpop.f32.mrb[0].mxu0
      %4099 = vmatprep.mubr.f32.mxu0 0.0
      %4100 = vmatmul.mubr.f32.gmra.mrb[0].mxu0 %v3880
      %v4101 = vpop.f32.mrb[0].mxu0
      %v4102 = vadd.f32 %v3788, %v4101
      %v4103 = vpop.f32.mrb[0].mxu0
      %4104 = vmatprep.mubr.f32.mxu0 0.0
      %4105 = vmatmul.mubr.f32.gmra.mrb[0].mxu0 %v3883
      %v4106 = vpop.f32.mrb[0].mxu0
      %v4107 = vadd.f32 %v3788, %v4106
      %v4108 = vpop.f32.mrb[0].mxu0
      %4109 = vdwg.mxu0
      %v4110 = vmax.f32 %v3952, 0.0
      %v4111 = vmax.f32 %v3957, 0.0
      %v4112 = vmax.f32 %v3962, 0.0
      %v4113 = vmax.f32 %v3967, 0.0
      %v4114 = vmax.f32 %v3972, 0.0
      %v4115 = vmax.f32 %v3977, 0.0
      %v4116 = vmax.f32 %v3982, 0.0
      %v4117 = vmax.f32 %v3987, 0.0
      %v4118 = vmax.f32 %v3992, 0.0
      %v4119 = vmax.f32 %v3997, 0.0
      %v4120 = vmax.f32 %v4002, 0.0
      %v4121 = vmax.f32 %v4007, 0.0
      %v4122 = vmax.f32 %v4012, 0.0
      %v4123 = vmax.f32 %v4017, 0.0
      %v4124 = vmax.f32 %v4022, 0.0
      %v4125 = vmax.f32 %v4027, 0.0
      %v4126 = vmax.f32 %v4032, 0.0
      %v4127 = vmax.f32 %v4037, 0.0
      %v4128 = vmax.f32 %v4042, 0.0
      %v4129 = vmax.f32 %v4047, 0.0
      %v4130 = vmax.f32 %v4052, 0.0
      %v4131 = vmax.f32 %v4057, 0.0
      %v4132 = vmax.f32 %v4062, 0.0
      %v4133 = vmax.f32 %v4067, 0.0
      %v4134 = vmax.f32 %v4072, 0.0
      %v4135 = vmax.f32 %v4077, 0.0
      %v4136 = vmax.f32 %v4082, 0.0
      %v4137 = vmax.f32 %v4087, 0.0
      %v4138 = vmax.f32 %v4092, 0.0
      %v4139 = vmax.f32 %v4097, 0.0
      %v4140 = vmax.f32 %v4102, 0.0
      %v4141 = vmax.f32 %v4107, 0.0
      %v4142 = vld [vmem:[%s3 + $0x10] sm:$0x3]
      %v4143 = vlaneseq
      %v4144 = vshrl.u32 %v4143, 7
      %v4145 = vsub.s32 4, %v4144
      %v4146 = vrot.slane %v396, %v4145
      %v4148 = vsel %vm964, %v4110, 0
      %v4151 = vsel %vm964, %v4111, 0
      %v4154 = vsel %vm964, %v4112, 0
      %v4157 = vsel %vm964, %v4113, 0
      %v4160 = vsel %vm964, %v4114, 0
      %v4163 = vsel %vm964, %v4115, 0
      %v4166 = vsel %vm964, %v4116, 0
      %v4169 = vsel %vm964, %v4117, 0
      %v4172 = vsel %vm964, %v4118, 0
      %v4175 = vsel %vm964, %v4119, 0
      %v4178 = vsel %vm964, %v4120, 0
      %v4181 = vsel %vm964, %v4121, 0
      %v4184 = vsel %vm964, %v4122, 0
      %v4187 = vsel %vm964, %v4123, 0
      %v4190 = vsel %vm964, %v4124, 0
      %v4193 = vsel %vm964, %v4125, 0
      %v4196 = vsel %vm964, %v4126, 0
      %v4199 = vsel %vm964, %v4127, 0
      %v4202 = vsel %vm964, %v4128, 0
      %v4205 = vsel %vm964, %v4129, 0
      %v4208 = vsel %vm964, %v4130, 0
      %v4211 = vsel %vm964, %v4131, 0
      %v4214 = vsel %vm964, %v4132, 0
      %v4217 = vsel %vm964, %v4133, 0
      %v4220 = vsel %vm964, %v4134, 0
      %v4223 = vsel %vm964, %v4135, 0
      %v4226 = vsel %vm964, %v4136, 0
      %v4229 = vsel %vm964, %v4137, 0
      %v4232 = vsel %vm964, %v4138, 0
      %v4235 = vsel %vm964, %v4139, 0
      %v4238 = vsel %vm964, %v4140, 0
      %v4241 = vsel %vm964, %v4141, 0
      %v4244 = vsel %vm964, %v4142, 0
      %4246 = vmatprep.subr.mxu0 0.0
      %4247 = vmatpush1.xpose.msra.mxu0 %v4244
      %4248 = vmatprep.subr.mxu0 0.0
      %4249 = vmatpush1.xpose.msra.mxu0 0.0
      %4250 = vmatprep.subr.mxu0 0.0
      %4251 = vmatpush1.xpose.msra.mxu0 0.0
      %4252 = vmatprep.subr.mxu0 0.0
      %4253 = vmatpush1.xpose.msra.mxu0 0.0
      %4254 = vmatprep.subr.mxu0 0.0
      %4255 = vmatpush1.xpose.msra.mxu0 0.0
      %4256 = vmatprep.subr.mxu0 0.0
      %4257 = vmatpush1.xpose.msra.mxu0 0.0
      %4258 = vmatprep.subr.mxu0 0.0
      %4259 = vmatpush1.xpose.msra.mxu0 0.0
      %4260 = vmatprep.subr.mxu0 0.0
      %4261 = vmatpush1.xpose.msra.mxu0 0.0
      %4262 = vmatprep.subr.mxu0 0.0
      %4263 = vmatpush1.xpose.msra.mxu0 0.0
      %4264 = vmatprep.subr.mxu0 0.0
      %4265 = vmatpush1.xpose.msra.mxu0 0.0
      %4266 = vmatprep.subr.mxu0 0.0
      %4267 = vmatpush1.xpose.msra.mxu0 0.0
      %4268 = vmatprep.subr.mxu0 0.0
      %4269 = vmatpush1.xpose.msra.mxu0 0.0
      %4270 = vmatprep.subr.mxu0 0.0
      %4271 = vmatpush1.xpose.msra.mxu0 0.0
      %4272 = vmatprep.subr.mxu0 0.0
      %4273 = vmatpush1.xpose.msra.mxu0 0.0
      %4274 = vmatprep.subr.mxu0 0.0
      %4275 = vmatpush1.xpose.msra.mxu0 0.0
      %4276 = vmatprep.subr.mxu0 0.0
      %4277 = vmatpush1.xpose.msra.mxu0 0.0
      %4278 = vmatprep.subr.mxu0 0.0
      %4279 = vmatpush1.xpose.msra.mxu0 0.0
      %4280 = vmatprep.subr.mxu0 0.0
      %4281 = vmatpush1.xpose.msra.mxu0 0.0
      %4282 = vmatprep.subr.mxu0 0.0
      %4283 = vmatpush1.xpose.msra.mxu0 0.0
      %4284 = vmatprep.subr.mxu0 0.0
      %4285 = vmatpush1.xpose.msra.mxu0 0.0
      %4286 = vmatprep.subr.mxu0 0.0
      %4287 = vmatpush1.xpose.msra.mxu0 0.0
      %4288 = vmatprep.subr.mxu0 0.0
      %4289 = vmatpush1.xpose.msra.mxu0 0.0
      %4290 = vmatprep.subr.mxu0 0.0
      %4291 = vmatpush1.xpose.msra.mxu0 0.0
      %4292 = vmatprep.subr.mxu0 0.0
      %4293 = vmatpush1.xpose.msra.mxu0 0.0
      %4294 = vmatprep.subr.mxu0 0.0
      %4295 = vmatpush1.xpose.msra.mxu0 0.0
      %4296 = vmatprep.subr.mxu0 0.0
      %4297 = vmatpush1.xpose.msra.mxu0 0.0
      %4298 = vmatprep.subr.mxu0 0.0
      %4299 = vmatpush1.xpose.msra.mxu0 0.0
      %4300 = vmatprep.subr.mxu0 0.0
      %4301 = vmatpush1.xpose.msra.mxu0 0.0
      %4302 = vmatprep.subr.mxu0 0.0
      %4303 = vmatpush1.xpose.msra.mxu0 0.0
      %4304 = vmatprep.subr.mxu0 0.0
      %4305 = vmatpush1.xpose.msra.mxu0 0.0
      %4306 = vmatprep.subr.mxu0 0.0
      %4307 = vmatpush1.xpose.msra.mxu0 0.0
      %4308 = vmatprep.subr.mxu0 0.0
      %4309 = vmatpush1.xpose.msra.mxu0 0.0
      %4310 = vmatprep.mubr.f32.mxu0 0.0
      %4311 = vmatmul.mubr.f32.gmra.mrb[0].mxu0 %v4148
      %v4312 = vpop.f32.mrb[0].mxu0
      %v4313 = vadd.f32 %v4146, %v4312
      %v4314 = vpop.f32.mrb[0].mxu0
      %4315 = vmatprep.mubr.f32.mxu0 0.0
      %4316 = vmatmul.mubr.f32.gmra.mrb[0].mxu0 %v4151
      %v4317 = vpop.f32.mrb[0].mxu0
      %v4318 = vadd.f32 %v4146, %v4317
      %v4319 = vpop.f32.mrb[0].mxu0
      %4320 = vmatprep.mubr.f32.mxu0 0.0
      %4321 = vmatmul.mubr.f32.gmra.mrb[0].mxu0 %v4154
      %v4322 = vpop.f32.mrb[0].mxu0
      %v4323 = vadd.f32 %v4146, %v4322
      %v4324 = vpop.f32.mrb[0].mxu0
      %4325 = vmatprep.mubr.f32.mxu0 0.0
      %4326 = vmatmul.mubr.f32.gmra.mrb[0].mxu0 %v4157
      %v4327 = vpop.f32.mrb[0].mxu0
      %v4328 = vadd.f32 %v4146, %v4327
      %v4329 = vpop.f32.mrb[0].mxu0
      %4330 = vmatprep.mubr.f32.mxu0 0.0
      %4331 = vmatmul.mubr.f32.gmra.mrb[0].mxu0 %v4160
      %v4332 = vpop.f32.mrb[0].mxu0
      %v4333 = vadd.f32 %v4146, %v4332
      %v4334 = vpop.f32.mrb[0].mxu0
      %4335 = vmatprep.mubr.f32.mxu0 0.0
      %4336 = vmatmul.mubr.f32.gmra.mrb[0].mxu0 %v4163
      %v4337 = vpop.f32.mrb[0].mxu0
      %v4338 = vadd.f32 %v4146, %v4337
      %v4339 = vpop.f32.mrb[0].mxu0
      %4340 = vmatprep.mubr.f32.mxu0 0.0
      %4341 = vmatmul.mubr.f32.gmra.mrb[0].mxu0 %v4166
      %v4342 = vpop.f32.mrb[0].mxu0
      %v4343 = vadd.f32 %v4146, %v4342
      %v4344 = vpop.f32.mrb[0].mxu0
      %4345 = vmatprep.mubr.f32.mxu0 0.0
      %4346 = vmatmul.mubr.f32.gmra.mrb[0].mxu0 %v4169
      %v4347 = vpop.f32.mrb[0].mxu0
      %v4348 = vadd.f32 %v4146, %v4347
      %v4349 = vpop.f32.mrb[0].mxu0
      %4350 = vmatprep.mubr.f32.mxu0 0.0
      %4351 = vmatmul.mubr.f32.gmra.mrb[0].mxu0 %v4172
      %v4352 = vpop.f32.mrb[0].mxu0
      %v4353 = vadd.f32 %v4146, %v4352
      %v4354 = vpop.f32.mrb[0].mxu0
      %4355 = vmatprep.mubr.f32.mxu0 0.0
      %4356 = vmatmul.mubr.f32.gmra.mrb[0].mxu0 %v4175
      %v4357 = vpop.f32.mrb[0].mxu0
      %v4358 = vadd.f32 %v4146, %v4357
      %v4359 = vpop.f32.mrb[0].mxu0
      %4360 = vmatprep.mubr.f32.mxu0 0.0
      %4361 = vmatmul.mubr.f32.gmra.mrb[0].mxu0 %v4178
      %v4362 = vpop.f32.mrb[0].mxu0
      %v4363 = vadd.f32 %v4146, %v4362
      %v4364 = vpop.f32.mrb[0].mxu0
      %4365 = vmatprep.mubr.f32.mxu0 0.0
      %4366 = vmatmul.mubr.f32.gmra.mrb[0].mxu0 %v4181
      %v4367 = vpop.f32.mrb[0].mxu0
      %v4368 = vadd.f32 %v4146, %v4367
      %v4369 = vpop.f32.mrb[0].mxu0
      %4370 = vmatprep.mubr.f32.mxu0 0.0
      %4371 = vmatmul.mubr.f32.gmra.mrb[0].mxu0 %v4184
      %v4372 = vpop.f32.mrb[0].mxu0
      %v4373 = vadd.f32 %v4146, %v4372
      %v4374 = vpop.f32.mrb[0].mxu0
      %4375 = vmatprep.mubr.f32.mxu0 0.0
      %4376 = vmatmul.mubr.f32.gmra.mrb[0].mxu0 %v4187
      %v4377 = vpop.f32.mrb[0].mxu0
      %v4378 = vadd.f32 %v4146, %v4377
      %v4379 = vpop.f32.mrb[0].mxu0
      %4380 = vmatprep.mubr.f32.mxu0 0.0
      %4381 = vmatmul.mubr.f32.gmra.mrb[0].mxu0 %v4190
      %v4382 = vpop.f32.mrb[0].mxu0
      %v4383 = vadd.f32 %v4146, %v4382
      %v4384 = vpop.f32.mrb[0].mxu0
      %4385 = vmatprep.mubr.f32.mxu0 0.0
      %4386 = vmatmul.mubr.f32.gmra.mrb[0].mxu0 %v4193
      %v4387 = vpop.f32.mrb[0].mxu0
      %v4388 = vadd.f32 %v4146, %v4387
      %v4389 = vpop.f32.mrb[0].mxu0
      %4390 = vmatprep.mubr.f32.mxu0 0.0
      %4391 = vmatmul.mubr.f32.gmra.mrb[0].mxu0 %v4196
      %v4392 = vpop.f32.mrb[0].mxu0
      %v4393 = vadd.f32 %v4146, %v4392
      %v4394 = vpop.f32.mrb[0].mxu0
      %4395 = vmatprep.mubr.f32.mxu0 0.0
      %4396 = vmatmul.mubr.f32.gmra.mrb[0].mxu0 %v4199
      %v4397 = vpop.f32.mrb[0].mxu0
      %v4398 = vadd.f32 %v4146, %v4397
      %v4399 = vpop.f32.mrb[0].mxu0
      %4400 = vmatprep.mubr.f32.mxu0 0.0
      %4401 = vmatmul.mubr.f32.gmra.mrb[0].mxu0 %v4202
      %v4402 = vpop.f32.mrb[0].mxu0
      %v4403 = vadd.f32 %v4146, %v4402
      %v4404 = vpop.f32.mrb[0].mxu0
      %4405 = vmatprep.mubr.f32.mxu0 0.0
      %4406 = vmatmul.mubr.f32.gmra.mrb[0].mxu0 %v4205
      %v4407 = vpop.f32.mrb[0].mxu0
      %v4408 = vadd.f32 %v4146, %v4407
      %v4409 = vpop.f32.mrb[0].mxu0
      %4410 = vmatprep.mubr.f32.mxu0 0.0
      %4411 = vmatmul.mubr.f32.gmra.mrb[0].mxu0 %v4208
      %v4412 = vpop.f32.mrb[0].mxu0
      %v4413 = vadd.f32 %v4146, %v4412
      %v4414 = vpop.f32.mrb[0].mxu0
      %4415 = vmatprep.mubr.f32.mxu0 0.0
      %4416 = vmatmul.mubr.f32.gmra.mrb[0].mxu0 %v4211
      %v4417 = vpop.f32.mrb[0].mxu0
      %v4418 = vadd.f32 %v4146, %v4417
      %v4419 = vpop.f32.mrb[0].mxu0
      %4420 = vmatprep.mubr.f32.mxu0 0.0
      %4421 = vmatmul.mubr.f32.gmra.mrb[0].mxu0 %v4214
      %v4422 = vpop.f32.mrb[0].mxu0
      %v4423 = vadd.f32 %v4146, %v4422
      %v4424 = vpop.f32.mrb[0].mxu0
      %4425 = vmatprep.mubr.f32.mxu0 0.0
      %4426 = vmatmul.mubr.f32.gmra.mrb[0].mxu0 %v4217
      %v4427 = vpop.f32.mrb[0].mxu0
      %v4428 = vadd.f32 %v4146, %v4427
      %v4429 = vpop.f32.mrb[0].mxu0
      %4430 = vmatprep.mubr.f32.mxu0 0.0
      %4431 = vmatmul.mubr.f32.gmra.mrb[0].mxu0 %v4220
      %v4432 = vpop.f32.mrb[0].mxu0
      %v4433 = vadd.f32 %v4146, %v4432
      %v4434 = vpop.f32.mrb[0].mxu0
      %4435 = vmatprep.mubr.f32.mxu0 0.0
      %4436 = vmatmul.mubr.f32.gmra.mrb[0].mxu0 %v4223
      %v4437 = vpop.f32.mrb[0].mxu0
      %v4438 = vadd.f32 %v4146, %v4437
      %v4439 = vpop.f32.mrb[0].mxu0
      %4440 = vmatprep.mubr.f32.mxu0 0.0
      %4441 = vmatmul.mubr.f32.gmra.mrb[0].mxu0 %v4226
      %v4442 = vpop.f32.mrb[0].mxu0
      %v4443 = vadd.f32 %v4146, %v4442
      %v4444 = vpop.f32.mrb[0].mxu0
      %4445 = vmatprep.mubr.f32.mxu0 0.0
      %4446 = vmatmul.mubr.f32.gmra.mrb[0].mxu0 %v4229
      %v4447 = vpop.f32.mrb[0].mxu0
      %v4448 = vadd.f32 %v4146, %v4447
      %v4449 = vpop.f32.mrb[0].mxu0
      %4450 = vmatprep.mubr.f32.mxu0 0.0
      %4451 = vmatmul.mubr.f32.gmra.mrb[0].mxu0 %v4232
      %v4452 = vpop.f32.mrb[0].mxu0
      %v4453 = vadd.f32 %v4146, %v4452
      %v4454 = vpop.f32.mrb[0].mxu0
      %4455 = vmatprep.mubr.f32.mxu0 0.0
      %4456 = vmatmul.mubr.f32.gmra.mrb[0].mxu0 %v4235
      %v4457 = vpop.f32.mrb[0].mxu0
      %v4458 = vadd.f32 %v4146, %v4457
      %v4459 = vpop.f32.mrb[0].mxu0
      %4460 = vmatprep.mubr.f32.mxu0 0.0
      %4461 = vmatmul.mubr.f32.gmra.mrb[0].mxu0 %v4238
      %v4462 = vpop.f32.mrb[0].mxu0
      %v4463 = vadd.f32 %v4146, %v4462
      %v4464 = vpop.f32.mrb[0].mxu0
      %4465 = vmatprep.mubr.f32.mxu0 0.0
      %4466 = vmatmul.mubr.f32.gmra.mrb[0].mxu0 %v4241
      %v4467 = vpop.f32.mrb[0].mxu0
      %v4468 = vadd.f32 %v4146, %v4467
      %v4469 = vpop.f32.mrb[0].mxu0
      %4470 = vdwg.mxu0
      %4471 = vst.msk [vmem:[%s297] sm:$0xff] %vm594, %v4313
      %4472 = vst.msk [vmem:[%s297 + $0x8] sm:$0xff] %vm594, %v4318
      %4473 = vst.msk [vmem:[%s297 + $0x10] sm:$0xff] %vm594, %v4323
      %4474 = vst.msk [vmem:[%s297 + $0x18] sm:$0xff] %vm594, %v4328
      %4475 = vst.msk [vmem:[%s297 + $0x20] sm:$0xff] %vm594, %v4333
      %4476 = vst.msk [vmem:[%s297 + $0x28] sm:$0xff] %vm594, %v4338
      %4477 = vst.msk [vmem:[%s297 + $0x30] sm:$0xff] %vm594, %v4343
      %4478 = vst.msk [vmem:[%s297 + $0x38] sm:$0xff] %vm594, %v4348
      %4479 = vst.msk [vmem:[%s297 + $0x40] sm:$0xff] %vm594, %v4353
      %4480 = vst.msk [vmem:[%s297 + $0x48] sm:$0xff] %vm594, %v4358
      %4481 = vst.msk [vmem:[%s297 + $0x50] sm:$0xff] %vm594, %v4363
      %4482 = vst.msk [vmem:[%s297 + $0x58] sm:$0xff] %vm594, %v4368
      %4483 = vst.msk [vmem:[%s297 + $0x60] sm:$0xff] %vm594, %v4373
      %4484 = vst.msk [vmem:[%s297 + $0x68] sm:$0xff] %vm594, %v4378
      %4485 = vst.msk [vmem:[%s297 + $0x70] sm:$0xff] %vm594, %v4383
      %4486 = vst.msk [vmem:[%s297 + $0x78] sm:$0xff] %vm594, %v4388
      %4487 = vst.msk [vmem:[%s297 + $0x80] sm:$0xff] %vm594, %v4393
      %4488 = vst.msk [vmem:[%s297 + $0x88] sm:$0xff] %vm594, %v4398
      %4489 = vst.msk [vmem:[%s297 + $0x90] sm:$0xff] %vm594, %v4403
      %4490 = vst.msk [vmem:[%s297 + $0x98] sm:$0xff] %vm594, %v4408
      %4491 = vst.msk [vmem:[%s297 + $0xa0] sm:$0xff] %vm594, %v4413
      %4492 = vst.msk [vmem:[%s297 + $0xa8] sm:$0xff] %vm594, %v4418
      %4493 = vst.msk [vmem:[%s297 + $0xb0] sm:$0xff] %vm594, %v4423
      %4494 = vst.msk [vmem:[%s297 + $0xb8] sm:$0xff] %vm594, %v4428
      %4495 = vst.msk [vmem:[%s297 + $0xc0] sm:$0xff] %vm594, %v4433
      %4496 = vst.msk [vmem:[%s297 + $0xc8] sm:$0xff] %vm594, %v4438
      %4497 = vst.msk [vmem:[%s297 + $0xd0] sm:$0xff] %vm594, %v4443
      %4498 = vst.msk [vmem:[%s297 + $0xd8] sm:$0xff] %vm594, %v4448
      %4499 = vst.msk [vmem:[%s297 + $0xe0] sm:$0xff] %vm594, %v4453
      %4500 = vst.msk [vmem:[%s297 + $0xe8] sm:$0xff] %vm594, %v4458
      %4501 = vst.msk [vmem:[%s297 + $0xf0] sm:$0xff] %vm594, %v4463
      %4502 = vst.msk [vmem:[%s297 + $0xf8] sm:$0xff] %vm594, %v4468
      %s4503 = smul.u32 32, %s17
      %p4504 = scmp.lt.s32.totalorder %s4503, 127
      %s4505 = scalar_select %p4504, %s4503, 127
      %s4506 = smul.addr %s4505, 8
      %s4507 = scalar_lea.vmem %s6, %s4506
      // Predicated region
      $region45: #{tpu_custom_call.1} parent=43 // pred_check
        %p4508 = pneg %p176
      $region46: #{tpu_custom_call.1} parent=43 // pred_check_branch
        %4510 = sbr.rel (%p4508) target = $region48
      $region47: #{tpu_custom_call.1} parent=43 // pred_region
        %s4511 = smul.u32 32, %s17
      $region48: #{tpu_custom_call.1} parent=43 // pred_fallthru
        _
    $region44: #{tpu_custom_call.1} parent=5 // pred_fallthru
      _
    %p4512 = scmp.le.s32.totalorder 2, %s12
    // Predicated region
    $region49: #{tpu_custom_call.1} parent=5 // pred_check
      %p4513 = pneg %p4512
    $region50: #{tpu_custom_call.1} parent=5 // pred_check_branch
      %4515 = sbr.rel (%p4513) target = $region52
    $region51: #{tpu_custom_call.1} parent=5 // pred_region
      %s4516 = ssub.s32 %s12, 2
      // Predicated region
      $region53: #{tpu_custom_call.1} parent=51 // pred_check
        %p4517 = pneg %p182
      $region54: #{tpu_custom_call.1} parent=51 // pred_check_branch
        %4519 = sbr.rel (%p4517) target = $region56
      $region55: #{tpu_custom_call.1} parent=51 // pred_region
        %s4520 = smul.u32 32, %s18
        %p4521 = scmp.lt.s32.totalorder %s4520, 127
        %s4522 = scalar_select %p4521, %s4520, 127
        %s4523 = smul.addr %s4522, 8
        %s4524 = scalar_lea.vmem %s6, %s4523
      $region56: #{tpu_custom_call.1} parent=51 // pred_fallthru
        _
    $region52: #{tpu_custom_call.1} parent=5 // pred_fallthru
      _
  $region6: #{tpu_custom_call.1} parent=0 // loop_footer
    %s16 = sadd.s32 1, %s12
  $region7: #{tpu_custom_call.1} parent=0 // loop_footer_branch
    %11 = sbr.rel target = $region3
  $region8: #{tpu_custom_call.1} parent=0 // loop_exit
    _

</llo_original>
